<compile_context>
chip_gen: v5e
topology: v5e:2x2
jax: 0.10.0
libtpu: 0.0.40
codegen_flags: <defaults>
</compile_context>

<pallas_src>
import jax
import jax.numpy as jnp
from jax import lax
from jax.experimental import pallas as pl
from jax.experimental.pallas import tpu as pltpu

# Model dims fixed by the PyTorch spec (fc expects 256 * (H/4) * (W/4) = 2560).
C_IN, C1, C2, C3, N_CLS = 25, 64, 128, 256, 10
C_IN_PAD = 32  # zero-pad conv1 input channels 25 -> 32 (weights padded too)


def _round_up(n, m):
    return ((n + m - 1) // m) * m


def _pick_sps(B):
    """Samples per grid step: amortize per-step overhead, keep >=2 grid steps
    (v7x splits a 'parallel' axis over its two TensorCores), cap at 8."""
    cap = min(8, max(1, B // 2))
    for sps in range(cap, 0, -1):
        if B % sps == 0:
            return sps
    return 1


# --------------------------- fused kernel builder ---------------------------

def make_fused_kernel(B, H1, W1):
    """Build the single fused forward kernel + grid spec for input (H1, W1)."""
    assert H1 % 4 == 0 and W1 % 4 == 0
    SPS = _pick_sps(B)
    W1p = W1 + 2
    M1 = H1 * W1p                       # conv1 flat-output rows
    H2, W2 = H1 // 2, W1 // 2
    W2p = W2 + 2
    M2 = H2 * W2p                       # conv2 flat-output rows
    H3, W3 = H2 // 2, W2 // 2
    W3p = W3 + 2
    M3 = H3 * W3p                       # conv3 flat-output rows
    # padded-flat input buffers need (H+2)*Wp + 2 rows (last tap shift = 2*Wp+2)
    P1R = _round_up((H1 + 2) * W1p + 2, 8)
    P2R = _round_up((H2 + 2) * W2p + 2, 8)
    P3R = _round_up((H3 + 2) * W3p + 2, 8)

    def kernel(x_ref, w1_ref, b1_ref, w2_ref, b2_ref, w3_ref, b3_ref,
               wfc_ref, bfc_ref, o_ref,
               a1_ref, p2_ref, a2_ref, p3_ref, fcrow_ref):

        def conv3x3(load, m, wp, w_ref, b_ref):
            """3x3 same-conv on a flat-padded buffer as 3 wide-K GEMMs.

            For each kh the three kw-taps are lane-concatenated (K = 3*Cin),
            so the kw reduction happens inside a single MXU pass; cross-kh
            accumulation is just 2 f32 adds. Returns relu(out) in f32.
            """
            acc = None
            for kh in range(3):
                lhs = jnp.concatenate(
                    [load(kh * wp + kw, m) for kw in range(3)], axis=-1)
                d = jnp.dot(lhs, w_ref[kh],
                            preferred_element_type=jnp.float32)
                acc = d if acc is None else acc + d
            return jnp.maximum(acc + b_ref[...], 0.0)

        def pool2x2(a_ref, p_ref, h_out, w_out, wp_in, wp_out):
            """2x2/2 max-pool flat conv output a_ref into padded p_ref (bf16).

            Only the interior rows are written; halo rows/columns were zeroed
            at the top of the step and are never touched here.
            """
            for i in range(h_out):
                corners = [
                    a_ref[pl.ds((2 * i + di) * wp_in + dj, w_out, stride=2), :]
                    for di in range(2) for dj in range(2)
                ]
                m = jnp.maximum(jnp.maximum(corners[0], corners[1]),
                                jnp.maximum(corners[2], corners[3]))
                base = (i + 1) * wp_out + 1
                p_ref[base:base + w_out, :] = m.astype(p_ref.dtype)

        # Zero the padded-buffer halos ONCE PER GRID STEP (hoisted out of the
        # per-sample loop; interiors are fully rewritten per sample). Not done
        # under program_id==0 because with dimension_semantics=("parallel",)
        # each TensorCore has its own scratch and may never see step 0.
        p2_ref[...] = jnp.zeros(p2_ref.shape, p2_ref.dtype)
        p3_ref[...] = jnp.zeros(p3_ref.shape, p3_ref.dtype)

        for s in range(SPS):
            # ---- conv1 + relu (input already flat-padded NHWC bf16) ----
            a1_ref[...] = conv3x3(lambda off, m: x_ref[s, off:off + m, :],
                                  M1, W1p, w1_ref, b1_ref)
            # ---- pool1 -> padded conv2 input ----
            pool2x2(a1_ref, p2_ref, H2, W2, W1p, W2p)
            # ---- conv2 + relu ----
            a2_ref[...] = conv3x3(lambda off, m: p2_ref[off:off + m, :],
                                  M2, W2p, w2_ref, b2_ref)
            # ---- pool2 -> padded conv3 input ----
            pool2x2(a2_ref, p3_ref, H3, W3, W2p, W3p)
            # ---- conv3 + relu (small value: (M3, 256) f32) ----
            y3 = conv3x3(lambda off, m: p3_ref[off:off + m, :],
                         M3, W3p, w3_ref, b3_ref)

            # ---- fc as ONE wide-K GEMM ----
            # Relayout the 10 valid spatial positions of y3 (skipping the W3p
            # padding columns, which hold garbage) into a single lane-major
            # (1, 2560) row via 10 lane-aligned 256-lane copies, then do one
            # (1, 2560) @ (2560, 10) matmul against the pre-permuted fc weight.
            for h in range(H3):
                for w in range(W3):
                    q = h * W3p + w          # row in flat conv3 output
                    p = h * W3 + w           # NHWC-flatten position
                    fcrow_ref[0:1, p * C3:(p + 1) * C3] = (
                        y3[q:q + 1, :].astype(jnp.bfloat16))
            logits = jnp.dot(fcrow_ref[...], wfc_ref[...],
                             preferred_element_type=jnp.float32) + bfc_ref[...]
            mx = jnp.max(logits, axis=-1, keepdims=True)
            e = jnp.exp(logits - mx)
            inv = pl.reciprocal(jnp.sum(e, axis=-1, keepdims=True), approx=True)
            o_ref[s, :, :] = e * inv

    in_specs = [
        pl.BlockSpec((SPS, P1R, C_IN_PAD), lambda b: (b, 0, 0)),    # x (flat-padded)
        pl.BlockSpec((3, 3 * C_IN_PAD, C1), lambda b: (0, 0, 0)),   # w1 (kh, kw*Cin+c, o)
        pl.BlockSpec((1, C1), lambda b: (0, 0)),                    # b1
        pl.BlockSpec((3, 3 * C1, C2), lambda b: (0, 0, 0)),         # w2
        pl.BlockSpec((1, C2), lambda b: (0, 0)),                    # b2
        pl.BlockSpec((3, 3 * C2, C3), lambda b: (0, 0, 0)),         # w3
        pl.BlockSpec((1, C3), lambda b: (0, 0)),                    # b3
        pl.BlockSpec((H3 * W3 * C3, N_CLS), lambda b: (0, 0)),      # wfc (2560, 10)
        pl.BlockSpec((1, N_CLS), lambda b: (0, 0)),                 # bfc
    ]
    out_specs = pl.BlockSpec((SPS, 1, N_CLS), lambda b: (b, 0, 0))
    scratch_shapes = [
        pltpu.VMEM((M1, C1), jnp.float32),          # conv1 output (flat, stride W1p)
        pltpu.VMEM((P2R, C1), jnp.bfloat16),        # padded-flat conv2 input
        pltpu.VMEM((M2, C2), jnp.float32),          # conv2 output
        pltpu.VMEM((P3R, C2), jnp.bfloat16),        # padded-flat conv3 input
        pltpu.VMEM((1, H3 * W3 * C3), jnp.bfloat16),  # fc lhs row (lane-dense)
    ]
    grid_spec = pltpu.PrefetchScalarGridSpec(
        num_scalar_prefetch=0, grid=(B // SPS,),
        in_specs=in_specs, out_specs=out_specs,
        scratch_shapes=scratch_shapes)
    return kernel, grid_spec, P1R


# ------------------------------- forward ------------------------------------

def cnn2d_forward(x_nchw, prep):
    B, C, H1, W1 = x_nchw.shape
    kernel, grid_spec, P1R = make_fused_kernel(B, H1, W1)

    # Single tiny pre-processing fusion on the input: NCHW->NHWC, spatial
    # zero-pad (conv padding=1), channel pad 25->32, flatten to rows.
    x = jnp.transpose(x_nchw, (0, 2, 3, 1)).astype(jnp.float32)
    x = jnp.pad(x, ((0, 0), (1, 1), (1, 1), (0, C_IN_PAD - C)))
    x = x.reshape(B, (H1 + 2) * (W1 + 2), C_IN_PAD)
    x = jnp.pad(x, ((0, 0), (0, P1R - (H1 + 2) * (W1 + 2)), (0, 0)))
    x = x.astype(jnp.bfloat16)

    out = pl.pallas_call(
        kernel,
        out_shape=jax.ShapeDtypeStruct((B, 1, N_CLS), jnp.float32),
        grid_spec=grid_spec,
        compiler_params=pltpu.CompilerParams(
            dimension_semantics=("parallel",)),
    )(x, prep["w1"], prep["b1"], prep["w2"], prep["b2"],
      prep["w3"], prep["b3"], prep["wfc"], prep["bfc"])
    return out.reshape(B, N_CLS)


# -------------------------- params & one-time prep --------------------------

def init_params(key):
    ks = jax.random.split(key, 8)

    def rnd(k, shape, fan_in):
        return jax.random.normal(k, shape, jnp.float32) * (1.0 / jnp.sqrt(fan_in))

    return {
        "w1": rnd(ks[0], (C1, C_IN, 3, 3), C_IN * 9),
        "b1": rnd(ks[1], (C1,), C_IN * 9),
        "w2": rnd(ks[2], (C2, C1, 3, 3), C1 * 9),
        "b2": rnd(ks[3], (C2,), C1 * 9),
        "w3": rnd(ks[4], (C3, C2, 3, 3), C2 * 9),
        "b3": rnd(ks[5], (C3,), C2 * 9),
        "wfc": rnd(ks[6], (N_CLS, 2560), 2560),
        "bfc": rnd(ks[7], (N_CLS,), 2560),
    }


def prepare_params(params, H1, W1):
    """One-time, outside the forward: MXU-ready weight layouts (bf16)."""
    H3, W3 = H1 // 4, W1 // 4

    def conv_w(w, cin_pad=None):
        # OIHW -> (kh, kw, cin, cout) -> (3, 3*cin, cout); row order inside a
        # kh-block is kw-major/channel-minor, matching the in-kernel lane
        # concatenation [kw=0 | kw=1 | kw=2] of Cin-channel blocks.
        cout, cin = w.shape[0], w.shape[1]
        wm = jnp.transpose(w, (2, 3, 1, 0))
        if cin_pad is not None and cin_pad != cin:
            wm = jnp.pad(wm, ((0, 0), (0, 0), (0, cin_pad - cin), (0, 0)))
            cin = cin_pad
        return wm.reshape(3, 3 * cin, cout).astype(jnp.bfloat16)

    # fc weight: absorb the NCHW-flatten order into a (H3*W3*C3, N_CLS) matrix
    # whose row index is p*C3 + c (p = NHWC spatial position), matching the
    # lane layout of the in-kernel (1, 2560) fc row -> single GEMM, no
    # runtime transpose.
    wfc = params["wfc"].reshape(N_CLS, C3, H3, W3)          # [o, c, h, w]
    wfc = jnp.transpose(wfc, (2, 3, 1, 0)).reshape(H3 * W3 * C3, N_CLS)

    return {
        "w1": conv_w(params["w1"], C_IN_PAD),
        "b1": params["b1"].reshape(1, -1).astype(jnp.float32),
        "w2": conv_w(params["w2"]),
        "b2": params["b2"].reshape(1, -1).astype(jnp.float32),
        "w3": conv_w(params["w3"]),
        "b3": params["b3"].reshape(1, -1).astype(jnp.float32),
        "wfc": wfc.astype(jnp.bfloat16),
        "bfc": params["bfc"].reshape(1, -1).astype(jnp.float32),
    }


# ------------------------ pure-JAX reference (f32) ---------------------------

def reference_forward(x_nchw, params):
    def conv(x, w, b):
        y = lax.conv_general_dilated(x, w, (1, 1), ((1, 1), (1, 1)),
                                     dimension_numbers=("NCHW", "OIHW", "NCHW"))
        return jax.nn.relu(y + b[None, :, None, None])

    def pool(x):
        b, c, h, w = x.shape
        return x.reshape(b, c, h // 2, 2, w // 2, 2).max(axis=(3, 5))

    x = pool(conv(x_nchw, params["w1"], params["b1"]))
    x = pool(conv(x, params["w2"], params["b2"]))
    x = conv(x, params["w3"], params["b3"])
    flat = x.reshape(x.shape[0], -1)                       # NCHW flatten
    logits = flat @ params["wfc"].T + params["bfc"]
    return jax.nn.softmax(logits, axis=-1)


# --------------------------------- main --------------------------------------

if __name__ == "__main__":
    key = jax.random.PRNGKey(0)
    k_x, k_p = jax.random.split(key)
    # Input spatial 8x20 -> after two 2x2 pools: 2x5; 256*2*5 = 2560 = fc in_features.
    H1, W1 = 8, 20
    x = jax.random.normal(k_x, (2, C_IN, H1, W1), jnp.float32)
    params = init_params(k_p)
    prep = prepare_params(params, H1, W1)      # one-time weight layout prep

    out = jax.jit(cnn2d_forward)(x, prep)
    out = jax.block_until_ready(out)

    assert out.shape == (2, N_CLS), out.shape
    # softmax rows sum to ~1 (approx-reciprocal denominator -> looser tol)
    assert bool(jnp.all(jnp.abs(jnp.sum(out, axis=1) - 1.0) < 5e-3))
    # compare against the f32 XLA reference (bf16 MXU operands -> loose tol)
    ref = reference_forward(x, params)
    assert bool(jnp.max(jnp.abs(out - ref)) < 5e-2), float(jnp.max(jnp.abs(out - ref)))
    print("KERNEL_OK")
</pallas_src>

<mosaic_0001>
module attributes {stable_mosaic.version = 11 : i64} {
  func.func @kernel(%arg0: i32, %arg1: memref<1x224x32xbf16, #tpu.memory_space<vmem>>, %arg2: memref<3x96x64xbf16, #tpu.memory_space<vmem>>, %arg3: memref<1x64xf32, #tpu.memory_space<vmem>>, %arg4: memref<3x192x128xbf16, #tpu.memory_space<vmem>>, %arg5: memref<1x128xf32, #tpu.memory_space<vmem>>, %arg6: memref<3x384x256xbf16, #tpu.memory_space<vmem>>, %arg7: memref<1x256xf32, #tpu.memory_space<vmem>>, %arg8: memref<2560x10xbf16, #tpu.memory_space<vmem>>, %arg9: memref<1x10xf32, #tpu.memory_space<vmem>>, %arg10: memref<1x1x10xf32, #tpu.memory_space<vmem>>, %arg11: memref<176x64xf32, #tpu.memory_space<vmem>>, %arg12: memref<80x64xbf16, #tpu.memory_space<vmem>>, %arg13: memref<48x128xf32, #tpu.memory_space<vmem>>, %arg14: memref<32x128xbf16, #tpu.memory_space<vmem>>, %arg15: memref<1x2560xbf16, #tpu.memory_space<vmem>>) attributes {dimension_semantics = [#tpu.dimension_semantics<parallel>], iteration_bounds = array<i64: 2>, scalar_prefetch = 0 : i64, scratch_operands = 5 : i64, tpu.core_type = #tpu.core_type<tc>, window_params = [{transform_indices = @transform_0, window_bounds = array<i64: 1, 224, 32>}, {pipeline_mode = #tpu.pipeline_mode<synchronous>, transform_indices = @transform_1, window_bounds = array<i64: 3, 96, 64>}, {pipeline_mode = #tpu.pipeline_mode<synchronous>, transform_indices = @transform_2, window_bounds = array<i64: 1, 64>}, {pipeline_mode = #tpu.pipeline_mode<synchronous>, transform_indices = @transform_3, window_bounds = array<i64: 3, 192, 128>}, {pipeline_mode = #tpu.pipeline_mode<synchronous>, transform_indices = @transform_4, window_bounds = array<i64: 1, 128>}, {pipeline_mode = #tpu.pipeline_mode<synchronous>, transform_indices = @transform_5, window_bounds = array<i64: 3, 384, 256>}, {pipeline_mode = #tpu.pipeline_mode<synchronous>, transform_indices = @transform_6, window_bounds = array<i64: 1, 256>}, {pipeline_mode = #tpu.pipeline_mode<synchronous>, transform_indices = @transform_7, window_bounds = array<i64: 2560, 10>}, {pipeline_mode = #tpu.pipeline_mode<synchronous>, transform_indices = @transform_8, window_bounds = array<i64: 1, 10>}, {transform_indices = @transform_9, window_bounds = array<i64: 1, 1, 10>}]} {
    %cst = arith.constant 0.000000e+00 : bf16
    %0 = vector.broadcast %cst : bf16 to vector<80x64xbf16>
    %c0 = arith.constant 0 : index
    %c0_0 = arith.constant 0 : index
    %1 = vector.load %arg12[%c0, %c0_0] : memref<80x64xbf16, #tpu.memory_space<vmem>>, vector<80x64xbf16>
    tpu.vector_store %arg12[%c0, %c0_0], %0 {strides = array<i32>} : memref<80x64xbf16, #tpu.memory_space<vmem>>, vector<80x64xbf16>,
    %cst_1 = arith.constant 0.000000e+00 : bf16
    %2 = vector.broadcast %cst_1 : bf16 to vector<32x128xbf16>
    %c0_2 = arith.constant 0 : index
    %c0_3 = arith.constant 0 : index
    %3 = vector.load %arg14[%c0_2, %c0_3] : memref<32x128xbf16, #tpu.memory_space<vmem>>, vector<32x128xbf16>
    tpu.vector_store %arg14[%c0_2, %c0_3], %2 {strides = array<i32>} : memref<32x128xbf16, #tpu.memory_space<vmem>>, vector<32x128xbf16>,
    %c0_4 = arith.constant 0 : index
    %c0_5 = arith.constant 0 : index
    %c0_6 = arith.constant 0 : index
    %4 = vector.load %arg1[%c0_4, %c0_5, %c0_6] : memref<1x224x32xbf16, #tpu.memory_space<vmem>>, vector<1x176x32xbf16>
    %5 = vector.shape_cast %4 : vector<1x176x32xbf16> to vector<176x32xbf16>
    %c0_7 = arith.constant 0 : index
    %c1 = arith.constant 1 : index
    %c0_8 = arith.constant 0 : index
    %6 = vector.load %arg1[%c0_7, %c1, %c0_8] : memref<1x224x32xbf16, #tpu.memory_space<vmem>>, vector<1x176x32xbf16>
    %7 = vector.shape_cast %6 : vector<1x176x32xbf16> to vector<176x32xbf16>
    %c0_9 = arith.constant 0 : index
    %c2 = arith.constant 2 : index
    %c0_10 = arith.constant 0 : index
    %8 = vector.load %arg1[%c0_9, %c2, %c0_10] : memref<1x224x32xbf16, #tpu.memory_space<vmem>>, vector<1x176x32xbf16>
    %9 = vector.shape_cast %8 : vector<1x176x32xbf16> to vector<176x32xbf16>
    %10 = tpu.concatenate %5, %7, %9 in 1 : vector<176x32xbf16>, vector<176x32xbf16>, vector<176x32xbf16> -> vector<176x96xbf16>
    %c0_11 = arith.constant 0 : index
    %c0_12 = arith.constant 0 : index
    %c0_13 = arith.constant 0 : index
    %11 = vector.load %arg2[%c0_11, %c0_12, %c0_13] : memref<3x96x64xbf16, #tpu.memory_space<vmem>>, vector<1x96x64xbf16>
    %12 = vector.shape_cast %11 : vector<1x96x64xbf16> to vector<96x64xbf16>
    %cst_14 = arith.constant dense<0.000000e+00> : vector<176x64xf32>
    %13 = tpu.matmul %10, %12, %cst_14 {dimension_numbers = #tpu.dot_dimension_numbers<[1], [0], [0], [1], [0, 0, 1, 1], [], []>} : vector<176x96xbf16>, vector<96x64xbf16>, vector<176x64xf32> -> vector<176x64xf32>
    %c0_15 = arith.constant 0 : index
    %c22 = arith.constant 22 : index
    %c0_16 = arith.constant 0 : index
    %14 = vector.load %arg1[%c0_15, %c22, %c0_16] : memref<1x224x32xbf16, #tpu.memory_space<vmem>>, vector<1x176x32xbf16>
    %15 = vector.shape_cast %14 : vector<1x176x32xbf16> to vector<176x32xbf16>
    %c0_17 = arith.constant 0 : index
    %c23 = arith.constant 23 : index
    %c0_18 = arith.constant 0 : index
    %16 = vector.load %arg1[%c0_17, %c23, %c0_18] : memref<1x224x32xbf16, #tpu.memory_space<vmem>>, vector<1x176x32xbf16>
    %17 = vector.shape_cast %16 : vector<1x176x32xbf16> to vector<176x32xbf16>
    %c0_19 = arith.constant 0 : index
    %c24 = arith.constant 24 : index
    %c0_20 = arith.constant 0 : index
    %18 = vector.load %arg1[%c0_19, %c24, %c0_20] : memref<1x224x32xbf16, #tpu.memory_space<vmem>>, vector<1x176x32xbf16>
    %19 = vector.shape_cast %18 : vector<1x176x32xbf16> to vector<176x32xbf16>
    %20 = tpu.concatenate %15, %17, %19 in 1 : vector<176x32xbf16>, vector<176x32xbf16>, vector<176x32xbf16> -> vector<176x96xbf16>
    %c1_21 = arith.constant 1 : index
    %c0_22 = arith.constant 0 : index
    %c0_23 = arith.constant 0 : index
    %21 = vector.load %arg2[%c1_21, %c0_22, %c0_23] : memref<3x96x64xbf16, #tpu.memory_space<vmem>>, vector<1x96x64xbf16>
    %22 = vector.shape_cast %21 : vector<1x96x64xbf16> to vector<96x64xbf16>
    %cst_24 = arith.constant dense<0.000000e+00> : vector<176x64xf32>
    %23 = tpu.matmul %20, %22, %cst_24 {dimension_numbers = #tpu.dot_dimension_numbers<[1], [0], [0], [1], [0, 0, 1, 1], [], []>} : vector<176x96xbf16>, vector<96x64xbf16>, vector<176x64xf32> -> vector<176x64xf32>
    %24 = arith.addf %13, %23 : vector<176x64xf32>
    %c0_25 = arith.constant 0 : index
    %c44 = arith.constant 44 : index
    %c0_26 = arith.constant 0 : index
    %25 = vector.load %arg1[%c0_25, %c44, %c0_26] : memref<1x224x32xbf16, #tpu.memory_space<vmem>>, vector<1x176x32xbf16>
    %26 = vector.shape_cast %25 : vector<1x176x32xbf16> to vector<176x32xbf16>
    %c0_27 = arith.constant 0 : index
    %c45 = arith.constant 45 : index
    %c0_28 = arith.constant 0 : index
    %27 = vector.load %arg1[%c0_27, %c45, %c0_28] : memref<1x224x32xbf16, #tpu.memory_space<vmem>>, vector<1x176x32xbf16>
    %28 = vector.shape_cast %27 : vector<1x176x32xbf16> to vector<176x32xbf16>
    %c0_29 = arith.constant 0 : index
    %c46 = arith.constant 46 : index
    %c0_30 = arith.constant 0 : index
    %29 = vector.load %arg1[%c0_29, %c46, %c0_30] : memref<1x224x32xbf16, #tpu.memory_space<vmem>>, vector<1x176x32xbf16>
    %30 = vector.shape_cast %29 : vector<1x176x32xbf16> to vector<176x32xbf16>
    %31 = tpu.concatenate %26, %28, %30 in 1 : vector<176x32xbf16>, vector<176x32xbf16>, vector<176x32xbf16> -> vector<176x96xbf16>
    %c2_31 = arith.constant 2 : index
    %c0_32 = arith.constant 0 : index
    %c0_33 = arith.constant 0 : index
    %32 = vector.load %arg2[%c2_31, %c0_32, %c0_33] : memref<3x96x64xbf16, #tpu.memory_space<vmem>>, vector<1x96x64xbf16>
    %33 = vector.shape_cast %32 : vector<1x96x64xbf16> to vector<96x64xbf16>
    %cst_34 = arith.constant dense<0.000000e+00> : vector<176x64xf32>
    %34 = tpu.matmul %31, %33, %cst_34 {dimension_numbers = #tpu.dot_dimension_numbers<[1], [0], [0], [1], [0, 0, 1, 1], [], []>} : vector<176x96xbf16>, vector<96x64xbf16>, vector<176x64xf32> -> vector<176x64xf32>
    %35 = arith.addf %24, %34 : vector<176x64xf32>
    %c0_35 = arith.constant 0 : index
    %c0_36 = arith.constant 0 : index
    %36 = vector.load %arg3[%c0_35, %c0_36] : memref<1x64xf32, #tpu.memory_space<vmem>>, vector<1x64xf32>
    %37 = vector.broadcast %36 : vector<1x64xf32> to vector<176x64xf32>
    %38 = arith.addf %35, %37 : vector<176x64xf32>
    %cst_37 = arith.constant 0.000000e+00 : f32
    %39 = vector.broadcast %cst_37 : f32 to vector<176x64xf32>
    %40 = arith.maximumf %38, %39 : vector<176x64xf32>
    %c0_38 = arith.constant 0 : index
    %c0_39 = arith.constant 0 : index
    %41 = vector.load %arg11[%c0_38, %c0_39] : memref<176x64xf32, #tpu.memory_space<vmem>>, vector<176x64xf32>
    tpu.vector_store %arg11[%c0_38, %c0_39], %40 {strides = array<i32>} : memref<176x64xf32, #tpu.memory_space<vmem>>, vector<176x64xf32>,
    %c0_40 = arith.constant 0 : index
    %c0_41 = arith.constant 0 : index
    %42 = tpu.strided_load %arg11[%c0_40, %c0_41] {strides = array<i32: 2, 1>} : memref<176x64xf32, #tpu.memory_space<vmem>>, vector<10x64xf32>
    %c1_42 = arith.constant 1 : index
    %c0_43 = arith.constant 0 : index
    %43 = tpu.strided_load %arg11[%c1_42, %c0_43] {strides = array<i32: 2, 1>} : memref<176x64xf32, #tpu.memory_space<vmem>>, vector<10x64xf32>
    %c22_44 = arith.constant 22 : index
    %c0_45 = arith.constant 0 : index
    %44 = tpu.strided_load %arg11[%c22_44, %c0_45] {strides = array<i32: 2, 1>} : memref<176x64xf32, #tpu.memory_space<vmem>>, vector<10x64xf32>
    %c23_46 = arith.constant 23 : index
    %c0_47 = arith.constant 0 : index
    %45 = tpu.strided_load %arg11[%c23_46, %c0_47] {strides = array<i32: 2, 1>} : memref<176x64xf32, #tpu.memory_space<vmem>>, vector<10x64xf32>
    %46 = arith.maximumf %42, %43 : vector<10x64xf32>
    %47 = arith.maximumf %44, %45 : vector<10x64xf32>
    %48 = arith.maximumf %46, %47 : vector<10x64xf32>
    %49 = arith.truncf %48 : vector<10x64xf32> to vector<10x64xbf16>
    %c13 = arith.constant 13 : index
    %c0_48 = arith.constant 0 : index
    %50 = vector.load %arg12[%c13, %c0_48] : memref<80x64xbf16, #tpu.memory_space<vmem>>, vector<10x64xbf16>
    tpu.vector_store %arg12[%c13, %c0_48], %49 {strides = array<i32>} : memref<80x64xbf16, #tpu.memory_space<vmem>>, vector<10x64xbf16>,
    %c44_49 = arith.constant 44 : index
    %c0_50 = arith.constant 0 : index
    %51 = tpu.strided_load %arg11[%c44_49, %c0_50] {strides = array<i32: 2, 1>} : memref<176x64xf32, #tpu.memory_space<vmem>>, vector<10x64xf32>
    %c45_51 = arith.constant 45 : index
    %c0_52 = arith.constant 0 : index
    %52 = tpu.strided_load %arg11[%c45_51, %c0_52] {strides = array<i32: 2, 1>} : memref<176x64xf32, #tpu.memory_space<vmem>>, vector<10x64xf32>
    %c66 = arith.constant 66 : index
    %c0_53 = arith.constant 0 : index
    %53 = tpu.strided_load %arg11[%c66, %c0_53] {strides = array<i32: 2, 1>} : memref<176x64xf32, #tpu.memory_space<vmem>>, vector<10x64xf32>
    %c67 = arith.constant 67 : index
    %c0_54 = arith.constant 0 : index
    %54 = tpu.strided_load %arg11[%c67, %c0_54] {strides = array<i32: 2, 1>} : memref<176x64xf32, #tpu.memory_space<vmem>>, vector<10x64xf32>
    %55 = arith.maximumf %51, %52 : vector<10x64xf32>
    %56 = arith.maximumf %53, %54 : vector<10x64xf32>
    %57 = arith.maximumf %55, %56 : vector<10x64xf32>
    %58 = arith.truncf %57 : vector<10x64xf32> to vector<10x64xbf16>
    %c25 = arith.constant 25 : index
    %c0_55 = arith.constant 0 : index
    %59 = vector.load %arg12[%c25, %c0_55] : memref<80x64xbf16, #tpu.memory_space<vmem>>, vector<10x64xbf16>
    tpu.vector_store %arg12[%c25, %c0_55], %58 {strides = array<i32>} : memref<80x64xbf16, #tpu.memory_space<vmem>>, vector<10x64xbf16>,
    %c88 = arith.constant 88 : index
    %c0_56 = arith.constant 0 : index
    %60 = tpu.strided_load %arg11[%c88, %c0_56] {strides = array<i32: 2, 1>} : memref<176x64xf32, #tpu.memory_space<vmem>>, vector<10x64xf32>
    %c89 = arith.constant 89 : index
    %c0_57 = arith.constant 0 : index
    %61 = tpu.strided_load %arg11[%c89, %c0_57] {strides = array<i32: 2, 1>} : memref<176x64xf32, #tpu.memory_space<vmem>>, vector<10x64xf32>
    %c110 = arith.constant 110 : index
    %c0_58 = arith.constant 0 : index
    %62 = tpu.strided_load %arg11[%c110, %c0_58] {strides = array<i32: 2, 1>} : memref<176x64xf32, #tpu.memory_space<vmem>>, vector<10x64xf32>
    %c111 = arith.constant 111 : index
    %c0_59 = arith.constant 0 : index
    %63 = tpu.strided_load %arg11[%c111, %c0_59] {strides = array<i32: 2, 1>} : memref<176x64xf32, #tpu.memory_space<vmem>>, vector<10x64xf32>
    %64 = arith.maximumf %60, %61 : vector<10x64xf32>
    %65 = arith.maximumf %62, %63 : vector<10x64xf32>
    %66 = arith.maximumf %64, %65 : vector<10x64xf32>
    %67 = arith.truncf %66 : vector<10x64xf32> to vector<10x64xbf16>
    %c37 = arith.constant 37 : index
    %c0_60 = arith.constant 0 : index
    %68 = vector.load %arg12[%c37, %c0_60] : memref<80x64xbf16, #tpu.memory_space<vmem>>, vector<10x64xbf16>
    tpu.vector_store %arg12[%c37, %c0_60], %67 {strides = array<i32>} : memref<80x64xbf16, #tpu.memory_space<vmem>>, vector<10x64xbf16>,
    %c132 = arith.constant 132 : index
    %c0_61 = arith.constant 0 : index
    %69 = tpu.strided_load %arg11[%c132, %c0_61] {strides = array<i32: 2, 1>} : memref<176x64xf32, #tpu.memory_space<vmem>>, vector<10x64xf32>
    %c133 = arith.constant 133 : index
    %c0_62 = arith.constant 0 : index
    %70 = tpu.strided_load %arg11[%c133, %c0_62] {strides = array<i32: 2, 1>} : memref<176x64xf32, #tpu.memory_space<vmem>>, vector<10x64xf32>
    %c154 = arith.constant 154 : index
    %c0_63 = arith.constant 0 : index
    %71 = tpu.strided_load %arg11[%c154, %c0_63] {strides = array<i32: 2, 1>} : memref<176x64xf32, #tpu.memory_space<vmem>>, vector<10x64xf32>
    %c155 = arith.constant 155 : index
    %c0_64 = arith.constant 0 : index
    %72 = tpu.strided_load %arg11[%c155, %c0_64] {strides = array<i32: 2, 1>} : memref<176x64xf32, #tpu.memory_space<vmem>>, vector<10x64xf32>
    %73 = arith.maximumf %69, %70 : vector<10x64xf32>
    %74 = arith.maximumf %71, %72 : vector<10x64xf32>
    %75 = arith.maximumf %73, %74 : vector<10x64xf32>
    %76 = arith.truncf %75 : vector<10x64xf32> to vector<10x64xbf16>
    %c49 = arith.constant 49 : index
    %c0_65 = arith.constant 0 : index
    %77 = vector.load %arg12[%c49, %c0_65] : memref<80x64xbf16, #tpu.memory_space<vmem>>, vector<10x64xbf16>
    tpu.vector_store %arg12[%c49, %c0_65], %76 {strides = array<i32>} : memref<80x64xbf16, #tpu.memory_space<vmem>>, vector<10x64xbf16>,
    %c0_66 = arith.constant 0 : index
    %c0_67 = arith.constant 0 : index
    %78 = vector.load %arg12[%c0_66, %c0_67] : memref<80x64xbf16, #tpu.memory_space<vmem>>, vector<48x64xbf16>
    %c1_68 = arith.constant 1 : index
    %c0_69 = arith.constant 0 : index
    %79 = vector.load %arg12[%c1_68, %c0_69] : memref<80x64xbf16, #tpu.memory_space<vmem>>, vector<48x64xbf16>
    %c2_70 = arith.constant 2 : index
    %c0_71 = arith.constant 0 : index
    %80 = vector.load %arg12[%c2_70, %c0_71] : memref<80x64xbf16, #tpu.memory_space<vmem>>, vector<48x64xbf16>
    %81 = tpu.concatenate %78, %79, %80 in 1 : vector<48x64xbf16>, vector<48x64xbf16>, vector<48x64xbf16> -> vector<48x192xbf16>
    %c0_72 = arith.constant 0 : index
    %c0_73 = arith.constant 0 : index
    %c0_74 = arith.constant 0 : index
    %82 = vector.load %arg4[%c0_72, %c0_73, %c0_74] : memref<3x192x128xbf16, #tpu.memory_space<vmem>>, vector<1x192x128xbf16>
    %83 = vector.shape_cast %82 : vector<1x192x128xbf16> to vector<192x128xbf16>
    %cst_75 = arith.constant dense<0.000000e+00> : vector<48x128xf32>
    %84 = tpu.matmul %81, %83, %cst_75 {dimension_numbers = #tpu.dot_dimension_numbers<[1], [0], [0], [1], [0, 0, 1, 1], [], []>} : vector<48x192xbf16>, vector<192x128xbf16>, vector<48x128xf32> -> vector<48x128xf32>
    %c12 = arith.constant 12 : index
    %c0_76 = arith.constant 0 : index
    %85 = vector.load %arg12[%c12, %c0_76] : memref<80x64xbf16, #tpu.memory_space<vmem>>, vector<48x64xbf16>
    %c13_77 = arith.constant 13 : index
    %c0_78 = arith.constant 0 : index
    %86 = vector.load %arg12[%c13_77, %c0_78] : memref<80x64xbf16, #tpu.memory_space<vmem>>, vector<48x64xbf16>
    %c14 = arith.constant 14 : index
    %c0_79 = arith.constant 0 : index
    %87 = vector.load %arg12[%c14, %c0_79] : memref<80x64xbf16, #tpu.memory_space<vmem>>, vector<48x64xbf16>
    %88 = tpu.concatenate %85, %86, %87 in 1 : vector<48x64xbf16>, vector<48x64xbf16>, vector<48x64xbf16> -> vector<48x192xbf16>
    %c1_80 = arith.constant 1 : index
    %c0_81 = arith.constant 0 : index
    %c0_82 = arith.constant 0 : index
    %89 = vector.load %arg4[%c1_80, %c0_81, %c0_82] : memref<3x192x128xbf16, #tpu.memory_space<vmem>>, vector<1x192x128xbf16>
    %90 = vector.shape_cast %89 : vector<1x192x128xbf16> to vector<192x128xbf16>
    %cst_83 = arith.constant dense<0.000000e+00> : vector<48x128xf32>
    %91 = tpu.matmul %88, %90, %cst_83 {dimension_numbers = #tpu.dot_dimension_numbers<[1], [0], [0], [1], [0, 0, 1, 1], [], []>} : vector<48x192xbf16>, vector<192x128xbf16>, vector<48x128xf32> -> vector<48x128xf32>
    %92 = arith.addf %84, %91 : vector<48x128xf32>
    %c24_84 = arith.constant 24 : index
    %c0_85 = arith.constant 0 : index
    %93 = vector.load %arg12[%c24_84, %c0_85] : memref<80x64xbf16, #tpu.memory_space<vmem>>, vector<48x64xbf16>
    %c25_86 = arith.constant 25 : index
    %c0_87 = arith.constant 0 : index
    %94 = vector.load %arg12[%c25_86, %c0_87] : memref<80x64xbf16, #tpu.memory_space<vmem>>, vector<48x64xbf16>
    %c26 = arith.constant 26 : index
    %c0_88 = arith.constant 0 : index
    %95 = vector.load %arg12[%c26, %c0_88] : memref<80x64xbf16, #tpu.memory_space<vmem>>, vector<48x64xbf16>
    %96 = tpu.concatenate %93, %94, %95 in 1 : vector<48x64xbf16>, vector<48x64xbf16>, vector<48x64xbf16> -> vector<48x192xbf16>
    %c2_89 = arith.constant 2 : index
    %c0_90 = arith.constant 0 : index
    %c0_91 = arith.constant 0 : index
    %97 = vector.load %arg4[%c2_89, %c0_90, %c0_91] : memref<3x192x128xbf16, #tpu.memory_space<vmem>>, vector<1x192x128xbf16>
    %98 = vector.shape_cast %97 : vector<1x192x128xbf16> to vector<192x128xbf16>
    %cst_92 = arith.constant dense<0.000000e+00> : vector<48x128xf32>
    %99 = tpu.matmul %96, %98, %cst_92 {dimension_numbers = #tpu.dot_dimension_numbers<[1], [0], [0], [1], [0, 0, 1, 1], [], []>} : vector<48x192xbf16>, vector<192x128xbf16>, vector<48x128xf32> -> vector<48x128xf32>
    %100 = arith.addf %92, %99 : vector<48x128xf32>
    %c0_93 = arith.constant 0 : index
    %c0_94 = arith.constant 0 : index
    %101 = vector.load %arg5[%c0_93, %c0_94] : memref<1x128xf32, #tpu.memory_space<vmem>>, vector<1x128xf32>
    %102 = vector.broadcast %101 : vector<1x128xf32> to vector<48x128xf32>
    %103 = arith.addf %100, %102 : vector<48x128xf32>
    %cst_95 = arith.constant 0.000000e+00 : f32
    %104 = vector.broadcast %cst_95 : f32 to vector<48x128xf32>
    %105 = arith.maximumf %103, %104 : vector<48x128xf32>
    %c0_96 = arith.constant 0 : index
    %c0_97 = arith.constant 0 : index
    %106 = vector.load %arg13[%c0_96, %c0_97] : memref<48x128xf32, #tpu.memory_space<vmem>>, vector<48x128xf32>
    tpu.vector_store %arg13[%c0_96, %c0_97], %105 {strides = array<i32>} : memref<48x128xf32, #tpu.memory_space<vmem>>, vector<48x128xf32>,
    %c0_98 = arith.constant 0 : index
    %c0_99 = arith.constant 0 : index
    %107 = tpu.strided_load %arg13[%c0_98, %c0_99] {strides = array<i32: 2, 1>} : memref<48x128xf32, #tpu.memory_space<vmem>>, vector<5x128xf32>
    %c1_100 = arith.constant 1 : index
    %c0_101 = arith.constant 0 : index
    %108 = tpu.strided_load %arg13[%c1_100, %c0_101] {strides = array<i32: 2, 1>} : memref<48x128xf32, #tpu.memory_space<vmem>>, vector<5x128xf32>
    %c12_102 = arith.constant 12 : index
    %c0_103 = arith.constant 0 : index
    %109 = tpu.strided_load %arg13[%c12_102, %c0_103] {strides = array<i32: 2, 1>} : memref<48x128xf32, #tpu.memory_space<vmem>>, vector<5x128xf32>
    %c13_104 = arith.constant 13 : index
    %c0_105 = arith.constant 0 : index
    %110 = tpu.strided_load %arg13[%c13_104, %c0_105] {strides = array<i32: 2, 1>} : memref<48x128xf32, #tpu.memory_space<vmem>>, vector<5x128xf32>
    %111 = arith.maximumf %107, %108 : vector<5x128xf32>
    %112 = arith.maximumf %109, %110 : vector<5x128xf32>
    %113 = arith.maximumf %111, %112 : vector<5x128xf32>
    %114 = arith.truncf %113 : vector<5x128xf32> to vector<5x128xbf16>
    %c8 = arith.constant 8 : index
    %c0_106 = arith.constant 0 : index
    %115 = vector.load %arg14[%c8, %c0_106] : memref<32x128xbf16, #tpu.memory_space<vmem>>, vector<5x128xbf16>
    tpu.vector_store %arg14[%c8, %c0_106], %114 {strides = array<i32>} : memref<32x128xbf16, #tpu.memory_space<vmem>>, vector<5x128xbf16>,
    %c24_107 = arith.constant 24 : index
    %c0_108 = arith.constant 0 : index
    %116 = tpu.strided_load %arg13[%c24_107, %c0_108] {strides = array<i32: 2, 1>} : memref<48x128xf32, #tpu.memory_space<vmem>>, vector<5x128xf32>
    %c25_109 = arith.constant 25 : index
    %c0_110 = arith.constant 0 : index
    %117 = tpu.strided_load %arg13[%c25_109, %c0_110] {strides = array<i32: 2, 1>} : memref<48x128xf32, #tpu.memory_space<vmem>>, vector<5x128xf32>
    %c36 = arith.constant 36 : index
    %c0_111 = arith.constant 0 : index
    %118 = tpu.strided_load %arg13[%c36, %c0_111] {strides = array<i32: 2, 1>} : memref<48x128xf32, #tpu.memory_space<vmem>>, vector<5x128xf32>
    %c37_112 = arith.constant 37 : index
    %c0_113 = arith.constant 0 : index
    %119 = tpu.strided_load %arg13[%c37_112, %c0_113] {strides = array<i32: 2, 1>} : memref<48x128xf32, #tpu.memory_space<vmem>>, vector<5x128xf32>
    %120 = arith.maximumf %116, %117 : vector<5x128xf32>
    %121 = arith.maximumf %118, %119 : vector<5x128xf32>
    %122 = arith.maximumf %120, %121 : vector<5x128xf32>
    %123 = arith.truncf %122 : vector<5x128xf32> to vector<5x128xbf16>
    %c15 = arith.constant 15 : index
    %c0_114 = arith.constant 0 : index
    %124 = vector.load %arg14[%c15, %c0_114] : memref<32x128xbf16, #tpu.memory_space<vmem>>, vector<5x128xbf16>
    tpu.vector_store %arg14[%c15, %c0_114], %123 {strides = array<i32>} : memref<32x128xbf16, #tpu.memory_space<vmem>>, vector<5x128xbf16>,
    %c0_115 = arith.constant 0 : index
    %c0_116 = arith.constant 0 : index
    %125 = vector.load %arg14[%c0_115, %c0_116] : memref<32x128xbf16, #tpu.memory_space<vmem>>, vector<14x128xbf16>
    %c1_117 = arith.constant 1 : index
    %c0_118 = arith.constant 0 : index
    %126 = vector.load %arg14[%c1_117, %c0_118] : memref<32x128xbf16, #tpu.memory_space<vmem>>, vector<14x128xbf16>
    %c2_119 = arith.constant 2 : index
    %c0_120 = arith.constant 0 : index
    %127 = vector.load %arg14[%c2_119, %c0_120] : memref<32x128xbf16, #tpu.memory_space<vmem>>, vector<14x128xbf16>
    %128 = tpu.concatenate %125, %126, %127 in 1 : vector<14x128xbf16>, vector<14x128xbf16>, vector<14x128xbf16> -> vector<14x384xbf16>
    %c0_121 = arith.constant 0 : index
    %c0_122 = arith.constant 0 : index
    %c0_123 = arith.constant 0 : index
    %129 = vector.load %arg6[%c0_121, %c0_122, %c0_123] : memref<3x384x256xbf16, #tpu.memory_space<vmem>>, vector<1x384x256xbf16>
    %130 = vector.shape_cast %129 : vector<1x384x256xbf16> to vector<384x256xbf16>
    %cst_124 = arith.constant dense<0.000000e+00> : vector<14x256xf32>
    %131 = tpu.matmul %128, %130, %cst_124 {dimension_numbers = #tpu.dot_dimension_numbers<[1], [0], [0], [1], [0, 0, 1, 1], [], []>} : vector<14x384xbf16>, vector<384x256xbf16>, vector<14x256xf32> -> vector<14x256xf32>
    %c7 = arith.constant 7 : index
    %c0_125 = arith.constant 0 : index
    %132 = vector.load %arg14[%c7, %c0_125] : memref<32x128xbf16, #tpu.memory_space<vmem>>, vector<14x128xbf16>
    %c8_126 = arith.constant 8 : index
    %c0_127 = arith.constant 0 : index
    %133 = vector.load %arg14[%c8_126, %c0_127] : memref<32x128xbf16, #tpu.memory_space<vmem>>, vector<14x128xbf16>
    %c9 = arith.constant 9 : index
    %c0_128 = arith.constant 0 : index
    %134 = vector.load %arg14[%c9, %c0_128] : memref<32x128xbf16, #tpu.memory_space<vmem>>, vector<14x128xbf16>
    %135 = tpu.concatenate %132, %133, %134 in 1 : vector<14x128xbf16>, vector<14x128xbf16>, vector<14x128xbf16> -> vector<14x384xbf16>
    %c1_129 = arith.constant 1 : index
    %c0_130 = arith.constant 0 : index
    %c0_131 = arith.constant 0 : index
    %136 = vector.load %arg6[%c1_129, %c0_130, %c0_131] : memref<3x384x256xbf16, #tpu.memory_space<vmem>>, vector<1x384x256xbf16>
    %137 = vector.shape_cast %136 : vector<1x384x256xbf16> to vector<384x256xbf16>
    %cst_132 = arith.constant dense<0.000000e+00> : vector<14x256xf32>
    %138 = tpu.matmul %135, %137, %cst_132 {dimension_numbers = #tpu.dot_dimension_numbers<[1], [0], [0], [1], [0, 0, 1, 1], [], []>} : vector<14x384xbf16>, vector<384x256xbf16>, vector<14x256xf32> -> vector<14x256xf32>
    %139 = arith.addf %131, %138 : vector<14x256xf32>
    %c14_133 = arith.constant 14 : index
    %c0_134 = arith.constant 0 : index
    %140 = vector.load %arg14[%c14_133, %c0_134] : memref<32x128xbf16, #tpu.memory_space<vmem>>, vector<14x128xbf16>
    %c15_135 = arith.constant 15 : index
    %c0_136 = arith.constant 0 : index
    %141 = vector.load %arg14[%c15_135, %c0_136] : memref<32x128xbf16, #tpu.memory_space<vmem>>, vector<14x128xbf16>
    %c16 = arith.constant 16 : index
    %c0_137 = arith.constant 0 : index
    %142 = vector.load %arg14[%c16, %c0_137] : memref<32x128xbf16, #tpu.memory_space<vmem>>, vector<14x128xbf16>
    %143 = tpu.concatenate %140, %141, %142 in 1 : vector<14x128xbf16>, vector<14x128xbf16>, vector<14x128xbf16> -> vector<14x384xbf16>
    %c2_138 = arith.constant 2 : index
    %c0_139 = arith.constant 0 : index
    %c0_140 = arith.constant 0 : index
    %144 = vector.load %arg6[%c2_138, %c0_139, %c0_140] : memref<3x384x256xbf16, #tpu.memory_space<vmem>>, vector<1x384x256xbf16>
    %145 = vector.shape_cast %144 : vector<1x384x256xbf16> to vector<384x256xbf16>
    %cst_141 = arith.constant dense<0.000000e+00> : vector<14x256xf32>
    %146 = tpu.matmul %143, %145, %cst_141 {dimension_numbers = #tpu.dot_dimension_numbers<[1], [0], [0], [1], [0, 0, 1, 1], [], []>} : vector<14x384xbf16>, vector<384x256xbf16>, vector<14x256xf32> -> vector<14x256xf32>
    %147 = arith.addf %139, %146 : vector<14x256xf32>
    %c0_142 = arith.constant 0 : index
    %c0_143 = arith.constant 0 : index
    %148 = vector.load %arg7[%c0_142, %c0_143] : memref<1x256xf32, #tpu.memory_space<vmem>>, vector<1x256xf32>
    %149 = vector.broadcast %148 : vector<1x256xf32> to vector<14x256xf32>
    %150 = arith.addf %147, %149 : vector<14x256xf32>
    %cst_144 = arith.constant 0.000000e+00 : f32
    %151 = vector.broadcast %cst_144 : f32 to vector<14x256xf32>
    %152 = arith.maximumf %150, %151 : vector<14x256xf32>
    %153 = vector.extract_strided_slice %152 {offsets = [0, 0], sizes = [1, 256], strides = [1, 1]} : vector<14x256xf32> to vector<1x256xf32>
    %154 = arith.truncf %153 : vector<1x256xf32> to vector<1x256xbf16>
    %c0_145 = arith.constant 0 : index
    %c0_146 = arith.constant 0 : index
    %155 = vector.load %arg15[%c0_145, %c0_146] : memref<1x2560xbf16, #tpu.memory_space<vmem>>, vector<1x256xbf16>
    tpu.vector_store %arg15[%c0_145, %c0_146], %154 {strides = array<i32>} : memref<1x2560xbf16, #tpu.memory_space<vmem>>, vector<1x256xbf16>,
    %156 = vector.extract_strided_slice %152 {offsets = [1, 0], sizes = [1, 256], strides = [1, 1]} : vector<14x256xf32> to vector<1x256xf32>
    %157 = arith.truncf %156 : vector<1x256xf32> to vector<1x256xbf16>
    %c0_147 = arith.constant 0 : index
    %c256 = arith.constant 256 : index
    %158 = vector.load %arg15[%c0_147, %c256] : memref<1x2560xbf16, #tpu.memory_space<vmem>>, vector<1x256xbf16>
    tpu.vector_store %arg15[%c0_147, %c256], %157 {strides = array<i32>} : memref<1x2560xbf16, #tpu.memory_space<vmem>>, vector<1x256xbf16>,
    %159 = vector.extract_strided_slice %152 {offsets = [2, 0], sizes = [1, 256], strides = [1, 1]} : vector<14x256xf32> to vector<1x256xf32>
    %160 = arith.truncf %159 : vector<1x256xf32> to vector<1x256xbf16>
    %c0_148 = arith.constant 0 : index
    %c512 = arith.constant 512 : index
    %161 = vector.load %arg15[%c0_148, %c512] : memref<1x2560xbf16, #tpu.memory_space<vmem>>, vector<1x256xbf16>
    tpu.vector_store %arg15[%c0_148, %c512], %160 {strides = array<i32>} : memref<1x2560xbf16, #tpu.memory_space<vmem>>, vector<1x256xbf16>,
    %162 = vector.extract_strided_slice %152 {offsets = [3, 0], sizes = [1, 256], strides = [1, 1]} : vector<14x256xf32> to vector<1x256xf32>
    %163 = arith.truncf %162 : vector<1x256xf32> to vector<1x256xbf16>
    %c0_149 = arith.constant 0 : index
    %c768 = arith.constant 768 : index
    %164 = vector.load %arg15[%c0_149, %c768] : memref<1x2560xbf16, #tpu.memory_space<vmem>>, vector<1x256xbf16>
    tpu.vector_store %arg15[%c0_149, %c768], %163 {strides = array<i32>} : memref<1x2560xbf16, #tpu.memory_space<vmem>>, vector<1x256xbf16>,
    %165 = vector.extract_strided_slice %152 {offsets = [4, 0], sizes = [1, 256], strides = [1, 1]} : vector<14x256xf32> to vector<1x256xf32>
    %166 = arith.truncf %165 : vector<1x256xf32> to vector<1x256xbf16>
    %c0_150 = arith.constant 0 : index
    %c1024 = arith.constant 1024 : index
    %167 = vector.load %arg15[%c0_150, %c1024] : memref<1x2560xbf16, #tpu.memory_space<vmem>>, vector<1x256xbf16>
    tpu.vector_store %arg15[%c0_150, %c1024], %166 {strides = array<i32>} : memref<1x2560xbf16, #tpu.memory_space<vmem>>, vector<1x256xbf16>,
    %168 = vector.extract_strided_slice %152 {offsets = [7, 0], sizes = [1, 256], strides = [1, 1]} : vector<14x256xf32> to vector<1x256xf32>
    %169 = arith.truncf %168 : vector<1x256xf32> to vector<1x256xbf16>
    %c0_151 = arith.constant 0 : index
    %c1280 = arith.constant 1280 : index
    %170 = vector.load %arg15[%c0_151, %c1280] : memref<1x2560xbf16, #tpu.memory_space<vmem>>, vector<1x256xbf16>
    tpu.vector_store %arg15[%c0_151, %c1280], %169 {strides = array<i32>} : memref<1x2560xbf16, #tpu.memory_space<vmem>>, vector<1x256xbf16>,
    %171 = vector.extract_strided_slice %152 {offsets = [8, 0], sizes = [1, 256], strides = [1, 1]} : vector<14x256xf32> to vector<1x256xf32>
    %172 = arith.truncf %171 : vector<1x256xf32> to vector<1x256xbf16>
    %c0_152 = arith.constant 0 : index
    %c1536 = arith.constant 1536 : index
    %173 = vector.load %arg15[%c0_152, %c1536] : memref<1x2560xbf16, #tpu.memory_space<vmem>>, vector<1x256xbf16>
    tpu.vector_store %arg15[%c0_152, %c1536], %172 {strides = array<i32>} : memref<1x2560xbf16, #tpu.memory_space<vmem>>, vector<1x256xbf16>,
    %174 = vector.extract_strided_slice %152 {offsets = [9, 0], sizes = [1, 256], strides = [1, 1]} : vector<14x256xf32> to vector<1x256xf32>
    %175 = arith.truncf %174 : vector<1x256xf32> to vector<1x256xbf16>
    %c0_153 = arith.constant 0 : index
    %c1792 = arith.constant 1792 : index
    %176 = vector.load %arg15[%c0_153, %c1792] : memref<1x2560xbf16, #tpu.memory_space<vmem>>, vector<1x256xbf16>
    tpu.vector_store %arg15[%c0_153, %c1792], %175 {strides = array<i32>} : memref<1x2560xbf16, #tpu.memory_space<vmem>>, vector<1x256xbf16>,
    %177 = vector.extract_strided_slice %152 {offsets = [10, 0], sizes = [1, 256], strides = [1, 1]} : vector<14x256xf32> to vector<1x256xf32>
    %178 = arith.truncf %177 : vector<1x256xf32> to vector<1x256xbf16>
    %c0_154 = arith.constant 0 : index
    %c2048 = arith.constant 2048 : index
    %179 = vector.load %arg15[%c0_154, %c2048] : memref<1x2560xbf16, #tpu.memory_space<vmem>>, vector<1x256xbf16>
    tpu.vector_store %arg15[%c0_154, %c2048], %178 {strides = array<i32>} : memref<1x2560xbf16, #tpu.memory_space<vmem>>, vector<1x256xbf16>,
    %180 = vector.extract_strided_slice %152 {offsets = [11, 0], sizes = [1, 256], strides = [1, 1]} : vector<14x256xf32> to vector<1x256xf32>
    %181 = arith.truncf %180 : vector<1x256xf32> to vector<1x256xbf16>
    %c0_155 = arith.constant 0 : index
    %c2304 = arith.constant 2304 : index
    %182 = vector.load %arg15[%c0_155, %c2304] : memref<1x2560xbf16, #tpu.memory_space<vmem>>, vector<1x256xbf16>
    tpu.vector_store %arg15[%c0_155, %c2304], %181 {strides = array<i32>} : memref<1x2560xbf16, #tpu.memory_space<vmem>>, vector<1x256xbf16>,
    %c0_156 = arith.constant 0 : index
    %c0_157 = arith.constant 0 : index
    %183 = vector.load %arg15[%c0_156, %c0_157] : memref<1x2560xbf16, #tpu.memory_space<vmem>>, vector<1x2560xbf16>
    %c0_158 = arith.constant 0 : index
    %c0_159 = arith.constant 0 : index
    %184 = vector.load %arg8[%c0_158, %c0_159] : memref<2560x10xbf16, #tpu.memory_space<vmem>>, vector<2560x10xbf16>
    %cst_160 = arith.constant dense<0.000000e+00> : vector<1x10xf32>
    %185 = tpu.matmul %183, %184, %cst_160 {dimension_numbers = #tpu.dot_dimension_numbers<[1], [0], [0], [1], [0, 0, 1, 1], [], []>} : vector<1x2560xbf16>, vector<2560x10xbf16>, vector<1x10xf32> -> vector<1x10xf32>
    %c0_161 = arith.constant 0 : index
    %c0_162 = arith.constant 0 : index
    %186 = vector.load %arg9[%c0_161, %c0_162] : memref<1x10xf32, #tpu.memory_space<vmem>>, vector<1x10xf32>
    %187 = arith.addf %185, %186 : vector<1x10xf32>
    %cst_163 = arith.constant dense<0xFF800000> : vector<1xf32>
    %188 = vector.multi_reduction <maximumf>, %187, %cst_163 [1] : vector<1x10xf32> to vector<1xf32>
    %189 = vector.shape_cast %188 : vector<1xf32> to vector<1x1xf32>
    %190 = vector.broadcast %189 : vector<1x1xf32> to vector<1x10xf32>
    %191 = arith.subf %187, %190 : vector<1x10xf32>
    %192 = math.exp %191 : vector<1x10xf32>
    %cst_164 = arith.constant dense<0.000000e+00> : vector<1xf32>
    %193 = vector.multi_reduction <add>, %192, %cst_164 [1] : vector<1x10xf32> to vector<1xf32>
    %194 = vector.shape_cast %193 : vector<1xf32> to vector<1x1xf32>
    %195 = tpu.reciprocal %194 {approx = true} : vector<1x1xf32> -> vector<1x1xf32>
    %196 = vector.broadcast %195 : vector<1x1xf32> to vector<1x10xf32>
    %197 = arith.mulf %192, %196 : vector<1x10xf32>
    %c0_165 = arith.constant 0 : index
    %c0_166 = arith.constant 0 : index
    %c0_167 = arith.constant 0 : index
    %198 = vector.load %arg10[%c0_165, %c0_166, %c0_167] : memref<1x1x10xf32, #tpu.memory_space<vmem>>, vector<1x1x10xf32>
    %199 = vector.shape_cast %198 : vector<1x1x10xf32> to vector<1x10xf32>
    %200 = vector.shape_cast %197 : vector<1x10xf32> to vector<1x1x10xf32>
    tpu.vector_store %arg10[%c0_165, %c0_166, %c0_167], %200 {strides = array<i32>} : memref<1x1x10xf32, #tpu.memory_space<vmem>>, vector<1x1x10xf32>,
    return
  }
  func.func @transform_0(%arg0: i32) -> (i32, i32, i32) {
    %c0_i32 = arith.constant 0 : i32
    %c0_i32_0 = arith.constant 0 : i32
    %c0_i32_1 = arith.constant 0 : i32
    return %arg0, %c0_i32, %c0_i32_0 : i32, i32, i32
  }
  func.func @transform_1(%arg0: i32) -> (i32, i32, i32) {
    %c0_i32 = arith.constant 0 : i32
    %c0_i32_0 = arith.constant 0 : i32
    %c0_i32_1 = arith.constant 0 : i32
    %c0_i32_2 = arith.constant 0 : i32
    return %c0_i32, %c0_i32_0, %c0_i32_1 : i32, i32, i32
  }
  func.func @transform_2(%arg0: i32) -> (i32, i32) {
    %c0_i32 = arith.constant 0 : i32
    %c0_i32_0 = arith.constant 0 : i32
    %c0_i32_1 = arith.constant 0 : i32
    return %c0_i32, %c0_i32_0 : i32, i32
  }
  func.func @transform_3(%arg0: i32) -> (i32, i32, i32) {
    %c0_i32 = arith.constant 0 : i32
    %c0_i32_0 = arith.constant 0 : i32
    %c0_i32_1 = arith.constant 0 : i32
    %c0_i32_2 = arith.constant 0 : i32
    return %c0_i32, %c0_i32_0, %c0_i32_1 : i32, i32, i32
  }
  func.func @transform_4(%arg0: i32) -> (i32, i32) {
    %c0_i32 = arith.constant 0 : i32
    %c0_i32_0 = arith.constant 0 : i32
    %c0_i32_1 = arith.constant 0 : i32
    return %c0_i32, %c0_i32_0 : i32, i32
  }
  func.func @transform_5(%arg0: i32) -> (i32, i32, i32) {
    %c0_i32 = arith.constant 0 : i32
    %c0_i32_0 = arith.constant 0 : i32
    %c0_i32_1 = arith.constant 0 : i32
    %c0_i32_2 = arith.constant 0 : i32
    return %c0_i32, %c0_i32_0, %c0_i32_1 : i32, i32, i32
  }
  func.func @transform_6(%arg0: i32) -> (i32, i32) {
    %c0_i32 = arith.constant 0 : i32
    %c0_i32_0 = arith.constant 0 : i32
    %c0_i32_1 = arith.constant 0 : i32
    return %c0_i32, %c0_i32_0 : i32, i32
  }
  func.func @transform_7(%arg0: i32) -> (i32, i32) {
    %c0_i32 = arith.constant 0 : i32
    %c0_i32_0 = arith.constant 0 : i32
    %c0_i32_1 = arith.constant 0 : i32
    return %c0_i32, %c0_i32_0 : i32, i32
  }
  func.func @transform_8(%arg0: i32) -> (i32, i32) {
    %c0_i32 = arith.constant 0 : i32
    %c0_i32_0 = arith.constant 0 : i32
    %c0_i32_1 = arith.constant 0 : i32
    return %c0_i32, %c0_i32_0 : i32, i32
  }
  func.func @transform_9(%arg0: i32) -> (i32, i32, i32) {
    %c0_i32 = arith.constant 0 : i32
    %c0_i32_0 = arith.constant 0 : i32
    %c0_i32_1 = arith.constant 0 : i32
    return %arg0, %c0_i32, %c0_i32_0 : i32, i32, i32
  }
}

</mosaic_0001>

<llo_original>
// kernel: cnn2d_forward.1
$region0: #{cnn2d_forward.1}
  #allocation0 [shape = 'u32[]', space=smem, size = 0x4, offset = 0x4, fixed_abs, tag = 'smem constant byte address 0x4 - core index']
  #allocation1 [shape = 'u32[72,128]{1,0:T(1,128)}', space=vmem, size = 0x9000, scoped, tag = 'internal scratch']
  #allocation2 [shape = 'f32[176,64]{1,0:T(8,128)}', space=vmem, size = 0x16000, scoped, tag = 'scratch operand']
  #allocation3 [shape = 'bf16[80,64]{1,0:T(8,128)(2,1)}', space=vmem, size = 0x5000, scoped, tag = 'scratch operand']
  #allocation4 [shape = 'f32[48,128]{1,0:T(8,128)}', space=vmem, size = 0x6000, scoped, tag = 'scratch operand']
  #allocation5 [shape = 'bf16[32,128]{1,0:T(8,128)(2,1)}', space=vmem, size = 0x2000, scoped, tag = 'scratch operand']
  #allocation6 [shape = 'bf16[1,2560]{1,0:T(2,128)(2,1)}', space=vmem, size = 0x2800, scoped, tag = 'scratch operand']
  %s0 = inlined_call_operand.vmem [shape: bf16[2,224,32], index: 0, kind: input, shape index: {}]
  %s1 = inlined_call_operand.vmem [shape: bf16[3,96,64], index: 1, kind: input, shape index: {}]
  %s2 = inlined_call_operand.vmem [shape: f32[1,64], index: 2, kind: input, shape index: {}]
  %s3 = inlined_call_operand.vmem [shape: bf16[3,192,128], index: 3, kind: input, shape index: {}]
  %s4 = inlined_call_operand.vmem [shape: f32[1,128], index: 4, kind: input, shape index: {}]
  %s5 = inlined_call_operand.vmem [shape: bf16[3,384,256], index: 5, kind: input, shape index: {}]
  %s6 = inlined_call_operand.vmem [shape: f32[1,256], index: 6, kind: input, shape index: {}]
  %s7 = inlined_call_operand.vmem [shape: bf16[2560,10], index: 7, kind: input, shape index: {}]
  %s8 = inlined_call_operand.vmem [shape: f32[1,10], index: 8, kind: input, shape index: {}]
  %s9 = inlined_call_operand.hbm [shape: f32[2,1,10], index: 9, kind: output, shape index: {}]
  %s10 = sld [smem:[#allocation0]]
  $region69: #{cnn2d_forward.1} parent=0
    _
  %s12 = ssub.s32 1, %s10
  %s13 = scalar_select 0, %s12, %s10
  $region1: #{cnn2d_forward.1} parent=0
    #allocation7 [shape = 'u8[1024]{0}', space=vmem, size = 0x400, scoped, tag = 'output window, operand 0']
    #allocation8 [shape = 's32[2]{0}', space=sflag, size = 0x8, scoped, tag = 'scoped memory for cnn2d_forward.1']
    %14 = vsyncpa [#allocation8], 0
    %s15 = scalar_lea.sflag [#allocation8], 1
    %16 = vsyncpa %s15, 0
    loop: start=0, step=1, limit=4
    $region2: #{cnn2d_forward.1} parent=1 // loop_pre_header
      _
    $region3: #{cnn2d_forward.1} parent=1 // loop_header
      %s18 = sphi 0, %s22
      %p19 = scmp.ge.s32.totalorder %s18, 4
      %s28 = sphi 0, %s30
      %s31 = sphi 0, %s28
      %s32 = sphi 0, %s31
      %s48 = sphi 0, %s32
      %s52 = sphi 0, %s52
      %s54 = sphi 0, %s52
      %s55 = sphi 0, %s54
      %s69 = sphi 0, %s55
      %s73 = sphi 0, %s73
      %s75 = sphi 0, %s73
      %s76 = sphi 0, %s75
      %s90 = sphi 0, %s76
      %s94 = sphi 0, %s94
      %s96 = sphi 0, %s94
      %s97 = sphi 0, %s96
      %s111 = sphi 0, %s97
      %s115 = sphi 0, %s115
      %s117 = sphi 0, %s115
      %s118 = sphi 0, %s117
      %s132 = sphi 0, %s118
      %s136 = sphi 0, %s136
      %s138 = sphi 0, %s136
      %s139 = sphi 0, %s138
      %s153 = sphi 0, %s139
      %s157 = sphi 0, %s157
      %s159 = sphi 0, %s157
      %s160 = sphi 0, %s159
      %s174 = sphi 0, %s160
      %s178 = sphi 0, %s178
      %s180 = sphi 0, %s178
      %s181 = sphi 0, %s180
      %s195 = sphi 0, %s181
      %s199 = sphi 0, %s199
      %s201 = sphi 0, %s199
      %s202 = sphi 0, %s201
      %s216 = sphi 0, %s202
      %s222 = sphi 0, %s224
      %s225 = sphi 0, %s222
      %s226 = sphi 0, %s225
      %s242 = sphi 0, %s226
    $region4: #{cnn2d_forward.1} parent=1 // loop_header_branch
      %21 = sbr.rel (%p19) target = $region8
    $region5: #{cnn2d_forward.1} parent=1 // loop_body
      %s23 = ssub.s32 %s18, 1
      %s24 = ssub.s32 %s18, 2
      %s25 = sadd.s32 %s18, 1
      %s26 = ssub.s32 %s18, %s25
      %p27 = scmp.eq.s32.totalorder %s26, 0
      %s29 = sadd.s32 %s28, 1
      %s30 = scalar_select %p27, %s28, %s29
      %p33 = pneg %p27
      %p34 = scmp.eq.s32.totalorder %s18, 1
      %p35 = por %p33, %p34
      %p36 = scmp.ne.s32.totalorder %s28, %s31
      %p37 = scmp.eq.s32.totalorder %s18, 0
      %p38 = por %p36, %p37
      %p39 = scmp.ne.s32.totalorder %s28, %s31
      %p40 = scmp.eq.s32.totalorder %s23, 1
      %p41 = por %p39, %p40
      %p42 = scmp.ne.s32.totalorder %s31, %s32
      %p43 = scmp.eq.s32.totalorder %s23, 0
      %p44 = por %p42, %p43
      %p45 = scmp.ne.s32.totalorder %s31, %s32
      %p46 = scmp.eq.s32.totalorder %s24, 1
      %p47 = por %p45, %p46
      %p49 = scmp.ne.s32.totalorder %s32, %s48
      %p50 = scmp.eq.s32.totalorder %s24, 0
      %p51 = por %p49, %p50
      %s53 = sadd.s32 %s52, 1
      %p56 = scmp.eq.s32.totalorder %s18, 1
      %p57 = scmp.ne.s32.totalorder %s52, %s54
      %p58 = scmp.eq.s32.totalorder %s18, 0
      %p59 = por %p57, %p58
      %p60 = scmp.ne.s32.totalorder %s52, %s54
      %p61 = scmp.eq.s32.totalorder %s23, 1
      %p62 = por %p60, %p61
      %p63 = scmp.ne.s32.totalorder %s54, %s55
      %p64 = scmp.eq.s32.totalorder %s23, 0
      %p65 = por %p63, %p64
      %p66 = scmp.ne.s32.totalorder %s54, %s55
      %p67 = scmp.eq.s32.totalorder %s24, 1
      %p68 = por %p66, %p67
      %p70 = scmp.ne.s32.totalorder %s55, %s69
      %p71 = scmp.eq.s32.totalorder %s24, 0
      %p72 = por %p70, %p71
      %s74 = sadd.s32 %s73, 1
      %p77 = scmp.eq.s32.totalorder %s18, 1
      %p78 = scmp.ne.s32.totalorder %s73, %s75
      %p79 = scmp.eq.s32.totalorder %s18, 0
      %p80 = por %p78, %p79
      %p81 = scmp.ne.s32.totalorder %s73, %s75
      %p82 = scmp.eq.s32.totalorder %s23, 1
      %p83 = por %p81, %p82
      %p84 = scmp.ne.s32.totalorder %s75, %s76
      %p85 = scmp.eq.s32.totalorder %s23, 0
      %p86 = por %p84, %p85
      %p87 = scmp.ne.s32.totalorder %s75, %s76
      %p88 = scmp.eq.s32.totalorder %s24, 1
      %p89 = por %p87, %p88
      %p91 = scmp.ne.s32.totalorder %s76, %s90
      %p92 = scmp.eq.s32.totalorder %s24, 0
      %p93 = por %p91, %p92
      %s95 = sadd.s32 %s94, 1
      %p98 = scmp.eq.s32.totalorder %s18, 1
      %p99 = scmp.ne.s32.totalorder %s94, %s96
      %p100 = scmp.eq.s32.totalorder %s18, 0
      %p101 = por %p99, %p100
      %p102 = scmp.ne.s32.totalorder %s94, %s96
      %p103 = scmp.eq.s32.totalorder %s23, 1
      %p104 = por %p102, %p103
      %p105 = scmp.ne.s32.totalorder %s96, %s97
      %p106 = scmp.eq.s32.totalorder %s23, 0
      %p107 = por %p105, %p106
      %p108 = scmp.ne.s32.totalorder %s96, %s97
      %p109 = scmp.eq.s32.totalorder %s24, 1
      %p110 = por %p108, %p109
      %p112 = scmp.ne.s32.totalorder %s97, %s111
      %p113 = scmp.eq.s32.totalorder %s24, 0
      %p114 = por %p112, %p113
      %s116 = sadd.s32 %s115, 1
      %p119 = scmp.eq.s32.totalorder %s18, 1
      %p120 = scmp.ne.s32.totalorder %s115, %s117
      %p121 = scmp.eq.s32.totalorder %s18, 0
      %p122 = por %p120, %p121
      %p123 = scmp.ne.s32.totalorder %s115, %s117
      %p124 = scmp.eq.s32.totalorder %s23, 1
      %p125 = por %p123, %p124
      %p126 = scmp.ne.s32.totalorder %s117, %s118
      %p127 = scmp.eq.s32.totalorder %s23, 0
      %p128 = por %p126, %p127
      %p129 = scmp.ne.s32.totalorder %s117, %s118
      %p130 = scmp.eq.s32.totalorder %s24, 1
      %p131 = por %p129, %p130
      %p133 = scmp.ne.s32.totalorder %s118, %s132
      %p134 = scmp.eq.s32.totalorder %s24, 0
      %p135 = por %p133, %p134
      %s137 = sadd.s32 %s136, 1
      %p140 = scmp.eq.s32.totalorder %s18, 1
      %p141 = scmp.ne.s32.totalorder %s136, %s138
      %p142 = scmp.eq.s32.totalorder %s18, 0
      %p143 = por %p141, %p142
      %p144 = scmp.ne.s32.totalorder %s136, %s138
      %p145 = scmp.eq.s32.totalorder %s23, 1
      %p146 = por %p144, %p145
      %p147 = scmp.ne.s32.totalorder %s138, %s139
      %p148 = scmp.eq.s32.totalorder %s23, 0
      %p149 = por %p147, %p148
      %p150 = scmp.ne.s32.totalorder %s138, %s139
      %p151 = scmp.eq.s32.totalorder %s24, 1
      %p152 = por %p150, %p151
      %p154 = scmp.ne.s32.totalorder %s139, %s153
      %p155 = scmp.eq.s32.totalorder %s24, 0
      %p156 = por %p154, %p155
      %s158 = sadd.s32 %s157, 1
      %p161 = scmp.eq.s32.totalorder %s18, 1
      %p162 = scmp.ne.s32.totalorder %s157, %s159
      %p163 = scmp.eq.s32.totalorder %s18, 0
      %p164 = por %p162, %p163
      %p165 = scmp.ne.s32.totalorder %s157, %s159
      %p166 = scmp.eq.s32.totalorder %s23, 1
      %p167 = por %p165, %p166
      %p168 = scmp.ne.s32.totalorder %s159, %s160
      %p169 = scmp.eq.s32.totalorder %s23, 0
      %p170 = por %p168, %p169
      %p171 = scmp.ne.s32.totalorder %s159, %s160
      %p172 = scmp.eq.s32.totalorder %s24, 1
      %p173 = por %p171, %p172
      %p175 = scmp.ne.s32.totalorder %s160, %s174
      %p176 = scmp.eq.s32.totalorder %s24, 0
      %p177 = por %p175, %p176
      %s179 = sadd.s32 %s178, 1
      %p182 = scmp.eq.s32.totalorder %s18, 1
      %p183 = scmp.ne.s32.totalorder %s178, %s180
      %p184 = scmp.eq.s32.totalorder %s18, 0
      %p185 = por %p183, %p184
      %p186 = scmp.ne.s32.totalorder %s178, %s180
      %p187 = scmp.eq.s32.totalorder %s23, 1
      %p188 = por %p186, %p187
      %p189 = scmp.ne.s32.totalorder %s180, %s181
      %p190 = scmp.eq.s32.totalorder %s23, 0
      %p191 = por %p189, %p190
      %p192 = scmp.ne.s32.totalorder %s180, %s181
      %p193 = scmp.eq.s32.totalorder %s24, 1
      %p194 = por %p192, %p193
      %p196 = scmp.ne.s32.totalorder %s181, %s195
      %p197 = scmp.eq.s32.totalorder %s24, 0
      %p198 = por %p196, %p197
      %s200 = sadd.s32 %s199, 1
      %p203 = scmp.eq.s32.totalorder %s18, 1
      %p204 = scmp.ne.s32.totalorder %s199, %s201
      %p205 = scmp.eq.s32.totalorder %s18, 0
      %p206 = por %p204, %p205
      %p207 = scmp.ne.s32.totalorder %s199, %s201
      %p208 = scmp.eq.s32.totalorder %s23, 1
      %p209 = por %p207, %p208
      %p210 = scmp.ne.s32.totalorder %s201, %s202
      %p211 = scmp.eq.s32.totalorder %s23, 0
      %p212 = por %p210, %p211
      %p213 = scmp.ne.s32.totalorder %s201, %s202
      %p214 = scmp.eq.s32.totalorder %s24, 1
      %p215 = por %p213, %p214
      %p217 = scmp.ne.s32.totalorder %s202, %s216
      %p218 = scmp.eq.s32.totalorder %s24, 0
      %p219 = por %p217, %p218
      %s220 = ssub.s32 %s18, %s25
      %p221 = scmp.eq.s32.totalorder %s220, 0
      %s223 = sadd.s32 %s222, 1
      %s224 = scalar_select %p221, %s222, %s223
      %p227 = pneg %p221
      %p228 = scmp.eq.s32.totalorder %s18, 1
      %p229 = por %p227, %p228
      %p230 = scmp.ne.s32.totalorder %s222, %s225
      %p231 = scmp.eq.s32.totalorder %s18, 0
      %p232 = por %p230, %p231
      %p233 = scmp.ne.s32.totalorder %s222, %s225
      %p234 = scmp.eq.s32.totalorder %s23, 1
      %p235 = por %p233, %p234
      %p236 = scmp.ne.s32.totalorder %s225, %s226
      %p237 = scmp.eq.s32.totalorder %s23, 0
      %p238 = por %p236, %p237
      %p239 = scmp.ne.s32.totalorder %s225, %s226
      %p240 = scmp.eq.s32.totalorder %s24, 1
      %p241 = por %p239, %p240
      %p243 = scmp.ne.s32.totalorder %s226, %s242
      %p244 = scmp.eq.s32.totalorder %s24, 0
      %p245 = por %p243, %p244
      %p246 = scmp.le.s32.totalorder 1, %s18
      %p247 = scmp.lt.s32.totalorder %s18, 3
      %p248 = pnand %p246, %p247
      %p249 = pneg %p248
      // Predicated region
      $region9: #{cnn2d_forward.1} parent=5 // pred_check
        _
      $region10: #{cnn2d_forward.1} parent=5 // pred_check_branch
        %251 = sbr.rel (%p248) target = $region12
      $region11: #{cnn2d_forward.1} parent=5 // pred_region
        %s252 = ssub.s32 %s18, 1
        // Predicated region
        $region13: #{cnn2d_forward.1} parent=11 // pred_check
          %p253 = pneg %p65
        $region14: #{cnn2d_forward.1} parent=11 // pred_check_branch
          %255 = sbr.rel (%p253) target = $region16
        $region15: #{cnn2d_forward.1} parent=11 // pred_region
          _
        $region16: #{cnn2d_forward.1} parent=11 // pred_fallthru
          _
        // Predicated region
        $region17: #{cnn2d_forward.1} parent=11 // pred_check
          %p256 = pneg %p86
        $region18: #{cnn2d_forward.1} parent=11 // pred_check_branch
          %258 = sbr.rel (%p256) target = $region20
        $region19: #{cnn2d_forward.1} parent=11 // pred_region
          _
        $region20: #{cnn2d_forward.1} parent=11 // pred_fallthru
          _
        // Predicated region
        $region21: #{cnn2d_forward.1} parent=11 // pred_check
          %p259 = pneg %p107
        $region22: #{cnn2d_forward.1} parent=11 // pred_check_branch
          %261 = sbr.rel (%p259) target = $region24
        $region23: #{cnn2d_forward.1} parent=11 // pred_region
          _
        $region24: #{cnn2d_forward.1} parent=11 // pred_fallthru
          _
        // Predicated region
        $region25: #{cnn2d_forward.1} parent=11 // pred_check
          %p262 = pneg %p128
        $region26: #{cnn2d_forward.1} parent=11 // pred_check_branch
          %264 = sbr.rel (%p262) target = $region28
        $region27: #{cnn2d_forward.1} parent=11 // pred_region
          _
        $region28: #{cnn2d_forward.1} parent=11 // pred_fallthru
          _
        // Predicated region
        $region29: #{cnn2d_forward.1} parent=11 // pred_check
          %p265 = pneg %p149
        $region30: #{cnn2d_forward.1} parent=11 // pred_check_branch
          %267 = sbr.rel (%p265) target = $region32
        $region31: #{cnn2d_forward.1} parent=11 // pred_region
          _
        $region32: #{cnn2d_forward.1} parent=11 // pred_fallthru
          _
        // Predicated region
        $region33: #{cnn2d_forward.1} parent=11 // pred_check
          %p268 = pneg %p170
        $region34: #{cnn2d_forward.1} parent=11 // pred_check_branch
          %270 = sbr.rel (%p268) target = $region36
        $region35: #{cnn2d_forward.1} parent=11 // pred_region
          _
        $region36: #{cnn2d_forward.1} parent=11 // pred_fallthru
          _
        // Predicated region
        $region37: #{cnn2d_forward.1} parent=11 // pred_check
          %p271 = pneg %p191
        $region38: #{cnn2d_forward.1} parent=11 // pred_check_branch
          %273 = sbr.rel (%p271) target = $region40
        $region39: #{cnn2d_forward.1} parent=11 // pred_region
          _
        $region40: #{cnn2d_forward.1} parent=11 // pred_fallthru
          _
        // Predicated region
        $region41: #{cnn2d_forward.1} parent=11 // pred_check
          %p274 = pneg %p212
        $region42: #{cnn2d_forward.1} parent=11 // pred_check_branch
          %276 = sbr.rel (%p274) target = $region44
        $region43: #{cnn2d_forward.1} parent=11 // pred_region
          _
        $region44: #{cnn2d_forward.1} parent=11 // pred_fallthru
          _
      $region12: #{cnn2d_forward.1} parent=5 // pred_fallthru
        _
      %p277 = scmp.lt.s32.totalorder %s18, 2
      // Predicated region
      $region45: #{cnn2d_forward.1} parent=5 // pred_check
        %p278 = pneg %p277
      $region46: #{cnn2d_forward.1} parent=5 // pred_check_branch
        %280 = sbr.rel (%p278) target = $region48
      $region47: #{cnn2d_forward.1} parent=5 // pred_region
        // Predicated region
        $region49: #{cnn2d_forward.1} parent=47 // pred_check
          %p281 = pneg %p38
        $region50: #{cnn2d_forward.1} parent=47 // pred_check_branch
          %283 = sbr.rel (%p281) target = $region52
        $region51: #{cnn2d_forward.1} parent=47 // pred_region
          %p284 = scmp.lt.s32.totalorder %s18, 1
          %s285 = scalar_select %p284, %s18, 1
          %s286 = smul.addr %s285, 28
          %s287 = smul.addr %s286, 4
          %s288 = scalar_lea.vmem %s0, %s287
        $region52: #{cnn2d_forward.1} parent=47 // pred_fallthru
          _
      $region48: #{cnn2d_forward.1} parent=5 // pred_fallthru
        _
      %p289 = scmp.le.s32.totalorder 1, %s18
      %p290 = scmp.lt.s32.totalorder %s18, 3
      %p291 = pnand %p289, %p290
      %p292 = pneg %p291
      // Predicated region
      $region53: #{cnn2d_forward.1} parent=5 // pred_check
        _
      $region54: #{cnn2d_forward.1} parent=5 // pred_check_branch
        %294 = sbr.rel (%p291) target = $region56
      $region55: #{cnn2d_forward.1} parent=5 // pred_region
        %s295 = ssub.s32 %s18, 1
        %p296 = scmp.lt.s32.totalorder %s23, 1
        %s297 = scalar_select %p296, %s23, 1
        %s298 = smul.addr %s297, 28
        %s299 = smul.addr %s298, 4
        %s300 = scalar_lea.vmem %s0, %s299
        %p301 = pneg %p44
        %p302 = pneg %p41
        %p303 = pneg %p65
        %p304 = pneg %p62
        %p305 = pneg %p86
        %p306 = pneg %p83
        %p307 = pneg %p107
        %p308 = pneg %p104
        %p309 = pneg %p128
        %p310 = pneg %p125
        %p311 = pneg %p149
        %p312 = pneg %p146
        %p313 = pneg %p170
        %p314 = pneg %p167
        %p315 = pneg %p191
        %p316 = pneg %p188
        %p317 = pneg %p212
        %p318 = pneg %p209
        %p319 = pneg %p238
        %p320 = pneg %p235
        %s321 = sand.u32 %s225, 1
        %s322 = scalar_lea.sflag [#allocation8], %s321
        %s323 = sand.u32 %s225, 1
        %s324 = scalar_lea.vmem [#allocation7], %s323
        %p325 = scmp.lt.s32.totalorder %s23, 1
        %s326 = scalar_select %p325, %s23, 1
        %s327 = smul.addr %s326, 28
        %s328 = smul.addr %s327, 4
        %s329 = scalar_lea.vmem %s0, %s328
        %vm331 = vcmask 519168
        %332 = vst.msk [vmem:[#allocation3] sm:$0xf] %vm331, 0
        %333 = vst.msk [vmem:[#allocation3 + $0x4] sm:$0xf] %vm331, 0
        %334 = vst.msk [vmem:[#allocation3 + $0x8] sm:$0xf] %vm331, 0
        %335 = vst.msk [vmem:[#allocation3 + $0xc] sm:$0xf] %vm331, 0
        %336 = vst.msk [vmem:[#allocation3 + $0x10] sm:$0xf] %vm331, 0
        %337 = vst.msk [vmem:[#allocation3 + $0x14] sm:$0xf] %vm331, 0
        %338 = vst.msk [vmem:[#allocation3 + $0x18] sm:$0xf] %vm331, 0
        %339 = vst.msk [vmem:[#allocation3 + $0x1c] sm:$0xf] %vm331, 0
        %340 = vst.msk [vmem:[#allocation3 + $0x20] sm:$0xf] %vm331, 0
        %341 = vst.msk [vmem:[#allocation3 + $0x24] sm:$0xf] %vm331, 0
        %342 = vst [vmem:[#allocation5] sm:$0xf] 0
        %343 = vst [vmem:[#allocation5 + $0x4] sm:$0xf] 0
        %344 = vst [vmem:[#allocation5 + $0x8] sm:$0xf] 0
        %345 = vst [vmem:[#allocation5 + $0xc] sm:$0xf] 0
        %v346 = vld [vmem:[%s329] sm:$0xf]
        %v347 = vld [vmem:[%s329 + $0x4] sm:$0xf]
        %v348 = vld [vmem:[%s329 + $0x8] sm:$0xf]
        %v349 = vld [vmem:[%s329 + $0xc] sm:$0xf]
        %v350 = vld [vmem:[%s329 + $0x10] sm:$0xf]
        %v351 = vld [vmem:[%s329 + $0x14] sm:$0xf]
        %v352 = vld [vmem:[%s329 + $0x18] sm:$0xf]
        %v353 = vld [vmem:[%s329 + $0x1c] sm:$0xf]
        %v354 = vld [vmem:[%s329 + $0x20] sm:$0xf]
        %v355 = vld [vmem:[%s329 + $0x24] sm:$0xf]
        %v356 = vld [vmem:[%s329 + $0x28] sm:$0xf]
        %v357 = vld [vmem:[%s329 + $0x2c] sm:$0xf]
        %v358 = vld [vmem:[%s329 + $0x30] sm:$0xf]
        %v359 = vld [vmem:[%s329 + $0x34] sm:$0xf]
        %v360 = vld [vmem:[%s329 + $0x38] sm:$0xf]
        %v361 = vld [vmem:[%s329 + $0x3c] sm:$0xf]
        %v362 = vld [vmem:[%s329 + $0x40] sm:$0xf]
        %v363 = vld [vmem:[%s329 + $0x44] sm:$0xf]
        %v364 = vld [vmem:[%s329 + $0x48] sm:$0xf]
        %v365 = vld [vmem:[%s329 + $0x4c] sm:$0xf]
        %v366 = vld [vmem:[%s329 + $0x50] sm:$0xf]
        %v367 = vld [vmem:[%s329 + $0x54] sm:$0xf]
        %v368 = vld [vmem:[%s329 + $0x58] sm:$0x1]
        %v369 = vld [vmem:[%s329] sm:$0xe]
        %v392 = vunpack.c.l.b16 %v346
        %v393 = vunpack.c.l.b16 %v347
        %v394 = vunpack.c.l.b16 %v348
        %v395 = vunpack.c.l.b16 %v349
        %v396 = vunpack.c.l.b16 %v350
        %v397 = vunpack.c.l.b16 %v351
        %v398 = vunpack.c.l.b16 %v352
        %v399 = vunpack.c.l.b16 %v353
        %v400 = vunpack.c.l.b16 %v354
        %v401 = vunpack.c.l.b16 %v355
        %v402 = vunpack.c.l.b16 %v356
        %v403 = vunpack.c.l.b16 %v357
        %v404 = vunpack.c.l.b16 %v358
        %v405 = vunpack.c.l.b16 %v359
        %v406 = vunpack.c.l.b16 %v360
        %v407 = vunpack.c.l.b16 %v361
        %v408 = vunpack.c.l.b16 %v362
        %v409 = vunpack.c.l.b16 %v363
        %v410 = vunpack.c.l.b16 %v364
        %v411 = vunpack.c.l.b16 %v365
        %v412 = vunpack.c.l.b16 %v366
        %v413 = vunpack.c.l.b16 %v367
        %v414 = vpack.c.b16 %v393, %v392
        %v415 = vpack.c.b16 %v395, %v394
        %v416 = vpack.c.b16 %v397, %v396
        %v417 = vpack.c.b16 %v399, %v398
        %v418 = vpack.c.b16 %v401, %v400
        %v419 = vpack.c.b16 %v403, %v402
        %v420 = vpack.c.b16 %v405, %v404
        %v421 = vpack.c.b16 %v407, %v406
        %v422 = vpack.c.b16 %v409, %v408
        %v423 = vpack.c.b16 %v411, %v410
        %v424 = vpack.c.b16 %v413, %v412
        %v426 = vunpack.c.l.b16 %v368
        %v427 = vpack.c.b16 %v426, %v426
        %vm428 = vsmask.f32 7424
        %v430 = vshrl.u32 %v414, 16
        %v432 = vshll.u32 %v414, 16
        %v434 = vrot.slane %v432, 1
        %v435 = vor.u32 %v430, %v434
        %v437 = vshll.u32 %v415, 16
        %v439 = vrot.slane %v437, 1
        %v440 = vsel %vm428, %v435, %v439
        %v441 = vshrl.u32 %v415, 16
        %v443 = vor.u32 %v441, %v439
        %v445 = vshll.u32 %v416, 16
        %v447 = vrot.slane %v445, 1
        %v448 = vsel %vm428, %v443, %v447
        %v449 = vshrl.u32 %v416, 16
        %v451 = vor.u32 %v449, %v447
        %v453 = vshll.u32 %v417, 16
        %v455 = vrot.slane %v453, 1
        %v456 = vsel %vm428, %v451, %v455
        %v457 = vshrl.u32 %v417, 16
        %v459 = vor.u32 %v457, %v455
        %v461 = vshll.u32 %v418, 16
        %v463 = vrot.slane %v461, 1
        %v464 = vsel %vm428, %v459, %v463
        %v465 = vshrl.u32 %v418, 16
        %v467 = vor.u32 %v465, %v463
        %v469 = vshll.u32 %v419, 16
        %v471 = vrot.slane %v469, 1
        %v472 = vsel %vm428, %v467, %v471
        %v473 = vshrl.u32 %v419, 16
        %v475 = vor.u32 %v473, %v471
        %v477 = vshll.u32 %v420, 16
        %v479 = vrot.slane %v477, 1
        %v480 = vsel %vm428, %v475, %v479
        %v481 = vshrl.u32 %v420, 16
        %v483 = vor.u32 %v481, %v479
        %v485 = vshll.u32 %v421, 16
        %v487 = vrot.slane %v485, 1
        %v488 = vsel %vm428, %v483, %v487
        %v489 = vshrl.u32 %v421, 16
        %v491 = vor.u32 %v489, %v487
        %v493 = vshll.u32 %v422, 16
        %v495 = vrot.slane %v493, 1
        %v496 = vsel %vm428, %v491, %v495
        %v497 = vshrl.u32 %v422, 16
        %v499 = vor.u32 %v497, %v495
        %v501 = vshll.u32 %v423, 16
        %v503 = vrot.slane %v501, 1
        %v504 = vsel %vm428, %v499, %v503
        %v505 = vshrl.u32 %v423, 16
        %v507 = vor.u32 %v505, %v503
        %v509 = vshll.u32 %v424, 16
        %v511 = vrot.slane %v509, 1
        %v512 = vsel %vm428, %v507, %v511
        %v513 = vshrl.u32 %v424, 16
        %v515 = vor.u32 %v513, %v511
        %v517 = vshll.u32 %v427, 16
        %v519 = vrot.slane %v517, 1
        %v520 = vsel %vm428, %v515, %v519
        %521 = vrot.lane.b32.xlu0 %v440, 32
        %v522 = vpop.permute.xlu0 %521
        %523 = vrot.lane.b32.xlu0 %v448, 32
        %v524 = vpop.permute.xlu0 %523
        %525 = vrot.lane.b32.xlu0 %v456, 32
        %v526 = vpop.permute.xlu0 %525
        %527 = vrot.lane.b32.xlu0 %v464, 32
        %v528 = vpop.permute.xlu0 %527
        %529 = vrot.lane.b32.xlu0 %v472, 32
        %v530 = vpop.permute.xlu0 %529
        %531 = vrot.lane.b32.xlu0 %v480, 32
        %v532 = vpop.permute.xlu0 %531
        %533 = vrot.lane.b32.xlu0 %v488, 32
        %v534 = vpop.permute.xlu0 %533
        %535 = vrot.lane.b32.xlu0 %v496, 32
        %v536 = vpop.permute.xlu0 %535
        %537 = vrot.lane.b32.xlu0 %v504, 32
        %v538 = vpop.permute.xlu0 %537
        %539 = vrot.lane.b32.xlu0 %v512, 32
        %v540 = vpop.permute.xlu0 %539
        %541 = vrot.lane.b32.xlu0 %v520, 32
        %v542 = vpop.permute.xlu0 %541
        %v544 = vunpack.c.l.b16 %v369
        %v545 = vpack.c.b16 %v393, %v544
        %vm546 = vcmask 1046528
        %v547 = vrot.slane %v545, 1
        %v548 = vrot.slane %v415, 1
        %v549 = vsel %vm546, %v547, %v548
        %v550 = vrot.slane %v416, 1
        %v551 = vsel %vm546, %v548, %v550
        %v552 = vrot.slane %v417, 1
        %v553 = vsel %vm546, %v550, %v552
        %v554 = vrot.slane %v418, 1
        %v555 = vsel %vm546, %v552, %v554
        %v556 = vrot.slane %v419, 1
        %v557 = vsel %vm546, %v554, %v556
        %v558 = vrot.slane %v420, 1
        %v559 = vsel %vm546, %v556, %v558
        %v560 = vrot.slane %v421, 1
        %v561 = vsel %vm546, %v558, %v560
        %v562 = vrot.slane %v422, 1
        %v563 = vsel %vm546, %v560, %v562
        %v564 = vrot.slane %v423, 1
        %v565 = vsel %vm546, %v562, %v564
        %v566 = vrot.slane %v424, 1
        %v567 = vsel %vm546, %v564, %v566
        %v568 = vrot.slane %v427, 1
        %v569 = vsel %vm546, %v566, %v568
        %570 = vrot.lane.b32.xlu0 %v549, 64
        %v571 = vpop.permute.xlu0 %570
        %572 = vrot.lane.b32.xlu0 %v551, 64
        %v573 = vpop.permute.xlu0 %572
        %574 = vrot.lane.b32.xlu0 %v553, 64
        %v575 = vpop.permute.xlu0 %574
        %576 = vrot.lane.b32.xlu0 %v555, 64
        %v577 = vpop.permute.xlu0 %576
        %578 = vrot.lane.b32.xlu0 %v557, 64
        %v579 = vpop.permute.xlu0 %578
        %580 = vrot.lane.b32.xlu0 %v559, 64
        %v581 = vpop.permute.xlu0 %580
        %582 = vrot.lane.b32.xlu0 %v561, 64
        %v583 = vpop.permute.xlu0 %582
        %584 = vrot.lane.b32.xlu0 %v563, 64
        %v585 = vpop.permute.xlu0 %584
        %586 = vrot.lane.b32.xlu0 %v565, 64
        %v587 = vpop.permute.xlu0 %586
        %588 = vrot.lane.b32.xlu0 %v567, 64
        %v589 = vpop.permute.xlu0 %588
        %590 = vrot.lane.b32.xlu0 %v569, 64
        %v591 = vpop.permute.xlu0 %590
        %vm592 = vcmask 261120
        %v594 = vsel %vm592, %v414, %v522
        %v596 = vsel %vm592, %v415, %v524
        %v598 = vsel %vm592, %v416, %v526
        %v600 = vsel %vm592, %v417, %v528
        %v602 = vsel %vm592, %v418, %v530
        %v604 = vsel %vm592, %v419, %v532
        %v606 = vsel %vm592, %v420, %v534
        %v608 = vsel %vm592, %v421, %v536
        %v610 = vsel %vm592, %v422, %v538
        %v612 = vsel %vm592, %v423, %v540
        %v614 = vsel %vm592, %v424, %v542
        %vm615 = vcmask 523264
        %v617 = vsel %vm615, %v594, %v571
        %v619 = vsel %vm615, %v596, %v573
        %v621 = vsel %vm615, %v598, %v575
        %v623 = vsel %vm615, %v600, %v577
        %v625 = vsel %vm615, %v602, %v579
        %v627 = vsel %vm615, %v604, %v581
        %v629 = vsel %vm615, %v606, %v583
        %v631 = vsel %vm615, %v608, %v585
        %v633 = vsel %vm615, %v610, %v587
        %v635 = vsel %vm615, %v612, %v589
        %v637 = vsel %vm615, %v614, %v591
        %v638 = vld [vmem:[%s1] sm:$0xf]
        %v639 = vld [vmem:[%s1 + $0x4] sm:$0xf]
        %v640 = vld [vmem:[%s1 + $0x8] sm:$0xf]
        %v641 = vld [vmem:[%s1 + $0xc] sm:$0xf]
        %v642 = vld [vmem:[%s1 + $0x10] sm:$0xf]
        %v643 = vld [vmem:[%s1 + $0x14] sm:$0xf]
        %v644 = vld [vmem:[%s1 + $0x18] sm:$0xf]
        %v645 = vld [vmem:[%s1 + $0x1c] sm:$0xf]
        %v646 = vld [vmem:[%s1 + $0x20] sm:$0xf]
        %v647 = vld [vmem:[%s1 + $0x24] sm:$0xf]
        %v648 = vld [vmem:[%s1 + $0x28] sm:$0xf]
        %v649 = vld [vmem:[%s1 + $0x2c] sm:$0xf]
        %v650 = vld [vmem:[%s329 + $0x8] sm:$0x8]
        %v651 = vld [vmem:[%s329 + $0x58] sm:$0xf]
        %v652 = vld [vmem:[%s329 + $0x5c] sm:$0xf]
        %v653 = vld [vmem:[%s329 + $0x60] sm:$0x7]
        %v654 = vld [vmem:[%s329 + $0x60] sm:$0xf]
        %v659 = vunpack.c.l.b16 %v650
        %v660 = vunpack.c.l.b16 %v651
        %v661 = vunpack.c.l.b16 %v652
        %v662 = vunpack.c.l.b16 %v653
        %v663 = vpack.c.b16 %v395, %v659
        %v664 = vpack.c.b16 %v661, %v660
        %v665 = vpack.c.b16 %v662, %v662
        %v667 = vunpack.c.l.b16 %v654
        %v668 = vpack.c.b16 %v667, %v667
        %v670 = vshrl.u32 %v663, 16
        %v672 = vshll.u32 %v663, 16
        %v674 = vrot.slane %v672, 1
        %v675 = vor.u32 %v670, %v674
        %v676 = vsel %vm428, %v675, %v447
        %v678 = vshll.u32 %v664, 16
        %v680 = vrot.slane %v678, 1
        %v681 = vsel %vm428, %v515, %v680
        %v682 = vshrl.u32 %v664, 16
        %v684 = vor.u32 %v682, %v680
        %v686 = vshll.u32 %v668, 16
        %v688 = vrot.slane %v686, 1
        %v689 = vsel %vm428, %v684, %v688
        %v690 = vshrl.u32 %v668, 16
        %v692 = vor.u32 %v690, %v688
        %693 = vrot.lane.b32.xlu0 %v676, 32
        %v694 = vpop.permute.xlu0 %693
        %695 = vrot.lane.b32.xlu0 %v681, 32
        %v696 = vpop.permute.xlu0 %695
        %697 = vrot.lane.b32.xlu0 %v689, 32
        %v698 = vpop.permute.xlu0 %697
        %699 = vrot.lane.b32.xlu0 %v692, 32
        %v700 = vpop.permute.xlu0 %699
        %v701 = vpack.c.b16 %v396, %v395
        %v702 = vpack.c.b16 %v398, %v397
        %v703 = vpack.c.b16 %v400, %v399
        %v704 = vpack.c.b16 %v402, %v401
        %v705 = vpack.c.b16 %v404, %v403
        %v706 = vpack.c.b16 %v406, %v405
        %v707 = vpack.c.b16 %v408, %v407
        %v708 = vpack.c.b16 %v410, %v409
        %v709 = vpack.c.b16 %v412, %v411
        %v710 = vpack.c.b16 %v660, %v413
        %v711 = vpack.c.b16 %v667, %v661
        %vm712 = vcmask 1042432
        %v713 = vrot.slane %v701, 5
        %v714 = vrot.slane %v702, 5
        %v715 = vsel %vm712, %v713, %v714
        %v716 = vrot.slane %v703, 5
        %v717 = vsel %vm712, %v714, %v716
        %v718 = vrot.slane %v704, 5
        %v719 = vsel %vm712, %v716, %v718
        %v720 = vrot.slane %v705, 5
        %v721 = vsel %vm712, %v718, %v720
        %v722 = vrot.slane %v706, 5
        %v723 = vsel %vm712, %v720, %v722
        %v724 = vrot.slane %v707, 5
        %v725 = vsel %vm712, %v722, %v724
        %v726 = vrot.slane %v708, 5
        %v727 = vsel %vm712, %v724, %v726
        %v728 = vrot.slane %v709, 5
        %v729 = vsel %vm712, %v726, %v728
        %v730 = vrot.slane %v710, 5
        %v731 = vsel %vm712, %v728, %v730
        %v732 = vrot.slane %v711, 5
        %v733 = vsel %vm712, %v730, %v732
        %734 = vrot.lane.b32.xlu0 %v713, 64
        %v735 = vpop.permute.xlu0 %734
        %736 = vrot.lane.b32.xlu0 %v715, 64
        %v737 = vpop.permute.xlu0 %736
        %738 = vrot.lane.b32.xlu0 %v717, 64
        %v739 = vpop.permute.xlu0 %738
        %740 = vrot.lane.b32.xlu0 %v719, 64
        %v741 = vpop.permute.xlu0 %740
        %742 = vrot.lane.b32.xlu0 %v721, 64
        %v743 = vpop.permute.xlu0 %742
        %744 = vrot.lane.b32.xlu0 %v723, 64
        %v745 = vpop.permute.xlu0 %744
        %746 = vrot.lane.b32.xlu0 %v725, 64
        %v747 = vpop.permute.xlu0 %746
        %748 = vrot.lane.b32.xlu0 %v727, 64
        %v749 = vpop.permute.xlu0 %748
        %750 = vrot.lane.b32.xlu0 %v729, 64
        %v751 = vpop.permute.xlu0 %750
        %752 = vrot.lane.b32.xlu0 %v731, 64
        %v753 = vpop.permute.xlu0 %752
        %754 = vrot.lane.b32.xlu0 %v733, 64
        %v755 = vpop.permute.xlu0 %754
        %756 = vrot.lane.b32.xlu0 %v732, 64
        %v757 = vpop.permute.xlu0 %756
        %v759 = vsel %vm592, %v663, %v694
        %v761 = vsel %vm592, %v424, %v696
        %v763 = vsel %vm592, %v664, %v698
        %v766 = vsel %vm592, %v665, %v700
        %v768 = vsel %vm615, %v759, %v735
        %v770 = vsel %vm615, %v598, %v737
        %v772 = vsel %vm615, %v600, %v739
        %v774 = vsel %vm615, %v602, %v741
        %v776 = vsel %vm615, %v604, %v743
        %v778 = vsel %vm615, %v606, %v745
        %v780 = vsel %vm615, %v608, %v747
        %v782 = vsel %vm615, %v610, %v749
        %v784 = vsel %vm615, %v612, %v751
        %v786 = vsel %vm615, %v761, %v753
        %v788 = vsel %vm615, %v763, %v755
        %v790 = vsel %vm615, %v766, %v757
        %s791 = scalar_lea.vmem %s1, 48
        %v792 = vld [vmem:[%s791] sm:$0xf]
        %v793 = vld [vmem:[%s791 + $0x4] sm:$0xf]
        %v794 = vld [vmem:[%s791 + $0x8] sm:$0xf]
        %v795 = vld [vmem:[%s791 + $0xc] sm:$0xf]
        %v796 = vld [vmem:[%s791 + $0x10] sm:$0xf]
        %v797 = vld [vmem:[%s791 + $0x14] sm:$0xf]
        %v798 = vld [vmem:[%s791 + $0x18] sm:$0xf]
        %v799 = vld [vmem:[%s791 + $0x1c] sm:$0xf]
        %v800 = vld [vmem:[%s791 + $0x20] sm:$0xf]
        %v801 = vld [vmem:[%s791 + $0x24] sm:$0xf]
        %v802 = vld [vmem:[%s791 + $0x28] sm:$0xf]
        %v803 = vld [vmem:[%s791 + $0x2c] sm:$0xf]
        %vm816 = vcmask 1044480
        %v817 = vrot.slane %v768, 3
        %v818 = vrot.slane %v770, 3
        %v819 = vsel %vm816, %v817, %v818
        %v820 = vrot.slane %v772, 3
        %v821 = vsel %vm816, %v818, %v820
        %v822 = vrot.slane %v774, 3
        %v823 = vsel %vm816, %v820, %v822
        %v824 = vrot.slane %v776, 3
        %v825 = vsel %vm816, %v822, %v824
        %v826 = vrot.slane %v778, 3
        %v827 = vsel %vm816, %v824, %v826
        %v828 = vrot.slane %v780, 3
        %v829 = vsel %vm816, %v826, %v828
        %v830 = vrot.slane %v782, 3
        %v831 = vsel %vm816, %v828, %v830
        %v832 = vrot.slane %v784, 3
        %v833 = vsel %vm816, %v830, %v832
        %v834 = vrot.slane %v786, 3
        %v835 = vsel %vm816, %v832, %v834
        %v836 = vrot.slane %v788, 3
        %v837 = vsel %vm816, %v834, %v836
        %v838 = vrot.slane %v790, 3
        %v839 = vsel %vm816, %v836, %v838
        %v852 = vunpack.c.l.b16 %v792
        %v853 = vunpack.c.l.b16 %v793
        %v854 = vunpack.c.l.b16 %v794
        %v855 = vunpack.c.l.b16 %v795
        %v856 = vunpack.c.l.b16 %v796
        %v857 = vunpack.c.l.b16 %v797
        %v858 = vunpack.c.l.b16 %v798
        %v859 = vunpack.c.l.b16 %v799
        %v860 = vunpack.c.l.b16 %v800
        %v861 = vunpack.c.l.b16 %v801
        %v862 = vunpack.c.l.b16 %v802
        %v863 = vunpack.c.l.b16 %v803
        %v864 = vpack.c.b16 %v853, %v852
        %v865 = vpack.c.b16 %v855, %v854
        %v866 = vpack.c.b16 %v857, %v856
        %v867 = vpack.c.b16 %v859, %v858
        %v868 = vpack.c.b16 %v861, %v860
        %v869 = vpack.c.b16 %v863, %v862
        %vm876 = vcmask 785408
        %v878 = vsel %vm876, %v819, 0
        %v881 = vsel %vm876, %v821, 0
        %v884 = vsel %vm876, %v823, 0
        %v887 = vsel %vm876, %v825, 0
        %v890 = vsel %vm876, %v827, 0
        %v893 = vsel %vm876, %v829, 0
        %v896 = vsel %vm876, %v831, 0
        %v899 = vsel %vm876, %v833, 0
        %v902 = vsel %vm876, %v835, 0
        %v905 = vsel %vm876, %v837, 0
        %v908 = vsel %vm876, %v839, 0
        %910 = vmatpush.bf16.msra.mxu0 0
        %911 = vmatpush.bf16.msra.mxu0 0
        %912 = vmatpush.bf16.msra.mxu0 %v869
        %913 = vmatpush.bf16.msra.mxu0 %v868
        %914 = vmatpush.bf16.msra.mxu0 %v867
        %915 = vmatpush.bf16.msra.mxu0 %v866
        %916 = vmatpush.bf16.msra.mxu0 %v865
        %917 = vmatpush.bf16.msra.mxu0 %v864
        %918 = vmatmul.bf16.gmra.mxu0 %v878
        %v919 = vpop.f32.mrf.mxu0
        %v920 = vadd.f32 0.0, %v919
        %v921 = vpop.f32.mrf.mxu0
        %v922 = vadd.f32 0.0, %v921
        %923 = vmatmul.bf16.gmra.mxu0 %v881
        %v924 = vpop.f32.mrf.mxu0
        %v925 = vadd.f32 0.0, %v924
        %v926 = vpop.f32.mrf.mxu0
        %v927 = vadd.f32 0.0, %v926
        %928 = vmatmul.bf16.gmra.mxu0 %v884
        %v929 = vpop.f32.mrf.mxu0
        %v930 = vadd.f32 0.0, %v929
        %v931 = vpop.f32.mrf.mxu0
        %v932 = vadd.f32 0.0, %v931
        %933 = vmatmul.bf16.gmra.mxu0 %v887
        %v934 = vpop.f32.mrf.mxu0
        %v935 = vadd.f32 0.0, %v934
        %v936 = vpop.f32.mrf.mxu0
        %v937 = vadd.f32 0.0, %v936
        %938 = vmatmul.bf16.gmra.mxu0 %v890
        %v939 = vpop.f32.mrf.mxu0
        %v940 = vadd.f32 0.0, %v939
        %v941 = vpop.f32.mrf.mxu0
        %v942 = vadd.f32 0.0, %v941
        %943 = vmatmul.bf16.gmra.mxu0 %v893
        %v944 = vpop.f32.mrf.mxu0
        %v945 = vadd.f32 0.0, %v944
        %v946 = vpop.f32.mrf.mxu0
        %v947 = vadd.f32 0.0, %v946
        %948 = vmatmul.bf16.gmra.mxu0 %v896
        %v949 = vpop.f32.mrf.mxu0
        %v950 = vadd.f32 0.0, %v949
        %v951 = vpop.f32.mrf.mxu0
        %v952 = vadd.f32 0.0, %v951
        %953 = vmatmul.bf16.gmra.mxu0 %v899
        %v954 = vpop.f32.mrf.mxu0
        %v955 = vadd.f32 0.0, %v954
        %v956 = vpop.f32.mrf.mxu0
        %v957 = vadd.f32 0.0, %v956
        %958 = vmatmul.bf16.gmra.mxu0 %v902
        %v959 = vpop.f32.mrf.mxu0
        %v960 = vadd.f32 0.0, %v959
        %v961 = vpop.f32.mrf.mxu0
        %v962 = vadd.f32 0.0, %v961
        %963 = vmatmul.bf16.gmra.mxu0 %v905
        %v964 = vpop.f32.mrf.mxu0
        %v965 = vadd.f32 0.0, %v964
        %v966 = vpop.f32.mrf.mxu0
        %v967 = vadd.f32 0.0, %v966
        %968 = vmatmul.bf16.gmra.mxu0 %v908
        %v969 = vpop.f32.mrf.mxu0
        %v970 = vadd.f32 0.0, %v969
        %v971 = vpop.f32.mrf.mxu0
        %v972 = vadd.f32 0.0, %v971
        %973 = vdwg.mxu0
        %v986 = vunpack.c.l.b16 %v638
        %v987 = vunpack.c.l.b16 %v639
        %v988 = vunpack.c.l.b16 %v640
        %v989 = vunpack.c.l.b16 %v641
        %v990 = vunpack.c.l.b16 %v642
        %v991 = vunpack.c.l.b16 %v643
        %v992 = vunpack.c.l.b16 %v644
        %v993 = vunpack.c.l.b16 %v645
        %v994 = vunpack.c.l.b16 %v646
        %v995 = vunpack.c.l.b16 %v647
        %v996 = vunpack.c.l.b16 %v648
        %v997 = vunpack.c.l.b16 %v649
        %v998 = vpack.c.b16 %v987, %v986
        %v999 = vpack.c.b16 %v989, %v988
        %v1000 = vpack.c.b16 %v991, %v990
        %v1001 = vpack.c.b16 %v993, %v992
        %v1002 = vpack.c.b16 %v995, %v994
        %v1003 = vpack.c.b16 %v997, %v996
        %v1010 = vsel %vm876, %v617, 0
        %v1012 = vsel %vm876, %v619, 0
        %v1014 = vsel %vm876, %v621, 0
        %v1016 = vsel %vm876, %v623, 0
        %v1018 = vsel %vm876, %v625, 0
        %v1020 = vsel %vm876, %v627, 0
        %v1022 = vsel %vm876, %v629, 0
        %v1024 = vsel %vm876, %v631, 0
        %v1026 = vsel %vm876, %v633, 0
        %v1028 = vsel %vm876, %v635, 0
        %v1030 = vsel %vm876, %v637, 0
        %1032 = vmatpush.bf16.msra.mxu0 0
        %1033 = vmatpush.bf16.msra.mxu0 0
        %1034 = vmatpush.bf16.msra.mxu0 %v1003
        %1035 = vmatpush.bf16.msra.mxu0 %v1002
        %1036 = vmatpush.bf16.msra.mxu0 %v1001
        %1037 = vmatpush.bf16.msra.mxu0 %v1000
        %1038 = vmatpush.bf16.msra.mxu0 %v999
        %1039 = vmatpush.bf16.msra.mxu0 %v998
        %1040 = vmatmul.bf16.gmra.mxu0 %v1010
        %v1041 = vpop.f32.mrf.mxu0
        %v1042 = vadd.f32 %v920, %v1041
        %v1043 = vpop.f32.mrf.mxu0
        %v1044 = vadd.f32 %v922, %v1043
        %1045 = vmatmul.bf16.gmra.mxu0 %v1012
        %v1046 = vpop.f32.mrf.mxu0
        %v1047 = vadd.f32 %v925, %v1046
        %v1048 = vpop.f32.mrf.mxu0
        %v1049 = vadd.f32 %v927, %v1048
        %1050 = vmatmul.bf16.gmra.mxu0 %v1014
        %v1051 = vpop.f32.mrf.mxu0
        %v1052 = vadd.f32 %v930, %v1051
        %v1053 = vpop.f32.mrf.mxu0
        %v1054 = vadd.f32 %v932, %v1053
        %1055 = vmatmul.bf16.gmra.mxu0 %v1016
        %v1056 = vpop.f32.mrf.mxu0
        %v1057 = vadd.f32 %v935, %v1056
        %v1058 = vpop.f32.mrf.mxu0
        %v1059 = vadd.f32 %v937, %v1058
        %1060 = vmatmul.bf16.gmra.mxu0 %v1018
        %v1061 = vpop.f32.mrf.mxu0
        %v1062 = vadd.f32 %v940, %v1061
        %v1063 = vpop.f32.mrf.mxu0
        %v1064 = vadd.f32 %v942, %v1063
        %1065 = vmatmul.bf16.gmra.mxu0 %v1020
        %v1066 = vpop.f32.mrf.mxu0
        %v1067 = vadd.f32 %v945, %v1066
        %v1068 = vpop.f32.mrf.mxu0
        %v1069 = vadd.f32 %v947, %v1068
        %1070 = vmatmul.bf16.gmra.mxu0 %v1022
        %v1071 = vpop.f32.mrf.mxu0
        %v1072 = vadd.f32 %v950, %v1071
        %v1073 = vpop.f32.mrf.mxu0
        %v1074 = vadd.f32 %v952, %v1073
        %1075 = vmatmul.bf16.gmra.mxu0 %v1024
        %v1076 = vpop.f32.mrf.mxu0
        %v1077 = vadd.f32 %v955, %v1076
        %v1078 = vpop.f32.mrf.mxu0
        %v1079 = vadd.f32 %v957, %v1078
        %1080 = vmatmul.bf16.gmra.mxu0 %v1026
        %v1081 = vpop.f32.mrf.mxu0
        %v1082 = vadd.f32 %v960, %v1081
        %v1083 = vpop.f32.mrf.mxu0
        %v1084 = vadd.f32 %v962, %v1083
        %1085 = vmatmul.bf16.gmra.mxu0 %v1028
        %v1086 = vpop.f32.mrf.mxu0
        %v1087 = vadd.f32 %v965, %v1086
        %v1088 = vpop.f32.mrf.mxu0
        %v1089 = vadd.f32 %v967, %v1088
        %1090 = vmatmul.bf16.gmra.mxu0 %v1030
        %v1091 = vpop.f32.mrf.mxu0
        %v1092 = vadd.f32 %v970, %v1091
        %v1093 = vpop.f32.mrf.mxu0
        %v1094 = vadd.f32 %v972, %v1093
        %1095 = vdwg.mxu0
        %v1096 = vld [vmem:[%s329 + $0x14] sm:$0xc]
        %v1097 = vld [vmem:[%s329 + $0x18] sm:$0xf]
        %v1098 = vld [vmem:[%s329 + $0x1c] sm:$0xf]
        %v1099 = vld [vmem:[%s329 + $0x20] sm:$0xf]
        %v1100 = vld [vmem:[%s329 + $0x24] sm:$0xf]
        %v1101 = vld [vmem:[%s329 + $0x28] sm:$0xf]
        %v1102 = vld [vmem:[%s329 + $0x2c] sm:$0xf]
        %v1103 = vld [vmem:[%s329 + $0x30] sm:$0xf]
        %v1104 = vld [vmem:[%s329 + $0x34] sm:$0xf]
        %v1105 = vld [vmem:[%s329 + $0x38] sm:$0xf]
        %v1106 = vld [vmem:[%s329 + $0x3c] sm:$0xf]
        %v1107 = vld [vmem:[%s329 + $0x40] sm:$0xf]
        %v1108 = vld [vmem:[%s329 + $0x44] sm:$0xf]
        %v1109 = vld [vmem:[%s329 + $0x48] sm:$0xf]
        %v1110 = vld [vmem:[%s329 + $0x4c] sm:$0xf]
        %v1111 = vld [vmem:[%s329 + $0x50] sm:$0xf]
        %v1112 = vld [vmem:[%s329 + $0x54] sm:$0xf]
        %v1113 = vld [vmem:[%s329 + $0x58] sm:$0xf]
        %v1114 = vld [vmem:[%s329 + $0x5c] sm:$0xf]
        %v1115 = vld [vmem:[%s329 + $0x60] sm:$0xf]
        %v1116 = vld [vmem:[%s329 + $0x64] sm:$0xf]
        %v1117 = vld [vmem:[%s329 + $0x68] sm:$0xf]
        %v1118 = vld [vmem:[%s329 + $0x6c] sm:$0x3]
        %v1119 = vld [vmem:[%s329 + $0x6c] sm:$0x7]
        %v1120 = vld [vmem:[%s329 + $0x14] sm:$0x8]
        %v1144 = vunpack.c.l.b16 %v1096
        %v1145 = vunpack.c.l.b16 %v1097
        %v1146 = vunpack.c.l.b16 %v1098
        %v1147 = vunpack.c.l.b16 %v1099
        %v1148 = vunpack.c.l.b16 %v1100
        %v1149 = vunpack.c.l.b16 %v1101
        %v1150 = vunpack.c.l.b16 %v1102
        %v1151 = vunpack.c.l.b16 %v1103
        %v1152 = vunpack.c.l.b16 %v1104
        %v1153 = vunpack.c.l.b16 %v1105
        %v1154 = vunpack.c.l.b16 %v1106
        %v1155 = vunpack.c.l.b16 %v1107
        %v1156 = vunpack.c.l.b16 %v1108
        %v1157 = vunpack.c.l.b16 %v1109
        %v1158 = vunpack.c.l.b16 %v1110
        %v1159 = vunpack.c.l.b16 %v1111
        %v1160 = vunpack.c.l.b16 %v1112
        %v1161 = vunpack.c.l.b16 %v1113
        %v1162 = vunpack.c.l.b16 %v1114
        %v1163 = vunpack.c.l.b16 %v1115
        %v1164 = vunpack.c.l.b16 %v1116
        %v1165 = vunpack.c.l.b16 %v1117
        %v1166 = vunpack.c.l.b16 %v1118
        %v1167 = vpack.c.b16 %v1145, %v1144
        %v1168 = vpack.c.b16 %v1147, %v1146
        %v1169 = vpack.c.b16 %v1149, %v1148
        %v1170 = vpack.c.b16 %v1151, %v1150
        %v1171 = vpack.c.b16 %v1153, %v1152
        %v1172 = vpack.c.b16 %v1155, %v1154
        %v1173 = vpack.c.b16 %v1157, %v1156
        %v1174 = vpack.c.b16 %v1159, %v1158
        %v1175 = vpack.c.b16 %v1161, %v1160
        %v1176 = vpack.c.b16 %v1163, %v1162
        %v1177 = vpack.c.b16 %v1165, %v1164
        %v1178 = vpack.c.b16 %v1166, %v1166
        %v1180 = vunpack.c.l.b16 %v1119
        %v1181 = vpack.c.b16 %v1180, %v1180
        %v1183 = vshrl.u32 %v1167, 16
        %v1185 = vshll.u32 %v1167, 16
        %v1187 = vrot.slane %v1185, 1
        %v1188 = vor.u32 %v1183, %v1187
        %v1190 = vshll.u32 %v1168, 16
        %v1192 = vrot.slane %v1190, 1
        %v1193 = vsel %vm428, %v1188, %v1192
        %v1194 = vshrl.u32 %v1168, 16
        %v1196 = vor.u32 %v1194, %v1192
        %v1198 = vshll.u32 %v1169, 16
        %v1200 = vrot.slane %v1198, 1
        %v1201 = vsel %vm428, %v1196, %v1200
        %v1202 = vshrl.u32 %v1169, 16
        %v1204 = vor.u32 %v1202, %v1200
        %v1206 = vshll.u32 %v1170, 16
        %v1208 = vrot.slane %v1206, 1
        %v1209 = vsel %vm428, %v1204, %v1208
        %v1210 = vshrl.u32 %v1170, 16
        %v1212 = vor.u32 %v1210, %v1208
        %v1214 = vshll.u32 %v1171, 16
        %v1216 = vrot.slane %v1214, 1
        %v1217 = vsel %vm428, %v1212, %v1216
        %v1218 = vshrl.u32 %v1171, 16
        %v1220 = vor.u32 %v1218, %v1216
        %v1222 = vshll.u32 %v1172, 16
        %v1224 = vrot.slane %v1222, 1
        %v1225 = vsel %vm428, %v1220, %v1224
        %v1226 = vshrl.u32 %v1172, 16
        %v1228 = vor.u32 %v1226, %v1224
        %v1230 = vshll.u32 %v1173, 16
        %v1232 = vrot.slane %v1230, 1
        %v1233 = vsel %vm428, %v1228, %v1232
        %v1234 = vshrl.u32 %v1173, 16
        %v1236 = vor.u32 %v1234, %v1232
        %v1238 = vshll.u32 %v1174, 16
        %v1240 = vrot.slane %v1238, 1
        %v1241 = vsel %vm428, %v1236, %v1240
        %v1242 = vshrl.u32 %v1174, 16
        %v1244 = vor.u32 %v1242, %v1240
        %v1246 = vshll.u32 %v1175, 16
        %v1248 = vrot.slane %v1246, 1
        %v1249 = vsel %vm428, %v1244, %v1248
        %v1250 = vshrl.u32 %v1175, 16
        %v1252 = vor.u32 %v1250, %v1248
        %v1254 = vshll.u32 %v1176, 16
        %v1256 = vrot.slane %v1254, 1
        %v1257 = vsel %vm428, %v1252, %v1256
        %v1258 = vshrl.u32 %v1176, 16
        %v1260 = vor.u32 %v1258, %v1256
        %v1262 = vshll.u32 %v1177, 16
        %v1264 = vrot.slane %v1262, 1
        %v1265 = vsel %vm428, %v1260, %v1264
        %v1266 = vshrl.u32 %v1177, 16
        %v1268 = vor.u32 %v1266, %v1264
        %v1270 = vshll.u32 %v1181, 16
        %v1272 = vrot.slane %v1270, 1
        %v1273 = vsel %vm428, %v1268, %v1272
        %v1274 = vshrl.u32 %v1181, 16
        %v1276 = vor.u32 %v1274, %v1272
        %1277 = vrot.lane.b32.xlu0 %v1193, 32
        %v1278 = vpop.permute.xlu0 %1277
        %1279 = vrot.lane.b32.xlu0 %v1201, 32
        %v1280 = vpop.permute.xlu0 %1279
        %1281 = vrot.lane.b32.xlu0 %v1209, 32
        %v1282 = vpop.permute.xlu0 %1281
        %1283 = vrot.lane.b32.xlu0 %v1217, 32
        %v1284 = vpop.permute.xlu0 %1283
        %1285 = vrot.lane.b32.xlu0 %v1225, 32
        %v1286 = vpop.permute.xlu0 %1285
        %1287 = vrot.lane.b32.xlu0 %v1233, 32
        %v1288 = vpop.permute.xlu0 %1287
        %1289 = vrot.lane.b32.xlu0 %v1241, 32
        %v1290 = vpop.permute.xlu0 %1289
        %1291 = vrot.lane.b32.xlu0 %v1249, 32
        %v1292 = vpop.permute.xlu0 %1291
        %1293 = vrot.lane.b32.xlu0 %v1257, 32
        %v1294 = vpop.permute.xlu0 %1293
        %1295 = vrot.lane.b32.xlu0 %v1265, 32
        %v1296 = vpop.permute.xlu0 %1295
        %1297 = vrot.lane.b32.xlu0 %v1273, 32
        %v1298 = vpop.permute.xlu0 %1297
        %1299 = vrot.lane.b32.xlu0 %v1276, 32
        %v1300 = vpop.permute.xlu0 %1299
        %v1302 = vunpack.c.l.b16 %v1120
        %v1303 = vpack.c.b16 %v1145, %v1302
        %v1304 = vrot.slane %v1303, 1
        %v1305 = vrot.slane %v1168, 1
        %v1306 = vsel %vm546, %v1304, %v1305
        %v1307 = vrot.slane %v1169, 1
        %v1308 = vsel %vm546, %v1305, %v1307
        %v1309 = vrot.slane %v1170, 1
        %v1310 = vsel %vm546, %v1307, %v1309
        %v1311 = vrot.slane %v1171, 1
        %v1312 = vsel %vm546, %v1309, %v1311
        %v1313 = vrot.slane %v1172, 1
        %v1314 = vsel %vm546, %v1311, %v1313
        %v1315 = vrot.slane %v1173, 1
        %v1316 = vsel %vm546, %v1313, %v1315
        %v1317 = vrot.slane %v1174, 1
        %v1318 = vsel %vm546, %v1315, %v1317
        %v1319 = vrot.slane %v1175, 1
        %v1320 = vsel %vm546, %v1317, %v1319
        %v1321 = vrot.slane %v1176, 1
        %v1322 = vsel %vm546, %v1319, %v1321
        %v1323 = vrot.slane %v1177, 1
        %v1324 = vsel %vm546, %v1321, %v1323
        %v1325 = vrot.slane %v1181, 1
        %v1326 = vsel %vm546, %v1323, %v1325
        %1327 = vrot.lane.b32.xlu0 %v1306, 64
        %v1328 = vpop.permute.xlu0 %1327
        %1329 = vrot.lane.b32.xlu0 %v1308, 64
        %v1330 = vpop.permute.xlu0 %1329
        %1331 = vrot.lane.b32.xlu0 %v1310, 64
        %v1332 = vpop.permute.xlu0 %1331
        %1333 = vrot.lane.b32.xlu0 %v1312, 64
        %v1334 = vpop.permute.xlu0 %1333
        %1335 = vrot.lane.b32.xlu0 %v1314, 64
        %v1336 = vpop.permute.xlu0 %1335
        %1337 = vrot.lane.b32.xlu0 %v1316, 64
        %v1338 = vpop.permute.xlu0 %1337
        %1339 = vrot.lane.b32.xlu0 %v1318, 64
        %v1340 = vpop.permute.xlu0 %1339
        %1341 = vrot.lane.b32.xlu0 %v1320, 64
        %v1342 = vpop.permute.xlu0 %1341
        %1343 = vrot.lane.b32.xlu0 %v1322, 64
        %v1344 = vpop.permute.xlu0 %1343
        %1345 = vrot.lane.b32.xlu0 %v1324, 64
        %v1346 = vpop.permute.xlu0 %1345
        %1347 = vrot.lane.b32.xlu0 %v1326, 64
        %v1348 = vpop.permute.xlu0 %1347
        %1349 = vrot.lane.b32.xlu0 %v1325, 64
        %v1350 = vpop.permute.xlu0 %1349
        %v1352 = vsel %vm592, %v1167, %v1278
        %v1354 = vsel %vm592, %v1168, %v1280
        %v1356 = vsel %vm592, %v1169, %v1282
        %v1358 = vsel %vm592, %v1170, %v1284
        %v1360 = vsel %vm592, %v1171, %v1286
        %v1362 = vsel %vm592, %v1172, %v1288
        %v1364 = vsel %vm592, %v1173, %v1290
        %v1366 = vsel %vm592, %v1174, %v1292
        %v1368 = vsel %vm592, %v1175, %v1294
        %v1370 = vsel %vm592, %v1176, %v1296
        %v1372 = vsel %vm592, %v1177, %v1298
        %v1375 = vsel %vm592, %v1178, %v1300
        %v1377 = vsel %vm615, %v1352, %v1328
        %v1379 = vsel %vm615, %v1354, %v1330
        %v1381 = vsel %vm615, %v1356, %v1332
        %v1383 = vsel %vm615, %v1358, %v1334
        %v1385 = vsel %vm615, %v1360, %v1336
        %v1387 = vsel %vm615, %v1362, %v1338
        %v1389 = vsel %vm615, %v1364, %v1340
        %v1391 = vsel %vm615, %v1366, %v1342
        %v1393 = vsel %vm615, %v1368, %v1344
        %v1395 = vsel %vm615, %v1370, %v1346
        %v1397 = vsel %vm615, %v1372, %v1348
        %v1399 = vsel %vm615, %v1375, %v1350
        %s1400 = scalar_lea.vmem %s1, 96
        %v1401 = vld [vmem:[%s1400] sm:$0xf]
        %v1402 = vld [vmem:[%s1400 + $0x4] sm:$0xf]
        %v1403 = vld [vmem:[%s1400 + $0x8] sm:$0xf]
        %v1404 = vld [vmem:[%s1400 + $0xc] sm:$0xf]
        %v1405 = vld [vmem:[%s1400 + $0x10] sm:$0xf]
        %v1406 = vld [vmem:[%s1400 + $0x14] sm:$0xf]
        %v1407 = vld [vmem:[%s1400 + $0x18] sm:$0xf]
        %v1408 = vld [vmem:[%s1400 + $0x1c] sm:$0xf]
        %v1409 = vld [vmem:[%s1400 + $0x20] sm:$0xf]
        %v1410 = vld [vmem:[%s1400 + $0x24] sm:$0xf]
        %v1411 = vld [vmem:[%s1400 + $0x28] sm:$0xf]
        %v1412 = vld [vmem:[%s1400 + $0x2c] sm:$0xf]
        %vm1425 = vcmask 1045504
        %v1426 = vrot.slane %v1377, 2
        %v1427 = vrot.slane %v1379, 2
        %v1428 = vsel %vm1425, %v1426, %v1427
        %v1429 = vrot.slane %v1381, 2
        %v1430 = vsel %vm1425, %v1427, %v1429
        %v1431 = vrot.slane %v1383, 2
        %v1432 = vsel %vm1425, %v1429, %v1431
        %v1433 = vrot.slane %v1385, 2
        %v1434 = vsel %vm1425, %v1431, %v1433
        %v1435 = vrot.slane %v1387, 2
        %v1436 = vsel %vm1425, %v1433, %v1435
        %v1437 = vrot.slane %v1389, 2
        %v1438 = vsel %vm1425, %v1435, %v1437
        %v1439 = vrot.slane %v1391, 2
        %v1440 = vsel %vm1425, %v1437, %v1439
        %v1441 = vrot.slane %v1393, 2
        %v1442 = vsel %vm1425, %v1439, %v1441
        %v1443 = vrot.slane %v1395, 2
        %v1444 = vsel %vm1425, %v1441, %v1443
        %v1445 = vrot.slane %v1397, 2
        %v1446 = vsel %vm1425, %v1443, %v1445
        %v1447 = vrot.slane %v1399, 2
        %v1448 = vsel %vm1425, %v1445, %v1447
        %v1461 = vunpack.c.l.b16 %v1401
        %v1462 = vunpack.c.l.b16 %v1402
        %v1463 = vunpack.c.l.b16 %v1403
        %v1464 = vunpack.c.l.b16 %v1404
        %v1465 = vunpack.c.l.b16 %v1405
        %v1466 = vunpack.c.l.b16 %v1406
        %v1467 = vunpack.c.l.b16 %v1407
        %v1468 = vunpack.c.l.b16 %v1408
        %v1469 = vunpack.c.l.b16 %v1409
        %v1470 = vunpack.c.l.b16 %v1410
        %v1471 = vunpack.c.l.b16 %v1411
        %v1472 = vunpack.c.l.b16 %v1412
        %v1473 = vpack.c.b16 %v1462, %v1461
        %v1474 = vpack.c.b16 %v1464, %v1463
        %v1475 = vpack.c.b16 %v1466, %v1465
        %v1476 = vpack.c.b16 %v1468, %v1467
        %v1477 = vpack.c.b16 %v1470, %v1469
        %v1478 = vpack.c.b16 %v1472, %v1471
        %v1486 = vsel %vm876, %v1428, 0
        %v1489 = vsel %vm876, %v1430, 0
        %v1492 = vsel %vm876, %v1432, 0
        %v1495 = vsel %vm876, %v1434, 0
        %v1498 = vsel %vm876, %v1436, 0
        %v1501 = vsel %vm876, %v1438, 0
        %v1504 = vsel %vm876, %v1440, 0
        %v1507 = vsel %vm876, %v1442, 0
        %v1510 = vsel %vm876, %v1444, 0
        %v1513 = vsel %vm876, %v1446, 0
        %v1516 = vsel %vm876, %v1448, 0
        %1518 = vmatpush.bf16.msra.mxu0 0
        %1519 = vmatpush.bf16.msra.mxu0 0
        %1520 = vmatpush.bf16.msra.mxu0 %v1478
        %1521 = vmatpush.bf16.msra.mxu0 %v1477
        %1522 = vmatpush.bf16.msra.mxu0 %v1476
        %1523 = vmatpush.bf16.msra.mxu0 %v1475
        %1524 = vmatpush.bf16.msra.mxu0 %v1474
        %1525 = vmatpush.bf16.msra.mxu0 %v1473
        %1526 = vmatmul.bf16.gmra.mxu0 %v1486
        %v1527 = vpop.f32.mrf.mxu0
        %v1528 = vadd.f32 0.0, %v1527
        %v1529 = vpop.f32.mrf.mxu0
        %v1530 = vadd.f32 0.0, %v1529
        %1531 = vmatmul.bf16.gmra.mxu0 %v1489
        %v1532 = vpop.f32.mrf.mxu0
        %v1533 = vadd.f32 0.0, %v1532
        %v1534 = vpop.f32.mrf.mxu0
        %v1535 = vadd.f32 0.0, %v1534
        %1536 = vmatmul.bf16.gmra.mxu0 %v1492
        %v1537 = vpop.f32.mrf.mxu0
        %v1538 = vadd.f32 0.0, %v1537
        %v1539 = vpop.f32.mrf.mxu0
        %v1540 = vadd.f32 0.0, %v1539
        %1541 = vmatmul.bf16.gmra.mxu0 %v1495
        %v1542 = vpop.f32.mrf.mxu0
        %v1543 = vadd.f32 0.0, %v1542
        %v1544 = vpop.f32.mrf.mxu0
        %v1545 = vadd.f32 0.0, %v1544
        %1546 = vmatmul.bf16.gmra.mxu0 %v1498
        %v1547 = vpop.f32.mrf.mxu0
        %v1548 = vadd.f32 0.0, %v1547
        %v1549 = vpop.f32.mrf.mxu0
        %v1550 = vadd.f32 0.0, %v1549
        %1551 = vmatmul.bf16.gmra.mxu0 %v1501
        %v1552 = vpop.f32.mrf.mxu0
        %v1553 = vadd.f32 0.0, %v1552
        %v1554 = vpop.f32.mrf.mxu0
        %v1555 = vadd.f32 0.0, %v1554
        %1556 = vmatmul.bf16.gmra.mxu0 %v1504
        %v1557 = vpop.f32.mrf.mxu0
        %v1558 = vadd.f32 0.0, %v1557
        %v1559 = vpop.f32.mrf.mxu0
        %v1560 = vadd.f32 0.0, %v1559
        %1561 = vmatmul.bf16.gmra.mxu0 %v1507
        %v1562 = vpop.f32.mrf.mxu0
        %v1563 = vadd.f32 0.0, %v1562
        %v1564 = vpop.f32.mrf.mxu0
        %v1565 = vadd.f32 0.0, %v1564
        %1566 = vmatmul.bf16.gmra.mxu0 %v1510
        %v1567 = vpop.f32.mrf.mxu0
        %v1568 = vadd.f32 0.0, %v1567
        %v1569 = vpop.f32.mrf.mxu0
        %v1570 = vadd.f32 0.0, %v1569
        %1571 = vmatmul.bf16.gmra.mxu0 %v1513
        %v1572 = vpop.f32.mrf.mxu0
        %v1573 = vadd.f32 0.0, %v1572
        %v1574 = vpop.f32.mrf.mxu0
        %v1575 = vadd.f32 0.0, %v1574
        %1576 = vmatmul.bf16.gmra.mxu0 %v1516
        %v1577 = vpop.f32.mrf.mxu0
        %v1578 = vadd.f32 0.0, %v1577
        %v1579 = vpop.f32.mrf.mxu0
        %v1580 = vadd.f32 0.0, %v1579
        %1581 = vdwg.mxu0
        %v1582 = vadd.f32 %v1042, %v1528
        %v1583 = vadd.f32 %v1044, %v1530
        %v1584 = vadd.f32 %v1047, %v1533
        %v1585 = vadd.f32 %v1049, %v1535
        %v1586 = vadd.f32 %v1052, %v1538
        %v1587 = vadd.f32 %v1054, %v1540
        %v1588 = vadd.f32 %v1057, %v1543
        %v1589 = vadd.f32 %v1059, %v1545
        %v1590 = vadd.f32 %v1062, %v1548
        %v1591 = vadd.f32 %v1064, %v1550
        %v1592 = vadd.f32 %v1067, %v1553
        %v1593 = vadd.f32 %v1069, %v1555
        %v1594 = vadd.f32 %v1072, %v1558
        %v1595 = vadd.f32 %v1074, %v1560
        %v1596 = vadd.f32 %v1077, %v1563
        %v1597 = vadd.f32 %v1079, %v1565
        %v1598 = vadd.f32 %v1082, %v1568
        %v1599 = vadd.f32 %v1084, %v1570
        %v1600 = vadd.f32 %v1087, %v1573
        %v1601 = vadd.f32 %v1089, %v1575
        %v1602 = vadd.f32 %v1092, %v1578
        %v1603 = vadd.f32 %v1094, %v1580
        %v1604 = vld [vmem:[%s2] sm:$0x1]
        %v1606 = vperm.slane %v1604, 0
        %v1608 = vadd.f32 %v1582, %v1606
        %v1609 = vadd.f32 %v1583, %v1606
        %v1610 = vadd.f32 %v1584, %v1606
        %v1611 = vadd.f32 %v1585, %v1606
        %v1612 = vadd.f32 %v1586, %v1606
        %v1613 = vadd.f32 %v1587, %v1606
        %v1614 = vadd.f32 %v1588, %v1606
        %v1615 = vadd.f32 %v1589, %v1606
        %v1616 = vadd.f32 %v1590, %v1606
        %v1617 = vadd.f32 %v1591, %v1606
        %v1618 = vadd.f32 %v1592, %v1606
        %v1619 = vadd.f32 %v1593, %v1606
        %v1620 = vadd.f32 %v1594, %v1606
        %v1621 = vadd.f32 %v1595, %v1606
        %v1622 = vadd.f32 %v1596, %v1606
        %v1623 = vadd.f32 %v1597, %v1606
        %v1624 = vadd.f32 %v1598, %v1606
        %v1625 = vadd.f32 %v1599, %v1606
        %v1626 = vadd.f32 %v1600, %v1606
        %v1627 = vadd.f32 %v1601, %v1606
        %v1628 = vadd.f32 %v1602, %v1606
        %v1629 = vadd.f32 %v1603, %v1606
        %v1630 = vmax.f32 %v1608, 0.0
        %v1631 = vmax.f32 %v1609, 0.0
        %v1632 = vmax.f32 %v1610, 0.0
        %v1633 = vmax.f32 %v1611, 0.0
        %v1634 = vmax.f32 %v1612, 0.0
        %v1635 = vmax.f32 %v1613, 0.0
        %v1636 = vmax.f32 %v1614, 0.0
        %v1637 = vmax.f32 %v1615, 0.0
        %v1638 = vmax.f32 %v1616, 0.0
        %v1639 = vmax.f32 %v1617, 0.0
        %v1640 = vmax.f32 %v1618, 0.0
        %v1641 = vmax.f32 %v1619, 0.0
        %v1642 = vmax.f32 %v1620, 0.0
        %v1643 = vmax.f32 %v1621, 0.0
        %v1644 = vmax.f32 %v1622, 0.0
        %v1645 = vmax.f32 %v1623, 0.0
        %v1646 = vmax.f32 %v1624, 0.0
        %v1647 = vmax.f32 %v1625, 0.0
        %v1648 = vmax.f32 %v1626, 0.0
        %v1649 = vmax.f32 %v1627, 0.0
        %v1650 = vmax.f32 %v1628, 0.0
        %v1651 = vmax.f32 %v1629, 0.0
        %1652 = vst.msk [vmem:[#allocation2] sm:$0xff] %vm615, %v1630
        %1653 = vst.msk [vmem:[#allocation2 + $0x8] sm:$0xff] %vm615, %v1631
        %1654 = vst.msk [vmem:[#allocation2 + $0x10] sm:$0xff] %vm615, %v1632
        %1655 = vst.msk [vmem:[#allocation2 + $0x18] sm:$0xff] %vm615, %v1633
        %1656 = vst.msk [vmem:[#allocation2 + $0x20] sm:$0xff] %vm615, %v1634
        %1657 = vst.msk [vmem:[#allocation2 + $0x28] sm:$0xff] %vm615, %v1635
        %1658 = vst.msk [vmem:[#allocation2 + $0x30] sm:$0xff] %vm615, %v1636
        %1659 = vst.msk [vmem:[#allocation2 + $0x38] sm:$0xff] %vm615, %v1637
        %1660 = vst.msk [vmem:[#allocation2 + $0x40] sm:$0xff] %vm615, %v1638
        %1661 = vst.msk [vmem:[#allocation2 + $0x48] sm:$0xff] %vm615, %v1639
        %1662 = vst.msk [vmem:[#allocation2 + $0x50] sm:$0xff] %vm615, %v1640
        %1663 = vst.msk [vmem:[#allocation2 + $0x58] sm:$0xff] %vm615, %v1641
        %1664 = vst.msk [vmem:[#allocation2 + $0x60] sm:$0xff] %vm615, %v1642
        %1665 = vst.msk [vmem:[#allocation2 + $0x68] sm:$0xff] %vm615, %v1643
        %1666 = vst.msk [vmem:[#allocation2 + $0x70] sm:$0xff] %vm615, %v1644
        %1667 = vst.msk [vmem:[#allocation2 + $0x78] sm:$0xff] %vm615, %v1645
        %1668 = vst.msk [vmem:[#allocation2 + $0x80] sm:$0xff] %vm615, %v1646
        %1669 = vst.msk [vmem:[#allocation2 + $0x88] sm:$0xff] %vm615, %v1647
        %1670 = vst.msk [vmem:[#allocation2 + $0x90] sm:$0xff] %vm615, %v1648
        %1671 = vst.msk [vmem:[#allocation2 + $0x98] sm:$0xff] %vm615, %v1649
        %1672 = vst.msk [vmem:[#allocation2 + $0xa0] sm:$0xff] %vm615, %v1650
        %1673 = vst.msk [vmem:[#allocation2 + $0xa8] sm:$0xff] %vm615, %v1651
        %v1674 = vld [vmem:[#allocation2] ss:$2 sm:$0xff]
        %s1675 = scalar_lea.vmem [#allocation2], 16
        %v1676 = vld [vmem:[%s1675] ss:$2 sm:$0x3]
        %s1677 = scalar_lea.vmem [#allocation2], 1
        %v1678 = vld [vmem:[%s1677] ss:$2 sm:$0xff]
        %s1679 = scalar_lea.vmem [#allocation2], 17
        %v1680 = vld [vmem:[%s1679] ss:$2 sm:$0x3]
        %s1681 = scalar_lea.vmem [#allocation2], 22
        %v1682 = vld [vmem:[%s1681] ss:$2 sm:$0xff]
        %s1683 = scalar_lea.vmem [#allocation2], 38
        %v1684 = vld [vmem:[%s1683] ss:$2 sm:$0x3]
        %s1685 = scalar_lea.vmem [#allocation2], 23
        %v1686 = vld [vmem:[%s1685] ss:$2 sm:$0xff]
        %s1687 = scalar_lea.vmem [#allocation2], 39
        %v1688 = vld [vmem:[%s1687] ss:$2 sm:$0x3]
        %v1689 = vmax.f32 %v1674, %v1678
        %v1690 = vmax.f32 %v1676, %v1680
        %v1691 = vmax.f32 %v1682, %v1686
        %v1692 = vmax.f32 %v1684, %v1688
        %v1693 = vmax.f32 %v1689, %v1691
        %v1694 = vmax.f32 %v1690, %v1692
        %v1695 = vpack.c.bf16 %v1693, %v1693
        %v1696 = vpack.c.bf16 %v1694, %v1694
        %vm1697 = vsmask.f32 2304
        %vm1698 = vsmask.f32 6416
        %vm1699 = vmor %vm1697, %vm1698
        %v1701 = vshrl.u32 %v1695, 16
        %v1703 = vrot.slane %v1701, 5
        %v1704 = vshll.u32 %v1695, 16
        %v1706 = vrot.slane %v1704, 6
        %v1707 = vor.u32 %v1703, %v1706
        %v1708 = vrot.slane %v1707, 4
        %v1710 = vshrl.u32 %v1696, 16
        %v1712 = vrot.slane %v1710, 5
        %v1713 = vshll.u32 %v1696, 16
        %v1715 = vrot.slane %v1713, 6
        %v1716 = vor.u32 %v1712, %v1715
        %v1717 = vsel %vm1699, %v1708, %v1716
        %vm1720 = vcmask 519170
        %vm1721 = vsmask.f32 7946
        %vm1722 = vmand %vm1720, %vm1721
        %v1723 = vld [vmem:[#allocation3 + $0x4] sm:$0xc]
        %v1724 = vsel %vm1722, %v1707, %v1723
        %1725 = vst [vmem:[#allocation3 + $0x4] sm:$0xc] %v1724
        %vm1726 = vcmask 519168
        %vm1727 = vsmask.f32 3328
        %vm1728 = vmand %vm1726, %vm1727
        %v1729 = vld [vmem:[#allocation3 + $0x8] sm:$0xf]
        %v1730 = vsel %vm1728, %v1717, %v1729
        %1731 = vst [vmem:[#allocation3 + $0x8] sm:$0xf] %v1730
        %s1732 = scalar_lea.vmem [#allocation2], 44
        %v1733 = vld [vmem:[%s1732] ss:$2 sm:$0xff]
        %s1734 = scalar_lea.vmem [#allocation2], 60
        %v1735 = vld [vmem:[%s1734] ss:$2 sm:$0x3]
        %s1736 = scalar_lea.vmem [#allocation2], 45
        %v1737 = vld [vmem:[%s1736] ss:$2 sm:$0xff]
        %s1738 = scalar_lea.vmem [#allocation2], 61
        %v1739 = vld [vmem:[%s1738] ss:$2 sm:$0x3]
        %s1740 = scalar_lea.vmem [#allocation2], 66
        %v1741 = vld [vmem:[%s1740] ss:$2 sm:$0xff]
        %s1742 = scalar_lea.vmem [#allocation2], 82
        %v1743 = vld [vmem:[%s1742] ss:$2 sm:$0x3]
        %s1744 = scalar_lea.vmem [#allocation2], 67
        %v1745 = vld [vmem:[%s1744] ss:$2 sm:$0xff]
        %s1746 = scalar_lea.vmem [#allocation2], 83
        %v1747 = vld [vmem:[%s1746] ss:$2 sm:$0x3]
        %v1748 = vmax.f32 %v1733, %v1737
        %v1749 = vmax.f32 %v1735, %v1739
        %v1750 = vmax.f32 %v1741, %v1745
        %v1751 = vmax.f32 %v1743, %v1747
        %v1752 = vmax.f32 %v1748, %v1750
        %v1753 = vmax.f32 %v1749, %v1751
        %v1754 = vpack.c.bf16 %v1752, %v1752
        %v1755 = vpack.c.bf16 %v1753, %v1753
        %vm1756 = vsmask.f32 256
        %vm1757 = vsmask.f32 4368
        %vm1758 = vmor %vm1756, %vm1757
        %v1760 = vshrl.u32 %v1754, 16
        %v1762 = vrot.slane %v1760, 7
        %v1763 = vshll.u32 %v1754, 16
        %v1765 = vor.u32 %v1762, %v1763
        %v1766 = vrot.slane %v1762, 4
        %v1768 = vshrl.u32 %v1755, 16
        %v1770 = vrot.slane %v1768, 7
        %v1771 = vshll.u32 %v1755, 16
        %v1773 = vor.u32 %v1770, %v1771
        %v1774 = vsel %vm1758, %v1766, %v1773
        %vm1777 = vsmask.f32 7938
        %vm1778 = vmand %vm1726, %vm1777
        %v1779 = vld [vmem:[#allocation3 + $0xc] sm:$0xf]
        %v1780 = vsel %vm1778, %v1765, %v1779
        %1781 = vst [vmem:[#allocation3 + $0xc] sm:$0xf] %v1780
        %vm1782 = vcmask 517120
        %vm1783 = vsmask.f32 1280
        %vm1784 = vmand %vm1782, %vm1783
        %v1785 = vld [vmem:[#allocation3 + $0x10] sm:$0x3]
        %v1786 = vsel %vm1784, %v1774, %v1785
        %1787 = vst [vmem:[#allocation3 + $0x10] sm:$0x3] %v1786
        %s1788 = scalar_lea.vmem [#allocation2], 88
        %v1789 = vld [vmem:[%s1788] ss:$2 sm:$0xff]
        %s1790 = scalar_lea.vmem [#allocation2], 104
        %v1791 = vld [vmem:[%s1790] ss:$2 sm:$0x3]
        %s1792 = scalar_lea.vmem [#allocation2], 89
        %v1793 = vld [vmem:[%s1792] ss:$2 sm:$0xff]
        %s1794 = scalar_lea.vmem [#allocation2], 105
        %v1795 = vld [vmem:[%s1794] ss:$2 sm:$0x3]
        %s1796 = scalar_lea.vmem [#allocation2], 110
        %v1797 = vld [vmem:[%s1796] ss:$2 sm:$0xff]
        %s1798 = scalar_lea.vmem [#allocation2], 126
        %v1799 = vld [vmem:[%s1798] ss:$2 sm:$0x3]
        %s1800 = scalar_lea.vmem [#allocation2], 111
        %v1801 = vld [vmem:[%s1800] ss:$2 sm:$0xff]
        %s1802 = scalar_lea.vmem [#allocation2], 127
        %v1803 = vld [vmem:[%s1802] ss:$2 sm:$0x3]
        %v1804 = vmax.f32 %v1789, %v1793
        %v1805 = vmax.f32 %v1791, %v1795
        %v1806 = vmax.f32 %v1797, %v1801
        %v1807 = vmax.f32 %v1799, %v1803
        %v1808 = vmax.f32 %v1804, %v1806
        %v1809 = vmax.f32 %v1805, %v1807
        %v1810 = vpack.c.bf16 %v1808, %v1808
        %v1811 = vpack.c.bf16 %v1809, %v1809
        %v1813 = vshrl.u32 %v1810, 16
        %v1815 = vrot.slane %v1813, 5
        %v1816 = vshll.u32 %v1810, 16
        %v1818 = vrot.slane %v1816, 6
        %v1819 = vor.u32 %v1815, %v1818
        %v1820 = vrot.slane %v1819, 4
        %v1822 = vshrl.u32 %v1811, 16
        %v1824 = vrot.slane %v1822, 5
        %v1825 = vshll.u32 %v1811, 16
        %v1827 = vrot.slane %v1825, 6
        %v1828 = vor.u32 %v1824, %v1827
        %v1829 = vsel %vm1699, %v1820, %v1828
        %v1832 = vld [vmem:[#allocation3 + $0x10] sm:$0xc]
        %v1833 = vsel %vm1722, %v1819, %v1832
        %1834 = vst [vmem:[#allocation3 + $0x10] sm:$0xc] %v1833
        %v1835 = vld [vmem:[#allocation3 + $0x14] sm:$0xf]
        %v1836 = vsel %vm1728, %v1829, %v1835
        %1837 = vst [vmem:[#allocation3 + $0x14] sm:$0xf] %v1836
        %s1838 = scalar_lea.vmem [#allocation2], 132
        %v1839 = vld [vmem:[%s1838] ss:$2 sm:$0xff]
        %s1840 = scalar_lea.vmem [#allocation2], 148
        %v1841 = vld [vmem:[%s1840] ss:$2 sm:$0x3]
        %s1842 = scalar_lea.vmem [#allocation2], 133
        %v1843 = vld [vmem:[%s1842] ss:$2 sm:$0xff]
        %s1844 = scalar_lea.vmem [#allocation2], 149
        %v1845 = vld [vmem:[%s1844] ss:$2 sm:$0x3]
        %s1846 = scalar_lea.vmem [#allocation2], 154
        %v1847 = vld [vmem:[%s1846] ss:$2 sm:$0xff]
        %s1848 = scalar_lea.vmem [#allocation2], 170
        %v1849 = vld [vmem:[%s1848] ss:$2 sm:$0x3]
        %s1850 = scalar_lea.vmem [#allocation2], 155
        %v1851 = vld [vmem:[%s1850] ss:$2 sm:$0xff]
        %s1852 = scalar_lea.vmem [#allocation2], 171
        %v1853 = vld [vmem:[%s1852] ss:$2 sm:$0x3]
        %v1854 = vmax.f32 %v1839, %v1843
        %v1855 = vmax.f32 %v1841, %v1845
        %v1856 = vmax.f32 %v1847, %v1851
        %v1857 = vmax.f32 %v1849, %v1853
        %v1858 = vmax.f32 %v1854, %v1856
        %v1859 = vmax.f32 %v1855, %v1857
        %v1860 = vpack.c.bf16 %v1858, %v1858
        %v1861 = vpack.c.bf16 %v1859, %v1859
        %v1863 = vshrl.u32 %v1860, 16
        %v1865 = vrot.slane %v1863, 7
        %v1866 = vshll.u32 %v1860, 16
        %v1868 = vor.u32 %v1865, %v1866
        %v1869 = vrot.slane %v1865, 4
        %v1871 = vshrl.u32 %v1861, 16
        %v1873 = vrot.slane %v1871, 7
        %v1874 = vshll.u32 %v1861, 16
        %v1876 = vor.u32 %v1873, %v1874
        %v1877 = vsel %vm1758, %v1869, %v1876
        %v1880 = vld [vmem:[#allocation3 + $0x18] sm:$0xf]
        %v1881 = vsel %vm1778, %v1868, %v1880
        %1882 = vst [vmem:[#allocation3 + $0x18] sm:$0xf] %v1881
        %v1883 = vld [vmem:[#allocation3 + $0x1c] sm:$0x3]
        %v1884 = vsel %vm1784, %v1877, %v1883
        %1885 = vst [vmem:[#allocation3 + $0x1c] sm:$0x3] %v1884
        %v1886 = vld [vmem:[#allocation3] sm:$0xf]
        %v1887 = vld [vmem:[#allocation3 + $0x4] sm:$0xf]
        %v1888 = vld [vmem:[#allocation3 + $0x8] sm:$0xf]
        %v1889 = vld [vmem:[#allocation3 + $0xc] sm:$0xf]
        %v1890 = vld [vmem:[#allocation3 + $0x10] sm:$0xf]
        %v1891 = vld [vmem:[#allocation3 + $0x14] sm:$0xf]
        %v1892 = vld [vmem:[#allocation3 + $0x18] sm:$0x1]
        %v1893 = vld [vmem:[#allocation3] sm:$0xe]
        %v1900 = vunpack.c.l.b16 %v1886
        %v1901 = vunpack.c.l.b16 %v1887
        %v1902 = vunpack.c.l.b16 %v1888
        %v1903 = vunpack.c.l.b16 %v1889
        %v1904 = vunpack.c.l.b16 %v1890
        %v1905 = vunpack.c.l.b16 %v1891
        %v1906 = vpack.c.b16 %v1901, %v1900
        %v1907 = vpack.c.b16 %v1903, %v1902
        %v1908 = vpack.c.b16 %v1905, %v1904
        %v1910 = vunpack.c.l.b16 %v1892
        %v1911 = vpack.c.b16 %v1910, %v1910
        %v1913 = vshrl.u32 %v1906, 16
        %v1915 = vshll.u32 %v1906, 16
        %v1917 = vrot.slane %v1915, 1
        %v1918 = vor.u32 %v1913, %v1917
        %v1920 = vshll.u32 %v1907, 16
        %v1922 = vrot.slane %v1920, 1
        %v1923 = vsel %vm428, %v1918, %v1922
        %v1924 = vshrl.u32 %v1907, 16
        %v1926 = vor.u32 %v1924, %v1922
        %v1928 = vshll.u32 %v1908, 16
        %v1930 = vrot.slane %v1928, 1
        %v1931 = vsel %vm428, %v1926, %v1930
        %v1932 = vshrl.u32 %v1908, 16
        %v1934 = vor.u32 %v1932, %v1930
        %v1936 = vshll.u32 %v1911, 16
        %v1938 = vrot.slane %v1936, 1
        %v1939 = vsel %vm428, %v1934, %v1938
        %1940 = vrot.lane.b32.xlu0 %v1923, 64
        %v1941 = vpop.permute.xlu0 %1940
        %1942 = vrot.lane.b32.xlu0 %v1931, 64
        %v1943 = vpop.permute.xlu0 %1942
        %1944 = vrot.lane.b32.xlu0 %v1939, 64
        %v1945 = vpop.permute.xlu0 %1944
        %v1947 = vunpack.c.l.b16 %v1893
        %v1948 = vpack.c.b16 %v1901, %v1947
        %v1949 = vrot.slane %v1948, 1
        %v1950 = vrot.slane %v1907, 1
        %v1951 = vsel %vm546, %v1949, %v1950
        %v1952 = vrot.slane %v1908, 1
        %v1953 = vsel %vm546, %v1950, %v1952
        %v1954 = vrot.slane %v1911, 1
        %v1955 = vsel %vm546, %v1952, %v1954
        %v1957 = vsel %vm615, %v1906, %v1941
        %v1960 = vsel %vm615, %v1907, %v1943
        %v1963 = vsel %vm615, %v1908, %v1945
        %v1965 = vld [vmem:[%s3] sm:$0xf]
        %v1966 = vld [vmem:[%s3 + $0x4] sm:$0xf]
        %v1967 = vld [vmem:[%s3 + $0x8] sm:$0xf]
        %v1968 = vld [vmem:[%s3 + $0xc] sm:$0xf]
        %v1969 = vld [vmem:[%s3 + $0x10] sm:$0xf]
        %v1970 = vld [vmem:[%s3 + $0x14] sm:$0xf]
        %v1971 = vld [vmem:[%s3 + $0x18] sm:$0xf]
        %v1972 = vld [vmem:[%s3 + $0x1c] sm:$0xf]
        %v1973 = vld [vmem:[%s3 + $0x20] sm:$0xf]
        %v1974 = vld [vmem:[%s3 + $0x24] sm:$0xf]
        %v1975 = vld [vmem:[%s3 + $0x28] sm:$0xf]
        %v1976 = vld [vmem:[%s3 + $0x2c] sm:$0xf]
        %v1977 = vld [vmem:[%s3 + $0x30] sm:$0xf]
        %v1978 = vld [vmem:[%s3 + $0x34] sm:$0xf]
        %v1979 = vld [vmem:[%s3 + $0x38] sm:$0xf]
        %v1980 = vld [vmem:[%s3 + $0x3c] sm:$0xf]
        %v1981 = vld [vmem:[%s3 + $0x40] sm:$0xf]
        %v1982 = vld [vmem:[%s3 + $0x44] sm:$0xf]
        %v1983 = vld [vmem:[%s3 + $0x48] sm:$0xf]
        %v1984 = vld [vmem:[%s3 + $0x4c] sm:$0xf]
        %v1985 = vld [vmem:[%s3 + $0x50] sm:$0xf]
        %v1986 = vld [vmem:[%s3 + $0x54] sm:$0xf]
        %v1987 = vld [vmem:[%s3 + $0x58] sm:$0xf]
        %v1988 = vld [vmem:[%s3 + $0x5c] sm:$0xf]
        %v1989 = vld [vmem:[#allocation3 + $0x4] sm:$0xc]
        %v1990 = vld [vmem:[#allocation3 + $0x18] sm:$0xf]
        %v1991 = vld [vmem:[#allocation3 + $0x1c] sm:$0x3]
        %v1992 = vld [vmem:[#allocation3 + $0x1c] sm:$0x7]
        %v1993 = vld [vmem:[#allocation3 + $0x4] sm:$0x8]
        %v1997 = vunpack.c.l.b16 %v1989
        %v1998 = vunpack.c.l.b16 %v1990
        %v1999 = vunpack.c.l.b16 %v1991
        %v2000 = vpack.c.b16 %v1902, %v1997
        %v2001 = vpack.c.b16 %v1904, %v1903
        %v2002 = vpack.c.b16 %v1998, %v1905
        %v2003 = vpack.c.b16 %v1999, %v1999
        %v2005 = vunpack.c.l.b16 %v1992
        %v2006 = vpack.c.b16 %v2005, %v2005
        %v2008 = vshrl.u32 %v2000, 16
        %v2010 = vshll.u32 %v2000, 16
        %v2012 = vrot.slane %v2010, 1
        %v2013 = vor.u32 %v2008, %v2012
        %v2015 = vshll.u32 %v2001, 16
        %v2017 = vrot.slane %v2015, 1
        %v2018 = vsel %vm428, %v2013, %v2017
        %v2019 = vshrl.u32 %v2001, 16
        %v2021 = vor.u32 %v2019, %v2017
        %v2023 = vshll.u32 %v2002, 16
        %v2025 = vrot.slane %v2023, 1
        %v2026 = vsel %vm428, %v2021, %v2025
        %v2027 = vshrl.u32 %v2002, 16
        %v2029 = vor.u32 %v2027, %v2025
        %v2031 = vshll.u32 %v2006, 16
        %v2033 = vrot.slane %v2031, 1
        %v2034 = vsel %vm428, %v2029, %v2033
        %v2035 = vshrl.u32 %v2006, 16
        %v2037 = vor.u32 %v2035, %v2033
        %2038 = vrot.lane.b32.xlu0 %v2018, 64
        %v2039 = vpop.permute.xlu0 %2038
        %2040 = vrot.lane.b32.xlu0 %v2026, 64
        %v2041 = vpop.permute.xlu0 %2040
        %2042 = vrot.lane.b32.xlu0 %v2034, 64
        %v2043 = vpop.permute.xlu0 %2042
        %2044 = vrot.lane.b32.xlu0 %v2037, 64
        %v2045 = vpop.permute.xlu0 %2044
        %v2047 = vunpack.c.l.b16 %v1993
        %v2048 = vpack.c.b16 %v1902, %v2047
        %v2049 = vrot.slane %v2048, 1
        %v2050 = vrot.slane %v2001, 1
        %v2051 = vsel %vm546, %v2049, %v2050
        %v2052 = vrot.slane %v2002, 1
        %v2053 = vsel %vm546, %v2050, %v2052
        %v2054 = vrot.slane %v2006, 1
        %v2055 = vsel %vm546, %v2052, %v2054
        %v2057 = vsel %vm615, %v2000, %v2039
        %v2059 = vsel %vm615, %v2001, %v2041
        %v2061 = vsel %vm615, %v2002, %v2043
        %v2064 = vsel %vm615, %v2003, %v2045
        %s2065 = scalar_lea.vmem %s3, 96
        %v2066 = vld [vmem:[%s2065] sm:$0xf]
        %v2067 = vld [vmem:[%s2065 + $0x4] sm:$0xf]
        %v2068 = vld [vmem:[%s2065 + $0x8] sm:$0xf]
        %v2069 = vld [vmem:[%s2065 + $0xc] sm:$0xf]
        %v2070 = vld [vmem:[%s2065 + $0x10] sm:$0xf]
        %v2071 = vld [vmem:[%s2065 + $0x14] sm:$0xf]
        %v2072 = vld [vmem:[%s2065 + $0x18] sm:$0xf]
        %v2073 = vld [vmem:[%s2065 + $0x1c] sm:$0xf]
        %v2074 = vld [vmem:[%s2065 + $0x20] sm:$0xf]
        %v2075 = vld [vmem:[%s2065 + $0x24] sm:$0xf]
        %v2076 = vld [vmem:[%s2065 + $0x28] sm:$0xf]
        %v2077 = vld [vmem:[%s2065 + $0x2c] sm:$0xf]
        %v2078 = vld [vmem:[%s2065 + $0x30] sm:$0xf]
        %v2079 = vld [vmem:[%s2065 + $0x34] sm:$0xf]
        %v2080 = vld [vmem:[%s2065 + $0x38] sm:$0xf]
        %v2081 = vld [vmem:[%s2065 + $0x3c] sm:$0xf]
        %v2082 = vld [vmem:[%s2065 + $0x40] sm:$0xf]
        %v2083 = vld [vmem:[%s2065 + $0x44] sm:$0xf]
        %v2084 = vld [vmem:[%s2065 + $0x48] sm:$0xf]
        %v2085 = vld [vmem:[%s2065 + $0x4c] sm:$0xf]
        %v2086 = vld [vmem:[%s2065 + $0x50] sm:$0xf]
        %v2087 = vld [vmem:[%s2065 + $0x54] sm:$0xf]
        %v2088 = vld [vmem:[%s2065 + $0x58] sm:$0xf]
        %v2089 = vld [vmem:[%s2065 + $0x5c] sm:$0xf]
        %v2094 = vrot.slane %v2057, 2
        %v2095 = vrot.slane %v2059, 2
        %v2096 = vsel %vm1425, %v2094, %v2095
        %v2097 = vrot.slane %v2051, 2
        %v2098 = vrot.slane %v2053, 2
        %v2099 = vsel %vm1425, %v2097, %v2098
        %v2100 = vrot.slane %v2061, 2
        %v2101 = vsel %vm1425, %v2095, %v2100
        %v2102 = vrot.slane %v2055, 2
        %v2103 = vsel %vm1425, %v2098, %v2102
        %v2104 = vrot.slane %v2064, 2
        %v2105 = vsel %vm1425, %v2100, %v2104
        %v2106 = vrot.slane %v2054, 2
        %v2107 = vsel %vm1425, %v2102, %v2106
        %v2135 = vunpack.c.l.b16 %v2066
        %v2136 = vunpack.c.l.b16 %v2067
        %v2137 = vunpack.c.l.b16 %v2068
        %v2138 = vunpack.c.l.b16 %v2069
        %v2139 = vunpack.c.l.b16 %v2070
        %v2140 = vunpack.c.l.b16 %v2071
        %v2141 = vunpack.c.l.b16 %v2072
        %v2142 = vunpack.c.l.b16 %v2073
        %v2143 = vunpack.c.l.b16 %v2074
        %v2144 = vunpack.c.l.b16 %v2075
        %v2145 = vunpack.c.l.b16 %v2076
        %v2146 = vunpack.c.l.b16 %v2077
        %v2147 = vunpack.c.l.b16 %v2078
        %v2148 = vunpack.c.l.b16 %v2079
        %v2149 = vunpack.c.l.b16 %v2080
        %v2150 = vunpack.c.l.b16 %v2081
        %v2151 = vunpack.c.l.b16 %v2082
        %v2152 = vunpack.c.l.b16 %v2083
        %v2153 = vunpack.c.l.b16 %v2084
        %v2154 = vunpack.c.l.b16 %v2085
        %v2155 = vunpack.c.l.b16 %v2086
        %v2156 = vunpack.c.l.b16 %v2087
        %v2157 = vunpack.c.l.b16 %v2088
        %v2158 = vunpack.c.l.b16 %v2089
        %v2159 = vpack.c.b16 %v2136, %v2135
        %v2160 = vpack.c.b16 %v2138, %v2137
        %v2161 = vpack.c.b16 %v2140, %v2139
        %v2162 = vpack.c.b16 %v2142, %v2141
        %v2163 = vpack.c.b16 %v2144, %v2143
        %v2164 = vpack.c.b16 %v2146, %v2145
        %v2165 = vpack.c.b16 %v2148, %v2147
        %v2166 = vpack.c.b16 %v2150, %v2149
        %v2167 = vpack.c.b16 %v2152, %v2151
        %v2168 = vpack.c.b16 %v2154, %v2153
        %v2169 = vpack.c.b16 %v2156, %v2155
        %v2170 = vpack.c.b16 %v2158, %v2157
        %v2184 = vsel %vm615, %v2099, 0
        %v2187 = vsel %vm615, %v2103, 0
        %v2190 = vsel %vm615, %v2107, 0
        %2192 = vmatpush.bf16.msra.mxu0 %v2166
        %2193 = vmatpush.bf16.msra.mxu0 %v2165
        %2194 = vmatpush.bf16.msra.mxu0 %v2164
        %2195 = vmatpush.bf16.msra.mxu0 %v2163
        %2196 = vmatpush.bf16.msra.mxu0 %v2162
        %2197 = vmatpush.bf16.msra.mxu0 %v2161
        %2198 = vmatpush.bf16.msra.mxu0 %v2160
        %2199 = vmatpush.bf16.msra.mxu0 %v2159
        %2200 = vmatmul.bf16.gmra.mxu0 %v2096
        %v2201 = vpop.f32.mrf.mxu0
        %v2202 = vadd.f32 0.0, %v2201
        %v2203 = vpop.f32.mrf.mxu0
        %v2204 = vadd.f32 0.0, %v2203
        %2205 = vmatmul.bf16.gmra.mxu0 %v2101
        %v2206 = vpop.f32.mrf.mxu0
        %v2207 = vadd.f32 0.0, %v2206
        %v2208 = vpop.f32.mrf.mxu0
        %v2209 = vadd.f32 0.0, %v2208
        %2210 = vmatmul.bf16.gmra.mxu0 %v2105
        %v2211 = vpop.f32.mrf.mxu0
        %v2212 = vadd.f32 0.0, %v2211
        %v2213 = vpop.f32.mrf.mxu0
        %v2214 = vadd.f32 0.0, %v2213
        %2215 = vdwg.mxu0
        %2216 = vmatpush.bf16.msra.mxu0 0
        %2217 = vmatpush.bf16.msra.mxu0 0
        %2218 = vmatpush.bf16.msra.mxu0 0
        %2219 = vmatpush.bf16.msra.mxu0 0
        %2220 = vmatpush.bf16.msra.mxu0 %v2170
        %2221 = vmatpush.bf16.msra.mxu0 %v2169
        %2222 = vmatpush.bf16.msra.mxu0 %v2168
        %2223 = vmatpush.bf16.msra.mxu0 %v2167
        %2224 = vmatmul.bf16.gmra.mxu0 %v2184
        %v2225 = vpop.f32.mrf.mxu0
        %v2226 = vadd.f32 %v2202, %v2225
        %v2227 = vpop.f32.mrf.mxu0
        %v2228 = vadd.f32 %v2204, %v2227
        %2229 = vmatmul.bf16.gmra.mxu0 %v2187
        %v2230 = vpop.f32.mrf.mxu0
        %v2231 = vadd.f32 %v2207, %v2230
        %v2232 = vpop.f32.mrf.mxu0
        %v2233 = vadd.f32 %v2209, %v2232
        %2234 = vmatmul.bf16.gmra.mxu0 %v2190
        %v2235 = vpop.f32.mrf.mxu0
        %v2236 = vadd.f32 %v2212, %v2235
        %v2237 = vpop.f32.mrf.mxu0
        %v2238 = vadd.f32 %v2214, %v2237
        %2239 = vdwg.mxu0
        %v2264 = vunpack.c.l.b16 %v1965
        %v2265 = vunpack.c.l.b16 %v1966
        %v2266 = vunpack.c.l.b16 %v1967
        %v2267 = vunpack.c.l.b16 %v1968
        %v2268 = vunpack.c.l.b16 %v1969
        %v2269 = vunpack.c.l.b16 %v1970
        %v2270 = vunpack.c.l.b16 %v1971
        %v2271 = vunpack.c.l.b16 %v1972
        %v2272 = vunpack.c.l.b16 %v1973
        %v2273 = vunpack.c.l.b16 %v1974
        %v2274 = vunpack.c.l.b16 %v1975
        %v2275 = vunpack.c.l.b16 %v1976
        %v2276 = vunpack.c.l.b16 %v1977
        %v2277 = vunpack.c.l.b16 %v1978
        %v2278 = vunpack.c.l.b16 %v1979
        %v2279 = vunpack.c.l.b16 %v1980
        %v2280 = vunpack.c.l.b16 %v1981
        %v2281 = vunpack.c.l.b16 %v1982
        %v2282 = vunpack.c.l.b16 %v1983
        %v2283 = vunpack.c.l.b16 %v1984
        %v2284 = vunpack.c.l.b16 %v1985
        %v2285 = vunpack.c.l.b16 %v1986
        %v2286 = vunpack.c.l.b16 %v1987
        %v2287 = vunpack.c.l.b16 %v1988
        %v2288 = vpack.c.b16 %v2265, %v2264
        %v2289 = vpack.c.b16 %v2267, %v2266
        %v2290 = vpack.c.b16 %v2269, %v2268
        %v2291 = vpack.c.b16 %v2271, %v2270
        %v2292 = vpack.c.b16 %v2273, %v2272
        %v2293 = vpack.c.b16 %v2275, %v2274
        %v2294 = vpack.c.b16 %v2277, %v2276
        %v2295 = vpack.c.b16 %v2279, %v2278
        %v2296 = vpack.c.b16 %v2281, %v2280
        %v2297 = vpack.c.b16 %v2283, %v2282
        %v2298 = vpack.c.b16 %v2285, %v2284
        %v2299 = vpack.c.b16 %v2287, %v2286
        %v2313 = vsel %vm615, %v1951, 0
        %v2316 = vsel %vm615, %v1953, 0
        %v2319 = vsel %vm615, %v1955, 0
        %2321 = vmatpush.bf16.msra.mxu0 %v2295
        %2322 = vmatpush.bf16.msra.mxu0 %v2294
        %2323 = vmatpush.bf16.msra.mxu0 %v2293
        %2324 = vmatpush.bf16.msra.mxu0 %v2292
        %2325 = vmatpush.bf16.msra.mxu0 %v2291
        %2326 = vmatpush.bf16.msra.mxu0 %v2290
        %2327 = vmatpush.bf16.msra.mxu0 %v2289
        %2328 = vmatpush.bf16.msra.mxu0 %v2288
        %2329 = vmatmul.bf16.gmra.mxu0 %v1957
        %v2330 = vpop.f32.mrf.mxu0
        %v2331 = vadd.f32 %v2226, %v2330
        %v2332 = vpop.f32.mrf.mxu0
        %v2333 = vadd.f32 %v2228, %v2332
        %2334 = vmatmul.bf16.gmra.mxu0 %v1960
        %v2335 = vpop.f32.mrf.mxu0
        %v2336 = vadd.f32 %v2231, %v2335
        %v2337 = vpop.f32.mrf.mxu0
        %v2338 = vadd.f32 %v2233, %v2337
        %2339 = vmatmul.bf16.gmra.mxu0 %v1963
        %v2340 = vpop.f32.mrf.mxu0
        %v2341 = vadd.f32 %v2236, %v2340
        %v2342 = vpop.f32.mrf.mxu0
        %v2343 = vadd.f32 %v2238, %v2342
        %2344 = vdwg.mxu0
        %2345 = vmatpush.bf16.msra.mxu0 0
        %2346 = vmatpush.bf16.msra.mxu0 0
        %2347 = vmatpush.bf16.msra.mxu0 0
        %2348 = vmatpush.bf16.msra.mxu0 0
        %2349 = vmatpush.bf16.msra.mxu0 %v2299
        %2350 = vmatpush.bf16.msra.mxu0 %v2298
        %2351 = vmatpush.bf16.msra.mxu0 %v2297
        %2352 = vmatpush.bf16.msra.mxu0 %v2296
        %2353 = vmatmul.bf16.gmra.mxu0 %v2313
        %v2354 = vpop.f32.mrf.mxu0
        %v2355 = vadd.f32 %v2331, %v2354
        %v2356 = vpop.f32.mrf.mxu0
        %v2357 = vadd.f32 %v2333, %v2356
        %2358 = vmatmul.bf16.gmra.mxu0 %v2316
        %v2359 = vpop.f32.mrf.mxu0
        %v2360 = vadd.f32 %v2336, %v2359
        %v2361 = vpop.f32.mrf.mxu0
        %v2362 = vadd.f32 %v2338, %v2361
        %2363 = vmatmul.bf16.gmra.mxu0 %v2319
        %v2364 = vpop.f32.mrf.mxu0
        %v2365 = vadd.f32 %v2341, %v2364
        %v2366 = vpop.f32.mrf.mxu0
        %v2367 = vadd.f32 %v2343, %v2366
        %2368 = vdwg.mxu0
        %v2369 = vld [vmem:[#allocation3 + $0xc] sm:$0xf]
        %v2370 = vld [vmem:[#allocation3 + $0x10] sm:$0xf]
        %v2371 = vld [vmem:[#allocation3 + $0x14] sm:$0xf]
        %v2372 = vld [vmem:[#allocation3 + $0x18] sm:$0xf]
        %v2373 = vld [vmem:[#allocation3 + $0x1c] sm:$0xf]
        %v2374 = vld [vmem:[#allocation3 + $0x20] sm:$0xf]
        %v2375 = vld [vmem:[#allocation3 + $0x24] sm:$0x1]
        %v2376 = vld [vmem:[#allocation3 + $0xc] sm:$0xe]
        %v2383 = vunpack.c.l.b16 %v2369
        %v2384 = vunpack.c.l.b16 %v2370
        %v2385 = vunpack.c.l.b16 %v2371
        %v2386 = vunpack.c.l.b16 %v2372
        %v2387 = vunpack.c.l.b16 %v2373
        %v2388 = vunpack.c.l.b16 %v2374
        %v2389 = vpack.c.b16 %v2384, %v2383
        %v2390 = vpack.c.b16 %v2386, %v2385
        %v2391 = vpack.c.b16 %v2388, %v2387
        %v2393 = vunpack.c.l.b16 %v2375
        %v2394 = vpack.c.b16 %v2393, %v2393
        %v2396 = vshrl.u32 %v2389, 16
        %v2398 = vshll.u32 %v2389, 16
        %v2400 = vrot.slane %v2398, 1
        %v2401 = vor.u32 %v2396, %v2400
        %v2403 = vshll.u32 %v2390, 16
        %v2405 = vrot.slane %v2403, 1
        %v2406 = vsel %vm428, %v2401, %v2405
        %v2407 = vshrl.u32 %v2390, 16
        %v2409 = vor.u32 %v2407, %v2405
        %v2411 = vshll.u32 %v2391, 16
        %v2413 = vrot.slane %v2411, 1
        %v2414 = vsel %vm428, %v2409, %v2413
        %v2415 = vshrl.u32 %v2391, 16
        %v2417 = vor.u32 %v2415, %v2413
        %v2419 = vshll.u32 %v2394, 16
        %v2421 = vrot.slane %v2419, 1
        %v2422 = vsel %vm428, %v2417, %v2421
        %2423 = vrot.lane.b32.xlu0 %v2406, 64
        %v2424 = vpop.permute.xlu0 %2423
        %2425 = vrot.lane.b32.xlu0 %v2414, 64
        %v2426 = vpop.permute.xlu0 %2425
        %2427 = vrot.lane.b32.xlu0 %v2422, 64
        %v2428 = vpop.permute.xlu0 %2427
        %v2430 = vunpack.c.l.b16 %v2376
        %v2431 = vpack.c.b16 %v2384, %v2430
        %v2432 = vrot.slane %v2431, 1
        %v2433 = vrot.slane %v2390, 1
        %v2434 = vsel %vm546, %v2432, %v2433
        %v2435 = vrot.slane %v2391, 1
        %v2436 = vsel %vm546, %v2433, %v2435
        %v2437 = vrot.slane %v2394, 1
        %v2438 = vsel %vm546, %v2435, %v2437
        %v2440 = vsel %vm615, %v2389, %v2424
        %v2443 = vsel %vm615, %v2390, %v2426
        %v2446 = vsel %vm615, %v2391, %v2428
        %s2448 = scalar_lea.vmem %s3, 192
        %v2449 = vld [vmem:[%s2448] sm:$0xf]
        %v2450 = vld [vmem:[%s2448 + $0x4] sm:$0xf]
        %v2451 = vld [vmem:[%s2448 + $0x8] sm:$0xf]
        %v2452 = vld [vmem:[%s2448 + $0xc] sm:$0xf]
        %v2453 = vld [vmem:[%s2448 + $0x10] sm:$0xf]
        %v2454 = vld [vmem:[%s2448 + $0x14] sm:$0xf]
        %v2455 = vld [vmem:[%s2448 + $0x18] sm:$0xf]
        %v2456 = vld [vmem:[%s2448 + $0x1c] sm:$0xf]
        %v2457 = vld [vmem:[%s2448 + $0x20] sm:$0xf]
        %v2458 = vld [vmem:[%s2448 + $0x24] sm:$0xf]
        %v2459 = vld [vmem:[%s2448 + $0x28] sm:$0xf]
        %v2460 = vld [vmem:[%s2448 + $0x2c] sm:$0xf]
        %v2461 = vld [vmem:[%s2448 + $0x30] sm:$0xf]
        %v2462 = vld [vmem:[%s2448 + $0x34] sm:$0xf]
        %v2463 = vld [vmem:[%s2448 + $0x38] sm:$0xf]
        %v2464 = vld [vmem:[%s2448 + $0x3c] sm:$0xf]
        %v2465 = vld [vmem:[%s2448 + $0x40] sm:$0xf]
        %v2466 = vld [vmem:[%s2448 + $0x44] sm:$0xf]
        %v2467 = vld [vmem:[%s2448 + $0x48] sm:$0xf]
        %v2468 = vld [vmem:[%s2448 + $0x4c] sm:$0xf]
        %v2469 = vld [vmem:[%s2448 + $0x50] sm:$0xf]
        %v2470 = vld [vmem:[%s2448 + $0x54] sm:$0xf]
        %v2471 = vld [vmem:[%s2448 + $0x58] sm:$0xf]
        %v2472 = vld [vmem:[%s2448 + $0x5c] sm:$0xf]
        %v2497 = vunpack.c.l.b16 %v2449
        %v2498 = vunpack.c.l.b16 %v2450
        %v2499 = vunpack.c.l.b16 %v2451
        %v2500 = vunpack.c.l.b16 %v2452
        %v2501 = vunpack.c.l.b16 %v2453
        %v2502 = vunpack.c.l.b16 %v2454
        %v2503 = vunpack.c.l.b16 %v2455
        %v2504 = vunpack.c.l.b16 %v2456
        %v2505 = vunpack.c.l.b16 %v2457
        %v2506 = vunpack.c.l.b16 %v2458
        %v2507 = vunpack.c.l.b16 %v2459
        %v2508 = vunpack.c.l.b16 %v2460
        %v2509 = vunpack.c.l.b16 %v2461
        %v2510 = vunpack.c.l.b16 %v2462
        %v2511 = vunpack.c.l.b16 %v2463
        %v2512 = vunpack.c.l.b16 %v2464
        %v2513 = vunpack.c.l.b16 %v2465
        %v2514 = vunpack.c.l.b16 %v2466
        %v2515 = vunpack.c.l.b16 %v2467
        %v2516 = vunpack.c.l.b16 %v2468
        %v2517 = vunpack.c.l.b16 %v2469
        %v2518 = vunpack.c.l.b16 %v2470
        %v2519 = vunpack.c.l.b16 %v2471
        %v2520 = vunpack.c.l.b16 %v2472
        %v2521 = vpack.c.b16 %v2498, %v2497
        %v2522 = vpack.c.b16 %v2500, %v2499
        %v2523 = vpack.c.b16 %v2502, %v2501
        %v2524 = vpack.c.b16 %v2504, %v2503
        %v2525 = vpack.c.b16 %v2506, %v2505
        %v2526 = vpack.c.b16 %v2508, %v2507
        %v2527 = vpack.c.b16 %v2510, %v2509
        %v2528 = vpack.c.b16 %v2512, %v2511
        %v2529 = vpack.c.b16 %v2514, %v2513
        %v2530 = vpack.c.b16 %v2516, %v2515
        %v2531 = vpack.c.b16 %v2518, %v2517
        %v2532 = vpack.c.b16 %v2520, %v2519
        %v2546 = vsel %vm615, %v2434, 0
        %v2549 = vsel %vm615, %v2436, 0
        %v2552 = vsel %vm615, %v2438, 0
        %2554 = vmatpush.bf16.msra.mxu0 %v2528
        %2555 = vmatpush.bf16.msra.mxu0 %v2527
        %2556 = vmatpush.bf16.msra.mxu0 %v2526
        %2557 = vmatpush.bf16.msra.mxu0 %v2525
        %2558 = vmatpush.bf16.msra.mxu0 %v2524
        %2559 = vmatpush.bf16.msra.mxu0 %v2523
        %2560 = vmatpush.bf16.msra.mxu0 %v2522
        %2561 = vmatpush.bf16.msra.mxu0 %v2521
        %2562 = vmatmul.bf16.gmra.mxu0 %v2440
        %v2563 = vpop.f32.mrf.mxu0
        %v2564 = vadd.f32 0.0, %v2563
        %v2565 = vpop.f32.mrf.mxu0
        %v2566 = vadd.f32 0.0, %v2565
        %2567 = vmatmul.bf16.gmra.mxu0 %v2443
        %v2568 = vpop.f32.mrf.mxu0
        %v2569 = vadd.f32 0.0, %v2568
        %v2570 = vpop.f32.mrf.mxu0
        %v2571 = vadd.f32 0.0, %v2570
        %2572 = vmatmul.bf16.gmra.mxu0 %v2446
        %v2573 = vpop.f32.mrf.mxu0
        %v2574 = vadd.f32 0.0, %v2573
        %v2575 = vpop.f32.mrf.mxu0
        %v2576 = vadd.f32 0.0, %v2575
        %2577 = vdwg.mxu0
        %2578 = vmatpush.bf16.msra.mxu0 0
        %2579 = vmatpush.bf16.msra.mxu0 0
        %2580 = vmatpush.bf16.msra.mxu0 0
        %2581 = vmatpush.bf16.msra.mxu0 0
        %2582 = vmatpush.bf16.msra.mxu0 %v2532
        %2583 = vmatpush.bf16.msra.mxu0 %v2531
        %2584 = vmatpush.bf16.msra.mxu0 %v2530
        %2585 = vmatpush.bf16.msra.mxu0 %v2529
        %2586 = vmatmul.bf16.gmra.mxu0 %v2546
        %v2587 = vpop.f32.mrf.mxu0
        %v2588 = vadd.f32 %v2564, %v2587
        %v2589 = vpop.f32.mrf.mxu0
        %v2590 = vadd.f32 %v2566, %v2589
        %2591 = vmatmul.bf16.gmra.mxu0 %v2549
        %v2592 = vpop.f32.mrf.mxu0
        %v2593 = vadd.f32 %v2569, %v2592
        %v2594 = vpop.f32.mrf.mxu0
        %v2595 = vadd.f32 %v2571, %v2594
        %2596 = vmatmul.bf16.gmra.mxu0 %v2552
        %v2597 = vpop.f32.mrf.mxu0
        %v2598 = vadd.f32 %v2574, %v2597
        %v2599 = vpop.f32.mrf.mxu0
        %v2600 = vadd.f32 %v2576, %v2599
        %2601 = vdwg.mxu0
        %v2602 = vadd.f32 %v2355, %v2588
        %v2603 = vadd.f32 %v2357, %v2590
        %v2604 = vadd.f32 %v2360, %v2593
        %v2605 = vadd.f32 %v2362, %v2595
        %v2606 = vadd.f32 %v2365, %v2598
        %v2607 = vadd.f32 %v2367, %v2600
        %v2608 = vld [vmem:[%s4] sm:$0x1]
        %v2610 = vperm.slane %v2608, 0
        %v2612 = vadd.f32 %v2602, %v2610
        %v2613 = vadd.f32 %v2603, %v2610
        %v2614 = vadd.f32 %v2604, %v2610
        %v2615 = vadd.f32 %v2605, %v2610
        %v2616 = vadd.f32 %v2606, %v2610
        %v2617 = vadd.f32 %v2607, %v2610
        %v2618 = vmax.f32 %v2612, 0.0
        %v2619 = vmax.f32 %v2613, 0.0
        %v2620 = vmax.f32 %v2614, 0.0
        %v2621 = vmax.f32 %v2615, 0.0
        %v2622 = vmax.f32 %v2616, 0.0
        %v2623 = vmax.f32 %v2617, 0.0
        %2624 = vst [vmem:[#allocation4] sm:$0xff] %v2618
        %2625 = vst [vmem:[#allocation4 + $0x8] sm:$0xff] %v2619
        %2626 = vst [vmem:[#allocation4 + $0x10] sm:$0xff] %v2620
        %2627 = vst [vmem:[#allocation4 + $0x18] sm:$0xff] %v2621
        %2628 = vst [vmem:[#allocation4 + $0x20] sm:$0xff] %v2622
        %2629 = vst [vmem:[#allocation4 + $0x28] sm:$0xff] %v2623
        %v2630 = vld [vmem:[#allocation4] ss:$2 sm:$0x1f]
        %s2631 = scalar_lea.vmem [#allocation4], 1
        %v2632 = vld [vmem:[%s2631] ss:$2 sm:$0x1f]
        %s2633 = scalar_lea.vmem [#allocation4], 12
        %v2634 = vld [vmem:[%s2633] ss:$2 sm:$0x1f]
        %s2635 = scalar_lea.vmem [#allocation4], 13
        %v2636 = vld [vmem:[%s2635] ss:$2 sm:$0x1f]
        %v2637 = vmax.f32 %v2630, %v2632
        %v2638 = vmax.f32 %v2634, %v2636
        %v2639 = vmax.f32 %v2637, %v2638
        %v2640 = vpack.c.bf16 %v2639, %v2639
        %vm2641 = vmand %vm712, %vm1697
        %v2642 = vld [vmem:[#allocation5 + $0x4] sm:$0x7]
        %v2643 = vsel %vm2641, %v2640, %v2642
        %2644 = vst [vmem:[#allocation5 + $0x4] sm:$0x7] %v2643
        %s2645 = scalar_lea.vmem [#allocation4], 24
        %v2646 = vld [vmem:[%s2645] ss:$2 sm:$0x1f]
        %s2647 = scalar_lea.vmem [#allocation4], 25
        %v2648 = vld [vmem:[%s2647] ss:$2 sm:$0x1f]
        %s2649 = scalar_lea.vmem [#allocation4], 36
        %v2650 = vld [vmem:[%s2649] ss:$2 sm:$0x1f]
        %s2651 = scalar_lea.vmem [#allocation4], 37
        %v2652 = vld [vmem:[%s2651] ss:$2 sm:$0x1f]
        %v2653 = vmax.f32 %v2646, %v2648
        %v2654 = vmax.f32 %v2650, %v2652
        %v2655 = vmax.f32 %v2653, %v2654
        %v2656 = vpack.c.bf16 %v2655, %v2655
        %v2658 = vshll.u32 %v2656, 16
        %v2660 = vrot.slane %v2658, 5
        %v2661 = vshrl.u32 %v2656, 16
        %v2663 = vrot.slane %v2661, 4
        %v2664 = vor.u32 %v2663, %v2660
        %v2665 = vrot.slane %v2664, 4
        %vm2668 = vcmask 1043459
        %vm2669 = vsmask.f32 7950
        %vm2670 = vmand %vm2668, %vm2669
        %v2671 = vld [vmem:[#allocation5 + $0x4] sm:$0x8]
        %v2672 = vsel %vm2670, %v2660, %v2671
        %2673 = vst [vmem:[#allocation5 + $0x4] sm:$0x8] %v2672
        %2674 = vst [vmem:[#allocation5 + $0x8] sm:$0x3] %v2665
        %v2675 = vld [vmem:[#allocation5] sm:$0xf]
        %v2676 = vld [vmem:[#allocation5 + $0x4] sm:$0x7]
        %v2677 = vld [vmem:[#allocation5 + $0x4] sm:$0xf]
        %v2678 = vld [vmem:[#allocation5] sm:$0xe]
        %v2681 = vunpack.c.l.b16 %v2675
        %v2682 = vunpack.c.l.b16 %v2676
        %v2683 = vpack.c.b16 %v2682, %v2681
        %v2686 = vunpack.c.l.b16 %v2677
        %v2687 = vpack.c.b16 %v2686, %v2681
        %v2689 = vshrl.u32 %v2687, 16
        %v2691 = vshll.u32 %v2687, 16
        %v2693 = vrot.slane %v2691, 1
        %v2694 = vor.u32 %v2689, %v2693
        %v2697 = vunpack.c.l.b16 %v2678
        %v2698 = vpack.c.b16 %v2686, %v2697
        %v2699 = vrot.slane %v2698, 1
        %v2701 = vld [vmem:[%s5] sm:$0xff]
        %v2702 = vld [vmem:[%s5 + $0x8] sm:$0xff]
        %v2703 = vld [vmem:[%s5 + $0x10] sm:$0xff]
        %v2704 = vld [vmem:[%s5 + $0x18] sm:$0xff]
        %v2705 = vld [vmem:[%s5 + $0x20] sm:$0xff]
        %v2706 = vld [vmem:[%s5 + $0x28] sm:$0xff]
        %v2707 = vld [vmem:[%s5 + $0x30] sm:$0xff]
        %v2708 = vld [vmem:[%s5 + $0x38] sm:$0xff]
        %v2709 = vld [vmem:[%s5 + $0x40] sm:$0xff]
        %v2710 = vld [vmem:[%s5 + $0x48] sm:$0xff]
        %v2711 = vld [vmem:[%s5 + $0x50] sm:$0xff]
        %v2712 = vld [vmem:[%s5 + $0x58] sm:$0xff]
        %v2713 = vld [vmem:[%s5 + $0x60] sm:$0xff]
        %v2714 = vld [vmem:[%s5 + $0x68] sm:$0xff]
        %v2715 = vld [vmem:[%s5 + $0x70] sm:$0xff]
        %v2716 = vld [vmem:[%s5 + $0x78] sm:$0xff]
        %v2717 = vld [vmem:[%s5 + $0x80] sm:$0xff]
        %v2718 = vld [vmem:[%s5 + $0x88] sm:$0xff]
        %v2719 = vld [vmem:[%s5 + $0x90] sm:$0xff]
        %v2720 = vld [vmem:[%s5 + $0x98] sm:$0xff]
        %v2721 = vld [vmem:[%s5 + $0xa0] sm:$0xff]
        %v2722 = vld [vmem:[%s5 + $0xa8] sm:$0xff]
        %v2723 = vld [vmem:[%s5 + $0xb0] sm:$0xff]
        %v2724 = vld [vmem:[%s5 + $0xb8] sm:$0xff]
        %v2725 = vld [vmem:[%s5 + $0xc0] sm:$0xff]
        %v2726 = vld [vmem:[%s5 + $0xc8] sm:$0xff]
        %v2727 = vld [vmem:[%s5 + $0xd0] sm:$0xff]
        %v2728 = vld [vmem:[%s5 + $0xd8] sm:$0xff]
        %v2729 = vld [vmem:[%s5 + $0xe0] sm:$0xff]
        %v2730 = vld [vmem:[%s5 + $0xe8] sm:$0xff]
        %v2731 = vld [vmem:[%s5 + $0xf0] sm:$0xff]
        %v2732 = vld [vmem:[%s5 + $0xf8] sm:$0xff]
        %v2733 = vld [vmem:[%s5 + $0x100] sm:$0xff]
        %v2734 = vld [vmem:[%s5 + $0x108] sm:$0xff]
        %v2735 = vld [vmem:[%s5 + $0x110] sm:$0xff]
        %v2736 = vld [vmem:[%s5 + $0x118] sm:$0xff]
        %v2737 = vld [vmem:[%s5 + $0x120] sm:$0xff]
        %v2738 = vld [vmem:[%s5 + $0x128] sm:$0xff]
        %v2739 = vld [vmem:[%s5 + $0x130] sm:$0xff]
        %v2740 = vld [vmem:[%s5 + $0x138] sm:$0xff]
        %v2741 = vld [vmem:[%s5 + $0x140] sm:$0xff]
        %v2742 = vld [vmem:[%s5 + $0x148] sm:$0xff]
        %v2743 = vld [vmem:[%s5 + $0x150] sm:$0xff]
        %v2744 = vld [vmem:[%s5 + $0x158] sm:$0xff]
        %v2745 = vld [vmem:[%s5 + $0x160] sm:$0xff]
        %v2746 = vld [vmem:[%s5 + $0x168] sm:$0xff]
        %v2747 = vld [vmem:[%s5 + $0x170] sm:$0xff]
        %v2748 = vld [vmem:[%s5 + $0x178] sm:$0xff]
        %v2749 = vld [vmem:[#allocation5] sm:$0x8]
        %v2750 = vld [vmem:[#allocation5 + $0x8] sm:$0x7]
        %v2751 = vld [vmem:[#allocation5 + $0x8] sm:$0xf]
        %v2754 = vunpack.c.l.b16 %v2749
        %v2755 = vunpack.c.l.b16 %v2750
        %v2756 = vpack.c.b16 %v2686, %v2754
        %v2757 = vpack.c.b16 %v2755, %v2755
        %v2758 = vpack.c.b16 %v2755, %v2686
        %v2760 = vshrl.u32 %v2758, 16
        %v2762 = vrot.slane %v2760, 4
        %v2763 = vshll.u32 %v2758, 16
        %v2765 = vrot.slane %v2763, 5
        %v2766 = vor.u32 %v2762, %v2765
        %v2768 = vunpack.c.l.b16 %v2751
        %v2769 = vpack.c.b16 %v2768, %v2686
        %v2770 = vrot.slane %v2769, 5
        %s2771 = scalar_lea.vmem %s5, 384
        %v2772 = vld [vmem:[%s2771] sm:$0xff]
        %v2773 = vld [vmem:[%s2771 + $0x8] sm:$0xff]
        %v2774 = vld [vmem:[%s2771 + $0x10] sm:$0xff]
        %v2775 = vld [vmem:[%s2771 + $0x18] sm:$0xff]
        %v2776 = vld [vmem:[%s2771 + $0x20] sm:$0xff]
        %v2777 = vld [vmem:[%s2771 + $0x28] sm:$0xff]
        %v2778 = vld [vmem:[%s2771 + $0x30] sm:$0xff]
        %v2779 = vld [vmem:[%s2771 + $0x38] sm:$0xff]
        %v2780 = vld [vmem:[%s2771 + $0x40] sm:$0xff]
        %v2781 = vld [vmem:[%s2771 + $0x48] sm:$0xff]
        %v2782 = vld [vmem:[%s2771 + $0x50] sm:$0xff]
        %v2783 = vld [vmem:[%s2771 + $0x58] sm:$0xff]
        %v2784 = vld [vmem:[%s2771 + $0x60] sm:$0xff]
        %v2785 = vld [vmem:[%s2771 + $0x68] sm:$0xff]
        %v2786 = vld [vmem:[%s2771 + $0x70] sm:$0xff]
        %v2787 = vld [vmem:[%s2771 + $0x78] sm:$0xff]
        %v2788 = vld [vmem:[%s2771 + $0x80] sm:$0xff]
        %v2789 = vld [vmem:[%s2771 + $0x88] sm:$0xff]
        %v2790 = vld [vmem:[%s2771 + $0x90] sm:$0xff]
        %v2791 = vld [vmem:[%s2771 + $0x98] sm:$0xff]
        %v2792 = vld [vmem:[%s2771 + $0xa0] sm:$0xff]
        %v2793 = vld [vmem:[%s2771 + $0xa8] sm:$0xff]
        %v2794 = vld [vmem:[%s2771 + $0xb0] sm:$0xff]
        %v2795 = vld [vmem:[%s2771 + $0xb8] sm:$0xff]
        %v2796 = vld [vmem:[%s2771 + $0xc0] sm:$0xff]
        %v2797 = vld [vmem:[%s2771 + $0xc8] sm:$0xff]
        %v2798 = vld [vmem:[%s2771 + $0xd0] sm:$0xff]
        %v2799 = vld [vmem:[%s2771 + $0xd8] sm:$0xff]
        %v2800 = vld [vmem:[%s2771 + $0xe0] sm:$0xff]
        %v2801 = vld [vmem:[%s2771 + $0xe8] sm:$0xff]
        %v2802 = vld [vmem:[%s2771 + $0xf0] sm:$0xff]
        %v2803 = vld [vmem:[%s2771 + $0xf8] sm:$0xff]
        %v2804 = vld [vmem:[%s2771 + $0x100] sm:$0xff]
        %v2805 = vld [vmem:[%s2771 + $0x108] sm:$0xff]
        %v2806 = vld [vmem:[%s2771 + $0x110] sm:$0xff]
        %v2807 = vld [vmem:[%s2771 + $0x118] sm:$0xff]
        %v2808 = vld [vmem:[%s2771 + $0x120] sm:$0xff]
        %v2809 = vld [vmem:[%s2771 + $0x128] sm:$0xff]
        %v2810 = vld [vmem:[%s2771 + $0x130] sm:$0xff]
        %v2811 = vld [vmem:[%s2771 + $0x138] sm:$0xff]
        %v2812 = vld [vmem:[%s2771 + $0x140] sm:$0xff]
        %v2813 = vld [vmem:[%s2771 + $0x148] sm:$0xff]
        %v2814 = vld [vmem:[%s2771 + $0x150] sm:$0xff]
        %v2815 = vld [vmem:[%s2771 + $0x158] sm:$0xff]
        %v2816 = vld [vmem:[%s2771 + $0x160] sm:$0xff]
        %v2817 = vld [vmem:[%s2771 + $0x168] sm:$0xff]
        %v2818 = vld [vmem:[%s2771 + $0x170] sm:$0xff]
        %v2819 = vld [vmem:[%s2771 + $0x178] sm:$0xff]
        %vm2820 = vsmask.f32 4352
        %v2822 = vshrl.u32 %v2756, 16
        %v2824 = vrot.slane %v2822, 3
        %v2825 = vshll.u32 %v2756, 16
        %v2827 = vrot.slane %v2825, 4
        %v2828 = vor.u32 %v2824, %v2827
        %v2830 = vshrl.u32 %v2757, 16
        %v2832 = vrot.slane %v2830, 3
        %v2833 = vshll.u32 %v2757, 16
        %v2835 = vrot.slane %v2833, 4
        %v2836 = vor.u32 %v2832, %v2835
        %v2837 = vsel %vm2820, %v2828, %v2836
        %v2839 = vshrl.u32 %v2766, 16
        %v2841 = vrot.slane %v2839, 3
        %v2842 = vshll.u32 %v2766, 16
        %v2844 = vrot.slane %v2842, 4
        %v2845 = vor.u32 %v2841, %v2844
        %v2846 = vsel %vm2820, %v2845, %v2845
        %v2848 = vshrl.u32 %v2770, 16
        %v2850 = vrot.slane %v2848, 3
        %v2851 = vshll.u32 %v2770, 16
        %v2853 = vrot.slane %v2851, 4
        %v2854 = vor.u32 %v2850, %v2853
        %v2855 = vsel %vm2820, %v2854, %v2854
        %v2907 = vunpack.c.l.b16 %v2772
        %v2908 = vunpack.c.h.b16 %v2772
        %v2909 = vunpack.c.l.b16 %v2773
        %v2910 = vunpack.c.h.b16 %v2773
        %v2911 = vunpack.c.l.b16 %v2774
        %v2912 = vunpack.c.h.b16 %v2774
        %v2913 = vunpack.c.l.b16 %v2775
        %v2914 = vunpack.c.h.b16 %v2775
        %v2915 = vunpack.c.l.b16 %v2776
        %v2916 = vunpack.c.h.b16 %v2776
        %v2917 = vunpack.c.l.b16 %v2777
        %v2918 = vunpack.c.h.b16 %v2777
        %v2919 = vunpack.c.l.b16 %v2778
        %v2920 = vunpack.c.h.b16 %v2778
        %v2921 = vunpack.c.l.b16 %v2779
        %v2922 = vunpack.c.h.b16 %v2779
        %v2923 = vunpack.c.l.b16 %v2780
        %v2924 = vunpack.c.h.b16 %v2780
        %v2925 = vunpack.c.l.b16 %v2781
        %v2926 = vunpack.c.h.b16 %v2781
        %v2927 = vunpack.c.l.b16 %v2782
        %v2928 = vunpack.c.h.b16 %v2782
        %v2929 = vunpack.c.l.b16 %v2783
        %v2930 = vunpack.c.h.b16 %v2783
        %v2931 = vunpack.c.l.b16 %v2784
        %v2932 = vunpack.c.h.b16 %v2784
        %v2933 = vunpack.c.l.b16 %v2785
        %v2934 = vunpack.c.h.b16 %v2785
        %v2935 = vunpack.c.l.b16 %v2786
        %v2936 = vunpack.c.h.b16 %v2786
        %v2937 = vunpack.c.l.b16 %v2787
        %v2938 = vunpack.c.h.b16 %v2787
        %v2939 = vunpack.c.l.b16 %v2788
        %v2940 = vunpack.c.h.b16 %v2788
        %v2941 = vunpack.c.l.b16 %v2789
        %v2942 = vunpack.c.h.b16 %v2789
        %v2943 = vunpack.c.l.b16 %v2790
        %v2944 = vunpack.c.h.b16 %v2790
        %v2945 = vunpack.c.l.b16 %v2791
        %v2946 = vunpack.c.h.b16 %v2791
        %v2947 = vunpack.c.l.b16 %v2792
        %v2948 = vunpack.c.h.b16 %v2792
        %v2949 = vunpack.c.l.b16 %v2793
        %v2950 = vunpack.c.h.b16 %v2793
        %v2951 = vunpack.c.l.b16 %v2794
        %v2952 = vunpack.c.h.b16 %v2794
        %v2953 = vunpack.c.l.b16 %v2795
        %v2954 = vunpack.c.h.b16 %v2795
        %v2955 = vunpack.c.l.b16 %v2796
        %v2956 = vunpack.c.h.b16 %v2796
        %v2957 = vunpack.c.l.b16 %v2797
        %v2958 = vunpack.c.h.b16 %v2797
        %v2959 = vunpack.c.l.b16 %v2798
        %v2960 = vunpack.c.h.b16 %v2798
        %v2961 = vunpack.c.l.b16 %v2799
        %v2962 = vunpack.c.h.b16 %v2799
        %v2963 = vunpack.c.l.b16 %v2800
        %v2964 = vunpack.c.h.b16 %v2800
        %v2965 = vunpack.c.l.b16 %v2801
        %v2966 = vunpack.c.h.b16 %v2801
        %v2967 = vunpack.c.l.b16 %v2802
        %v2968 = vunpack.c.h.b16 %v2802
        %v2969 = vunpack.c.l.b16 %v2803
        %v2970 = vunpack.c.h.b16 %v2803
        %v2971 = vunpack.c.l.b16 %v2804
        %v2972 = vunpack.c.h.b16 %v2804
        %v2973 = vunpack.c.l.b16 %v2805
        %v2974 = vunpack.c.h.b16 %v2805
        %v2975 = vunpack.c.l.b16 %v2806
        %v2976 = vunpack.c.h.b16 %v2806
        %v2977 = vunpack.c.l.b16 %v2807
        %v2978 = vunpack.c.h.b16 %v2807
        %v2979 = vunpack.c.l.b16 %v2808
        %v2980 = vunpack.c.h.b16 %v2808
        %v2981 = vunpack.c.l.b16 %v2809
        %v2982 = vunpack.c.h.b16 %v2809
        %v2983 = vunpack.c.l.b16 %v2810
        %v2984 = vunpack.c.h.b16 %v2810
        %v2985 = vunpack.c.l.b16 %v2811
        %v2986 = vunpack.c.h.b16 %v2811
        %v2987 = vunpack.c.l.b16 %v2812
        %v2988 = vunpack.c.h.b16 %v2812
        %v2989 = vunpack.c.l.b16 %v2813
        %v2990 = vunpack.c.h.b16 %v2813
        %v2991 = vunpack.c.l.b16 %v2814
        %v2992 = vunpack.c.h.b16 %v2814
        %v2993 = vunpack.c.l.b16 %v2815
        %v2994 = vunpack.c.h.b16 %v2815
        %v2995 = vunpack.c.l.b16 %v2816
        %v2996 = vunpack.c.h.b16 %v2816
        %v2997 = vunpack.c.l.b16 %v2817
        %v2998 = vunpack.c.h.b16 %v2817
        %v2999 = vunpack.c.l.b16 %v2818
        %v3000 = vunpack.c.h.b16 %v2818
        %v3001 = vunpack.c.l.b16 %v2819
        %v3002 = vunpack.c.h.b16 %v2819
        %v3003 = vpack.c.b16 %v2909, %v2907
        %v3004 = vpack.c.b16 %v2910, %v2908
        %v3005 = vpack.c.b16 %v2913, %v2911
        %v3006 = vpack.c.b16 %v2914, %v2912
        %v3007 = vpack.c.b16 %v2917, %v2915
        %v3008 = vpack.c.b16 %v2918, %v2916
        %v3009 = vpack.c.b16 %v2921, %v2919
        %v3010 = vpack.c.b16 %v2922, %v2920
        %v3011 = vpack.c.b16 %v2925, %v2923
        %v3012 = vpack.c.b16 %v2926, %v2924
        %v3013 = vpack.c.b16 %v2929, %v2927
        %v3014 = vpack.c.b16 %v2930, %v2928
        %v3015 = vpack.c.b16 %v2933, %v2931
        %v3016 = vpack.c.b16 %v2934, %v2932
        %v3017 = vpack.c.b16 %v2937, %v2935
        %v3018 = vpack.c.b16 %v2938, %v2936
        %v3019 = vpack.c.b16 %v2941, %v2939
        %v3020 = vpack.c.b16 %v2942, %v2940
        %v3021 = vpack.c.b16 %v2945, %v2943
        %v3022 = vpack.c.b16 %v2946, %v2944
        %v3023 = vpack.c.b16 %v2949, %v2947
        %v3024 = vpack.c.b16 %v2950, %v2948
        %v3025 = vpack.c.b16 %v2953, %v2951
        %v3026 = vpack.c.b16 %v2954, %v2952
        %v3027 = vpack.c.b16 %v2957, %v2955
        %v3028 = vpack.c.b16 %v2958, %v2956
        %v3029 = vpack.c.b16 %v2961, %v2959
        %v3030 = vpack.c.b16 %v2962, %v2960
        %v3031 = vpack.c.b16 %v2965, %v2963
        %v3032 = vpack.c.b16 %v2966, %v2964
        %v3033 = vpack.c.b16 %v2969, %v2967
        %v3034 = vpack.c.b16 %v2970, %v2968
        %v3035 = vpack.c.b16 %v2973, %v2971
        %v3036 = vpack.c.b16 %v2974, %v2972
        %v3037 = vpack.c.b16 %v2977, %v2975
        %v3038 = vpack.c.b16 %v2978, %v2976
        %v3039 = vpack.c.b16 %v2981, %v2979
        %v3040 = vpack.c.b16 %v2982, %v2980
        %v3041 = vpack.c.b16 %v2985, %v2983
        %v3042 = vpack.c.b16 %v2986, %v2984
        %v3043 = vpack.c.b16 %v2989, %v2987
        %v3044 = vpack.c.b16 %v2990, %v2988
        %v3045 = vpack.c.b16 %v2993, %v2991
        %v3046 = vpack.c.b16 %v2994, %v2992
        %v3047 = vpack.c.b16 %v2997, %v2995
        %v3048 = vpack.c.b16 %v2998, %v2996
        %v3049 = vpack.c.b16 %v3001, %v2999
        %v3050 = vpack.c.b16 %v3002, %v3000
        %3099 = vmatpush.bf16.msra.mxu0 %v3017
        %3100 = vmatpush.bf16.msra.mxu0 %v3015
        %3101 = vmatpush.bf16.msra.mxu0 %v3013
        %3102 = vmatpush.bf16.msra.mxu0 %v3011
        %3103 = vmatpush.bf16.msra.mxu0 %v3009
        %3104 = vmatpush.bf16.msra.mxu0 %v3007
        %3105 = vmatpush.bf16.msra.mxu0 %v3005
        %3106 = vmatpush.bf16.msra.mxu0 %v3003
        %3107 = vmatmul.bf16.gmra.mxu0 %v2837
        %v3108 = vpop.f32.mrf.mxu0
        %v3109 = vadd.f32 0.0, %v3108
        %v3110 = vpop.f32.mrf.mxu0
        %v3111 = vadd.f32 0.0, %v3110
        %3112 = vdwg.mxu0
        %3113 = vmatpush.bf16.msra.mxu0 %v3033
        %3114 = vmatpush.bf16.msra.mxu0 %v3031
        %3115 = vmatpush.bf16.msra.mxu0 %v3029
        %3116 = vmatpush.bf16.msra.mxu0 %v3027
        %3117 = vmatpush.bf16.msra.mxu0 %v3025
        %3118 = vmatpush.bf16.msra.mxu0 %v3023
        %3119 = vmatpush.bf16.msra.mxu0 %v3021
        %3120 = vmatpush.bf16.msra.mxu0 %v3019
        %3121 = vmatmul.bf16.gmra.mxu0 %v2846
        %v3122 = vpop.f32.mrf.mxu0
        %v3123 = vadd.f32 %v3109, %v3122
        %v3124 = vpop.f32.mrf.mxu0
        %v3125 = vadd.f32 %v3111, %v3124
        %3126 = vdwg.mxu0
        %3127 = vmatpush.bf16.msra.mxu0 %v3049
        %3128 = vmatpush.bf16.msra.mxu0 %v3047
        %3129 = vmatpush.bf16.msra.mxu0 %v3045
        %3130 = vmatpush.bf16.msra.mxu0 %v3043
        %3131 = vmatpush.bf16.msra.mxu0 %v3041
        %3132 = vmatpush.bf16.msra.mxu0 %v3039
        %3133 = vmatpush.bf16.msra.mxu0 %v3037
        %3134 = vmatpush.bf16.msra.mxu0 %v3035
        %3135 = vmatmul.bf16.gmra.mxu0 %v2855
        %v3136 = vpop.f32.mrf.mxu0
        %v3137 = vadd.f32 %v3123, %v3136
        %v3138 = vpop.f32.mrf.mxu0
        %v3139 = vadd.f32 %v3125, %v3138
        %3140 = vdwg.mxu0
        %3141 = vmatpush.bf16.msra.mxu0 %v3018
        %3142 = vmatpush.bf16.msra.mxu0 %v3016
        %3143 = vmatpush.bf16.msra.mxu0 %v3014
        %3144 = vmatpush.bf16.msra.mxu0 %v3012
        %3145 = vmatpush.bf16.msra.mxu0 %v3010
        %3146 = vmatpush.bf16.msra.mxu0 %v3008
        %3147 = vmatpush.bf16.msra.mxu0 %v3006
        %3148 = vmatpush.bf16.msra.mxu0 %v3004
        %3149 = vmatmul.bf16.gmra.mxu0 %v2837
        %v3150 = vpop.f32.mrf.mxu0
        %v3151 = vadd.f32 0.0, %v3150
        %v3152 = vpop.f32.mrf.mxu0
        %v3153 = vadd.f32 0.0, %v3152
        %3154 = vdwg.mxu0
        %3155 = vmatpush.bf16.msra.mxu0 %v3034
        %3156 = vmatpush.bf16.msra.mxu0 %v3032
        %3157 = vmatpush.bf16.msra.mxu0 %v3030
        %3158 = vmatpush.bf16.msra.mxu0 %v3028
        %3159 = vmatpush.bf16.msra.mxu0 %v3026
        %3160 = vmatpush.bf16.msra.mxu0 %v3024
        %3161 = vmatpush.bf16.msra.mxu0 %v3022
        %3162 = vmatpush.bf16.msra.mxu0 %v3020
        %3163 = vmatmul.bf16.gmra.mxu0 %v2846
        %v3164 = vpop.f32.mrf.mxu0
        %v3165 = vadd.f32 %v3151, %v3164
        %v3166 = vpop.f32.mrf.mxu0
        %v3167 = vadd.f32 %v3153, %v3166
        %3168 = vdwg.mxu0
        %3169 = vmatpush.bf16.msra.mxu0 %v3050
        %3170 = vmatpush.bf16.msra.mxu0 %v3048
        %3171 = vmatpush.bf16.msra.mxu0 %v3046
        %3172 = vmatpush.bf16.msra.mxu0 %v3044
        %3173 = vmatpush.bf16.msra.mxu0 %v3042
        %3174 = vmatpush.bf16.msra.mxu0 %v3040
        %3175 = vmatpush.bf16.msra.mxu0 %v3038
        %3176 = vmatpush.bf16.msra.mxu0 %v3036
        %3177 = vmatmul.bf16.gmra.mxu0 %v2855
        %v3178 = vpop.f32.mrf.mxu0
        %v3179 = vadd.f32 %v3165, %v3178
        %v3180 = vpop.f32.mrf.mxu0
        %v3181 = vadd.f32 %v3167, %v3180
        %3182 = vdwg.mxu0
        %v3231 = vunpack.c.l.b16 %v2701
        %v3232 = vunpack.c.h.b16 %v2701
        %v3233 = vunpack.c.l.b16 %v2702
        %v3234 = vunpack.c.h.b16 %v2702
        %v3235 = vunpack.c.l.b16 %v2703
        %v3236 = vunpack.c.h.b16 %v2703
        %v3237 = vunpack.c.l.b16 %v2704
        %v3238 = vunpack.c.h.b16 %v2704
        %v3239 = vunpack.c.l.b16 %v2705
        %v3240 = vunpack.c.h.b16 %v2705
        %v3241 = vunpack.c.l.b16 %v2706
        %v3242 = vunpack.c.h.b16 %v2706
        %v3243 = vunpack.c.l.b16 %v2707
        %v3244 = vunpack.c.h.b16 %v2707
        %v3245 = vunpack.c.l.b16 %v2708
        %v3246 = vunpack.c.h.b16 %v2708
        %v3247 = vunpack.c.l.b16 %v2709
        %v3248 = vunpack.c.h.b16 %v2709
        %v3249 = vunpack.c.l.b16 %v2710
        %v3250 = vunpack.c.h.b16 %v2710
        %v3251 = vunpack.c.l.b16 %v2711
        %v3252 = vunpack.c.h.b16 %v2711
        %v3253 = vunpack.c.l.b16 %v2712
        %v3254 = vunpack.c.h.b16 %v2712
        %v3255 = vunpack.c.l.b16 %v2713
        %v3256 = vunpack.c.h.b16 %v2713
        %v3257 = vunpack.c.l.b16 %v2714
        %v3258 = vunpack.c.h.b16 %v2714
        %v3259 = vunpack.c.l.b16 %v2715
        %v3260 = vunpack.c.h.b16 %v2715
        %v3261 = vunpack.c.l.b16 %v2716
        %v3262 = vunpack.c.h.b16 %v2716
        %v3263 = vunpack.c.l.b16 %v2717
        %v3264 = vunpack.c.h.b16 %v2717
        %v3265 = vunpack.c.l.b16 %v2718
        %v3266 = vunpack.c.h.b16 %v2718
        %v3267 = vunpack.c.l.b16 %v2719
        %v3268 = vunpack.c.h.b16 %v2719
        %v3269 = vunpack.c.l.b16 %v2720
        %v3270 = vunpack.c.h.b16 %v2720
        %v3271 = vunpack.c.l.b16 %v2721
        %v3272 = vunpack.c.h.b16 %v2721
        %v3273 = vunpack.c.l.b16 %v2722
        %v3274 = vunpack.c.h.b16 %v2722
        %v3275 = vunpack.c.l.b16 %v2723
        %v3276 = vunpack.c.h.b16 %v2723
        %v3277 = vunpack.c.l.b16 %v2724
        %v3278 = vunpack.c.h.b16 %v2724
        %v3279 = vunpack.c.l.b16 %v2725
        %v3280 = vunpack.c.h.b16 %v2725
        %v3281 = vunpack.c.l.b16 %v2726
        %v3282 = vunpack.c.h.b16 %v2726
        %v3283 = vunpack.c.l.b16 %v2727
        %v3284 = vunpack.c.h.b16 %v2727
        %v3285 = vunpack.c.l.b16 %v2728
        %v3286 = vunpack.c.h.b16 %v2728
        %v3287 = vunpack.c.l.b16 %v2729
        %v3288 = vunpack.c.h.b16 %v2729
        %v3289 = vunpack.c.l.b16 %v2730
        %v3290 = vunpack.c.h.b16 %v2730
        %v3291 = vunpack.c.l.b16 %v2731
        %v3292 = vunpack.c.h.b16 %v2731
        %v3293 = vunpack.c.l.b16 %v2732
        %v3294 = vunpack.c.h.b16 %v2732
        %v3295 = vunpack.c.l.b16 %v2733
        %v3296 = vunpack.c.h.b16 %v2733
        %v3297 = vunpack.c.l.b16 %v2734
        %v3298 = vunpack.c.h.b16 %v2734
        %v3299 = vunpack.c.l.b16 %v2735
        %v3300 = vunpack.c.h.b16 %v2735
        %v3301 = vunpack.c.l.b16 %v2736
        %v3302 = vunpack.c.h.b16 %v2736
        %v3303 = vunpack.c.l.b16 %v2737
        %v3304 = vunpack.c.h.b16 %v2737
        %v3305 = vunpack.c.l.b16 %v2738
        %v3306 = vunpack.c.h.b16 %v2738
        %v3307 = vunpack.c.l.b16 %v2739
        %v3308 = vunpack.c.h.b16 %v2739
        %v3309 = vunpack.c.l.b16 %v2740
        %v3310 = vunpack.c.h.b16 %v2740
        %v3311 = vunpack.c.l.b16 %v2741
        %v3312 = vunpack.c.h.b16 %v2741
        %v3313 = vunpack.c.l.b16 %v2742
        %v3314 = vunpack.c.h.b16 %v2742
        %v3315 = vunpack.c.l.b16 %v2743
        %v3316 = vunpack.c.h.b16 %v2743
        %v3317 = vunpack.c.l.b16 %v2744
        %v3318 = vunpack.c.h.b16 %v2744
        %v3319 = vunpack.c.l.b16 %v2745
        %v3320 = vunpack.c.h.b16 %v2745
        %v3321 = vunpack.c.l.b16 %v2746
        %v3322 = vunpack.c.h.b16 %v2746
        %v3323 = vunpack.c.l.b16 %v2747
        %v3324 = vunpack.c.h.b16 %v2747
        %v3325 = vunpack.c.l.b16 %v2748
        %v3326 = vunpack.c.h.b16 %v2748
        %v3327 = vpack.c.b16 %v3233, %v3231
        %v3328 = vpack.c.b16 %v3234, %v3232
        %v3329 = vpack.c.b16 %v3237, %v3235
        %v3330 = vpack.c.b16 %v3238, %v3236
        %v3331 = vpack.c.b16 %v3241, %v3239
        %v3332 = vpack.c.b16 %v3242, %v3240
        %v3333 = vpack.c.b16 %v3245, %v3243
        %v3334 = vpack.c.b16 %v3246, %v3244
        %v3335 = vpack.c.b16 %v3249, %v3247
        %v3336 = vpack.c.b16 %v3250, %v3248
        %v3337 = vpack.c.b16 %v3253, %v3251
        %v3338 = vpack.c.b16 %v3254, %v3252
        %v3339 = vpack.c.b16 %v3257, %v3255
        %v3340 = vpack.c.b16 %v3258, %v3256
        %v3341 = vpack.c.b16 %v3261, %v3259
        %v3342 = vpack.c.b16 %v3262, %v3260
        %v3343 = vpack.c.b16 %v3265, %v3263
        %v3344 = vpack.c.b16 %v3266, %v3264
        %v3345 = vpack.c.b16 %v3269, %v3267
        %v3346 = vpack.c.b16 %v3270, %v3268
        %v3347 = vpack.c.b16 %v3273, %v3271
        %v3348 = vpack.c.b16 %v3274, %v3272
        %v3349 = vpack.c.b16 %v3277, %v3275
        %v3350 = vpack.c.b16 %v3278, %v3276
        %v3351 = vpack.c.b16 %v3281, %v3279
        %v3352 = vpack.c.b16 %v3282, %v3280
        %v3353 = vpack.c.b16 %v3285, %v3283
        %v3354 = vpack.c.b16 %v3286, %v3284
        %v3355 = vpack.c.b16 %v3289, %v3287
        %v3356 = vpack.c.b16 %v3290, %v3288
        %v3357 = vpack.c.b16 %v3293, %v3291
        %v3358 = vpack.c.b16 %v3294, %v3292
        %v3359 = vpack.c.b16 %v3297, %v3295
        %v3360 = vpack.c.b16 %v3298, %v3296
        %v3361 = vpack.c.b16 %v3301, %v3299
        %v3362 = vpack.c.b16 %v3302, %v3300
        %v3363 = vpack.c.b16 %v3305, %v3303
        %v3364 = vpack.c.b16 %v3306, %v3304
        %v3365 = vpack.c.b16 %v3309, %v3307
        %v3366 = vpack.c.b16 %v3310, %v3308
        %v3367 = vpack.c.b16 %v3313, %v3311
        %v3368 = vpack.c.b16 %v3314, %v3312
        %v3369 = vpack.c.b16 %v3317, %v3315
        %v3370 = vpack.c.b16 %v3318, %v3316
        %v3371 = vpack.c.b16 %v3321, %v3319
        %v3372 = vpack.c.b16 %v3322, %v3320
        %v3373 = vpack.c.b16 %v3325, %v3323
        %v3374 = vpack.c.b16 %v3326, %v3324
        %3423 = vmatpush.bf16.msra.mxu0 %v3341
        %3424 = vmatpush.bf16.msra.mxu0 %v3339
        %3425 = vmatpush.bf16.msra.mxu0 %v3337
        %3426 = vmatpush.bf16.msra.mxu0 %v3335
        %3427 = vmatpush.bf16.msra.mxu0 %v3333
        %3428 = vmatpush.bf16.msra.mxu0 %v3331
        %3429 = vmatpush.bf16.msra.mxu0 %v3329
        %3430 = vmatpush.bf16.msra.mxu0 %v3327
        %3431 = vmatmul.bf16.gmra.mxu0 %v2683
        %v3432 = vpop.f32.mrf.mxu0
        %v3433 = vadd.f32 %v3137, %v3432
        %v3434 = vpop.f32.mrf.mxu0
        %v3435 = vadd.f32 %v3139, %v3434
        %3436 = vdwg.mxu0
        %3437 = vmatpush.bf16.msra.mxu0 %v3357
        %3438 = vmatpush.bf16.msra.mxu0 %v3355
        %3439 = vmatpush.bf16.msra.mxu0 %v3353
        %3440 = vmatpush.bf16.msra.mxu0 %v3351
        %3441 = vmatpush.bf16.msra.mxu0 %v3349
        %3442 = vmatpush.bf16.msra.mxu0 %v3347
        %3443 = vmatpush.bf16.msra.mxu0 %v3345
        %3444 = vmatpush.bf16.msra.mxu0 %v3343
        %3445 = vmatmul.bf16.gmra.mxu0 %v2694
        %v3446 = vpop.f32.mrf.mxu0
        %v3447 = vadd.f32 %v3433, %v3446
        %v3448 = vpop.f32.mrf.mxu0
        %v3449 = vadd.f32 %v3435, %v3448
        %3450 = vdwg.mxu0
        %3451 = vmatpush.bf16.msra.mxu0 %v3373
        %3452 = vmatpush.bf16.msra.mxu0 %v3371
        %3453 = vmatpush.bf16.msra.mxu0 %v3369
        %3454 = vmatpush.bf16.msra.mxu0 %v3367
        %3455 = vmatpush.bf16.msra.mxu0 %v3365
        %3456 = vmatpush.bf16.msra.mxu0 %v3363
        %3457 = vmatpush.bf16.msra.mxu0 %v3361
        %3458 = vmatpush.bf16.msra.mxu0 %v3359
        %3459 = vmatmul.bf16.gmra.mxu0 %v2699
        %v3460 = vpop.f32.mrf.mxu0
        %v3461 = vadd.f32 %v3447, %v3460
        %v3462 = vpop.f32.mrf.mxu0
        %v3463 = vadd.f32 %v3449, %v3462
        %3464 = vdwg.mxu0
        %3465 = vmatpush.bf16.msra.mxu0 %v3342
        %3466 = vmatpush.bf16.msra.mxu0 %v3340
        %3467 = vmatpush.bf16.msra.mxu0 %v3338
        %3468 = vmatpush.bf16.msra.mxu0 %v3336
        %3469 = vmatpush.bf16.msra.mxu0 %v3334
        %3470 = vmatpush.bf16.msra.mxu0 %v3332
        %3471 = vmatpush.bf16.msra.mxu0 %v3330
        %3472 = vmatpush.bf16.msra.mxu0 %v3328
        %3473 = vmatmul.bf16.gmra.mxu0 %v2683
        %v3474 = vpop.f32.mrf.mxu0
        %v3475 = vadd.f32 %v3179, %v3474
        %v3476 = vpop.f32.mrf.mxu0
        %v3477 = vadd.f32 %v3181, %v3476
        %3478 = vdwg.mxu0
        %3479 = vmatpush.bf16.msra.mxu0 %v3358
        %3480 = vmatpush.bf16.msra.mxu0 %v3356
        %3481 = vmatpush.bf16.msra.mxu0 %v3354
        %3482 = vmatpush.bf16.msra.mxu0 %v3352
        %3483 = vmatpush.bf16.msra.mxu0 %v3350
        %3484 = vmatpush.bf16.msra.mxu0 %v3348
        %3485 = vmatpush.bf16.msra.mxu0 %v3346
        %3486 = vmatpush.bf16.msra.mxu0 %v3344
        %3487 = vmatmul.bf16.gmra.mxu0 %v2694
        %v3488 = vpop.f32.mrf.mxu0
        %v3489 = vadd.f32 %v3475, %v3488
        %v3490 = vpop.f32.mrf.mxu0
        %v3491 = vadd.f32 %v3477, %v3490
        %3492 = vdwg.mxu0
        %3493 = vmatpush.bf16.msra.mxu0 %v3374
        %3494 = vmatpush.bf16.msra.mxu0 %v3372
        %3495 = vmatpush.bf16.msra.mxu0 %v3370
        %3496 = vmatpush.bf16.msra.mxu0 %v3368
        %3497 = vmatpush.bf16.msra.mxu0 %v3366
        %3498 = vmatpush.bf16.msra.mxu0 %v3364
        %3499 = vmatpush.bf16.msra.mxu0 %v3362
        %3500 = vmatpush.bf16.msra.mxu0 %v3360
        %3501 = vmatmul.bf16.gmra.mxu0 %v2699
        %v3502 = vpop.f32.mrf.mxu0
        %v3503 = vadd.f32 %v3489, %v3502
        %v3504 = vpop.f32.mrf.mxu0
        %v3505 = vadd.f32 %v3491, %v3504
        %3506 = vdwg.mxu0
        %v3507 = vld [vmem:[#allocation5 + $0x4] sm:$0x8]
        %v3508 = vld [vmem:[#allocation5 + $0x8] sm:$0xf]
        %v3509 = vld [vmem:[#allocation5 + $0xc] sm:$0x3]
        %v3510 = vld [vmem:[#allocation5 + $0xc] sm:$0x7]
        %v3514 = vunpack.c.l.b16 %v3507
        %v3515 = vunpack.c.l.b16 %v3508
        %v3516 = vunpack.c.l.b16 %v3509
        %v3517 = vpack.c.b16 %v3515, %v3514
        %v3518 = vpack.c.b16 %v3516, %v3516
        %v3520 = vunpack.c.l.b16 %v3510
        %v3521 = vpack.c.b16 %v3520, %v3520
        %v3523 = vshrl.u32 %v3517, 16
        %v3525 = vshll.u32 %v3517, 16
        %v3527 = vrot.slane %v3525, 1
        %v3528 = vor.u32 %v3523, %v3527
        %v3530 = vshll.u32 %v3521, 16
        %v3532 = vrot.slane %v3530, 1
        %v3533 = vsel %vm428, %v3528, %v3532
        %v3534 = vshrl.u32 %v3521, 16
        %v3536 = vor.u32 %v3534, %v3532
        %v3537 = vpack.c.b16 %v3520, %v3515
        %v3538 = vrot.slane %v3537, 5
        %s3539 = scalar_lea.vmem %s5, 768
        %v3540 = vld [vmem:[%s3539] sm:$0xff]
        %v3541 = vld [vmem:[%s3539 + $0x8] sm:$0xff]
        %v3542 = vld [vmem:[%s3539 + $0x10] sm:$0xff]
        %v3543 = vld [vmem:[%s3539 + $0x18] sm:$0xff]
        %v3544 = vld [vmem:[%s3539 + $0x20] sm:$0xff]
        %v3545 = vld [vmem:[%s3539 + $0x28] sm:$0xff]
        %v3546 = vld [vmem:[%s3539 + $0x30] sm:$0xff]
        %v3547 = vld [vmem:[%s3539 + $0x38] sm:$0xff]
        %v3548 = vld [vmem:[%s3539 + $0x40] sm:$0xff]
        %v3549 = vld [vmem:[%s3539 + $0x48] sm:$0xff]
        %v3550 = vld [vmem:[%s3539 + $0x50] sm:$0xff]
        %v3551 = vld [vmem:[%s3539 + $0x58] sm:$0xff]
        %v3552 = vld [vmem:[%s3539 + $0x60] sm:$0xff]
        %v3553 = vld [vmem:[%s3539 + $0x68] sm:$0xff]
        %v3554 = vld [vmem:[%s3539 + $0x70] sm:$0xff]
        %v3555 = vld [vmem:[%s3539 + $0x78] sm:$0xff]
        %v3556 = vld [vmem:[%s3539 + $0x80] sm:$0xff]
        %v3557 = vld [vmem:[%s3539 + $0x88] sm:$0xff]
        %v3558 = vld [vmem:[%s3539 + $0x90] sm:$0xff]
        %v3559 = vld [vmem:[%s3539 + $0x98] sm:$0xff]
        %v3560 = vld [vmem:[%s3539 + $0xa0] sm:$0xff]
        %v3561 = vld [vmem:[%s3539 + $0xa8] sm:$0xff]
        %v3562 = vld [vmem:[%s3539 + $0xb0] sm:$0xff]
        %v3563 = vld [vmem:[%s3539 + $0xb8] sm:$0xff]
        %v3564 = vld [vmem:[%s3539 + $0xc0] sm:$0xff]
        %v3565 = vld [vmem:[%s3539 + $0xc8] sm:$0xff]
        %v3566 = vld [vmem:[%s3539 + $0xd0] sm:$0xff]
        %v3567 = vld [vmem:[%s3539 + $0xd8] sm:$0xff]
        %v3568 = vld [vmem:[%s3539 + $0xe0] sm:$0xff]
        %v3569 = vld [vmem:[%s3539 + $0xe8] sm:$0xff]
        %v3570 = vld [vmem:[%s3539 + $0xf0] sm:$0xff]
        %v3571 = vld [vmem:[%s3539 + $0xf8] sm:$0xff]
        %v3572 = vld [vmem:[%s3539 + $0x100] sm:$0xff]
        %v3573 = vld [vmem:[%s3539 + $0x108] sm:$0xff]
        %v3574 = vld [vmem:[%s3539 + $0x110] sm:$0xff]
        %v3575 = vld [vmem:[%s3539 + $0x118] sm:$0xff]
        %v3576 = vld [vmem:[%s3539 + $0x120] sm:$0xff]
        %v3577 = vld [vmem:[%s3539 + $0x128] sm:$0xff]
        %v3578 = vld [vmem:[%s3539 + $0x130] sm:$0xff]
        %v3579 = vld [vmem:[%s3539 + $0x138] sm:$0xff]
        %v3580 = vld [vmem:[%s3539 + $0x140] sm:$0xff]
        %v3581 = vld [vmem:[%s3539 + $0x148] sm:$0xff]
        %v3582 = vld [vmem:[%s3539 + $0x150] sm:$0xff]
        %v3583 = vld [vmem:[%s3539 + $0x158] sm:$0xff]
        %v3584 = vld [vmem:[%s3539 + $0x160] sm:$0xff]
        %v3585 = vld [vmem:[%s3539 + $0x168] sm:$0xff]
        %v3586 = vld [vmem:[%s3539 + $0x170] sm:$0xff]
        %v3587 = vld [vmem:[%s3539 + $0x178] sm:$0xff]
        %v3588 = vrot.slane %v3517, 3
        %v3589 = vrot.slane %v3518, 3
        %v3590 = vsel %vm816, %v3588, %v3589
        %v3591 = vrot.slane %v3533, 3
        %v3592 = vrot.slane %v3536, 3
        %v3593 = vsel %vm816, %v3591, %v3592
        %v3594 = vrot.slane %v3538, 3
        %v3595 = vsel %vm816, %v3594, %v3594
        %v3647 = vunpack.c.l.b16 %v3540
        %v3648 = vunpack.c.h.b16 %v3540
        %v3649 = vunpack.c.l.b16 %v3541
        %v3650 = vunpack.c.h.b16 %v3541
        %v3651 = vunpack.c.l.b16 %v3542
        %v3652 = vunpack.c.h.b16 %v3542
        %v3653 = vunpack.c.l.b16 %v3543
        %v3654 = vunpack.c.h.b16 %v3543
        %v3655 = vunpack.c.l.b16 %v3544
        %v3656 = vunpack.c.h.b16 %v3544
        %v3657 = vunpack.c.l.b16 %v3545
        %v3658 = vunpack.c.h.b16 %v3545
        %v3659 = vunpack.c.l.b16 %v3546
        %v3660 = vunpack.c.h.b16 %v3546
        %v3661 = vunpack.c.l.b16 %v3547
        %v3662 = vunpack.c.h.b16 %v3547
        %v3663 = vunpack.c.l.b16 %v3548
        %v3664 = vunpack.c.h.b16 %v3548
        %v3665 = vunpack.c.l.b16 %v3549
        %v3666 = vunpack.c.h.b16 %v3549
        %v3667 = vunpack.c.l.b16 %v3550
        %v3668 = vunpack.c.h.b16 %v3550
        %v3669 = vunpack.c.l.b16 %v3551
        %v3670 = vunpack.c.h.b16 %v3551
        %v3671 = vunpack.c.l.b16 %v3552
        %v3672 = vunpack.c.h.b16 %v3552
        %v3673 = vunpack.c.l.b16 %v3553
        %v3674 = vunpack.c.h.b16 %v3553
        %v3675 = vunpack.c.l.b16 %v3554
        %v3676 = vunpack.c.h.b16 %v3554
        %v3677 = vunpack.c.l.b16 %v3555
        %v3678 = vunpack.c.h.b16 %v3555
        %v3679 = vunpack.c.l.b16 %v3556
        %v3680 = vunpack.c.h.b16 %v3556
        %v3681 = vunpack.c.l.b16 %v3557
        %v3682 = vunpack.c.h.b16 %v3557
        %v3683 = vunpack.c.l.b16 %v3558
        %v3684 = vunpack.c.h.b16 %v3558
        %v3685 = vunpack.c.l.b16 %v3559
        %v3686 = vunpack.c.h.b16 %v3559
        %v3687 = vunpack.c.l.b16 %v3560
        %v3688 = vunpack.c.h.b16 %v3560
        %v3689 = vunpack.c.l.b16 %v3561
        %v3690 = vunpack.c.h.b16 %v3561
        %v3691 = vunpack.c.l.b16 %v3562
        %v3692 = vunpack.c.h.b16 %v3562
        %v3693 = vunpack.c.l.b16 %v3563
        %v3694 = vunpack.c.h.b16 %v3563
        %v3695 = vunpack.c.l.b16 %v3564
        %v3696 = vunpack.c.h.b16 %v3564
        %v3697 = vunpack.c.l.b16 %v3565
        %v3698 = vunpack.c.h.b16 %v3565
        %v3699 = vunpack.c.l.b16 %v3566
        %v3700 = vunpack.c.h.b16 %v3566
        %v3701 = vunpack.c.l.b16 %v3567
        %v3702 = vunpack.c.h.b16 %v3567
        %v3703 = vunpack.c.l.b16 %v3568
        %v3704 = vunpack.c.h.b16 %v3568
        %v3705 = vunpack.c.l.b16 %v3569
        %v3706 = vunpack.c.h.b16 %v3569
        %v3707 = vunpack.c.l.b16 %v3570
        %v3708 = vunpack.c.h.b16 %v3570
        %v3709 = vunpack.c.l.b16 %v3571
        %v3710 = vunpack.c.h.b16 %v3571
        %v3711 = vunpack.c.l.b16 %v3572
        %v3712 = vunpack.c.h.b16 %v3572
        %v3713 = vunpack.c.l.b16 %v3573
        %v3714 = vunpack.c.h.b16 %v3573
        %v3715 = vunpack.c.l.b16 %v3574
        %v3716 = vunpack.c.h.b16 %v3574
        %v3717 = vunpack.c.l.b16 %v3575
        %v3718 = vunpack.c.h.b16 %v3575
        %v3719 = vunpack.c.l.b16 %v3576
        %v3720 = vunpack.c.h.b16 %v3576
        %v3721 = vunpack.c.l.b16 %v3577
        %v3722 = vunpack.c.h.b16 %v3577
        %v3723 = vunpack.c.l.b16 %v3578
        %v3724 = vunpack.c.h.b16 %v3578
        %v3725 = vunpack.c.l.b16 %v3579
        %v3726 = vunpack.c.h.b16 %v3579
        %v3727 = vunpack.c.l.b16 %v3580
        %v3728 = vunpack.c.h.b16 %v3580
        %v3729 = vunpack.c.l.b16 %v3581
        %v3730 = vunpack.c.h.b16 %v3581
        %v3731 = vunpack.c.l.b16 %v3582
        %v3732 = vunpack.c.h.b16 %v3582
        %v3733 = vunpack.c.l.b16 %v3583
        %v3734 = vunpack.c.h.b16 %v3583
        %v3735 = vunpack.c.l.b16 %v3584
        %v3736 = vunpack.c.h.b16 %v3584
        %v3737 = vunpack.c.l.b16 %v3585
        %v3738 = vunpack.c.h.b16 %v3585
        %v3739 = vunpack.c.l.b16 %v3586
        %v3740 = vunpack.c.h.b16 %v3586
        %v3741 = vunpack.c.l.b16 %v3587
        %v3742 = vunpack.c.h.b16 %v3587
        %v3743 = vpack.c.b16 %v3649, %v3647
        %v3744 = vpack.c.b16 %v3650, %v3648
        %v3745 = vpack.c.b16 %v3653, %v3651
        %v3746 = vpack.c.b16 %v3654, %v3652
        %v3747 = vpack.c.b16 %v3657, %v3655
        %v3748 = vpack.c.b16 %v3658, %v3656
        %v3749 = vpack.c.b16 %v3661, %v3659
        %v3750 = vpack.c.b16 %v3662, %v3660
        %v3751 = vpack.c.b16 %v3665, %v3663
        %v3752 = vpack.c.b16 %v3666, %v3664
        %v3753 = vpack.c.b16 %v3669, %v3667
        %v3754 = vpack.c.b16 %v3670, %v3668
        %v3755 = vpack.c.b16 %v3673, %v3671
        %v3756 = vpack.c.b16 %v3674, %v3672
        %v3757 = vpack.c.b16 %v3677, %v3675
        %v3758 = vpack.c.b16 %v3678, %v3676
        %v3759 = vpack.c.b16 %v3681, %v3679
        %v3760 = vpack.c.b16 %v3682, %v3680
        %v3761 = vpack.c.b16 %v3685, %v3683
        %v3762 = vpack.c.b16 %v3686, %v3684
        %v3763 = vpack.c.b16 %v3689, %v3687
        %v3764 = vpack.c.b16 %v3690, %v3688
        %v3765 = vpack.c.b16 %v3693, %v3691
        %v3766 = vpack.c.b16 %v3694, %v3692
        %v3767 = vpack.c.b16 %v3697, %v3695
        %v3768 = vpack.c.b16 %v3698, %v3696
        %v3769 = vpack.c.b16 %v3701, %v3699
        %v3770 = vpack.c.b16 %v3702, %v3700
        %v3771 = vpack.c.b16 %v3705, %v3703
        %v3772 = vpack.c.b16 %v3706, %v3704
        %v3773 = vpack.c.b16 %v3709, %v3707
        %v3774 = vpack.c.b16 %v3710, %v3708
        %v3775 = vpack.c.b16 %v3713, %v3711
        %v3776 = vpack.c.b16 %v3714, %v3712
        %v3777 = vpack.c.b16 %v3717, %v3715
        %v3778 = vpack.c.b16 %v3718, %v3716
        %v3779 = vpack.c.b16 %v3721, %v3719
        %v3780 = vpack.c.b16 %v3722, %v3720
        %v3781 = vpack.c.b16 %v3725, %v3723
        %v3782 = vpack.c.b16 %v3726, %v3724
        %v3783 = vpack.c.b16 %v3729, %v3727
        %v3784 = vpack.c.b16 %v3730, %v3728
        %v3785 = vpack.c.b16 %v3733, %v3731
        %v3786 = vpack.c.b16 %v3734, %v3732
        %v3787 = vpack.c.b16 %v3737, %v3735
        %v3788 = vpack.c.b16 %v3738, %v3736
        %v3789 = vpack.c.b16 %v3741, %v3739
        %v3790 = vpack.c.b16 %v3742, %v3740
        %3839 = vmatpush.bf16.msra.mxu0 %v3757
        %3840 = vmatpush.bf16.msra.mxu0 %v3755
        %3841 = vmatpush.bf16.msra.mxu0 %v3753
        %3842 = vmatpush.bf16.msra.mxu0 %v3751
        %3843 = vmatpush.bf16.msra.mxu0 %v3749
        %3844 = vmatpush.bf16.msra.mxu0 %v3747
        %3845 = vmatpush.bf16.msra.mxu0 %v3745
        %3846 = vmatpush.bf16.msra.mxu0 %v3743
        %3847 = vmatmul.bf16.gmra.mxu0 %v3590
        %v3848 = vpop.f32.mrf.mxu0
        %v3849 = vadd.f32 0.0, %v3848
        %v3850 = vpop.f32.mrf.mxu0
        %v3851 = vadd.f32 0.0, %v3850
        %3852 = vdwg.mxu0
        %3853 = vmatpush.bf16.msra.mxu0 %v3773
        %3854 = vmatpush.bf16.msra.mxu0 %v3771
        %3855 = vmatpush.bf16.msra.mxu0 %v3769
        %3856 = vmatpush.bf16.msra.mxu0 %v3767
        %3857 = vmatpush.bf16.msra.mxu0 %v3765
        %3858 = vmatpush.bf16.msra.mxu0 %v3763
        %3859 = vmatpush.bf16.msra.mxu0 %v3761
        %3860 = vmatpush.bf16.msra.mxu0 %v3759
        %3861 = vmatmul.bf16.gmra.mxu0 %v3593
        %v3862 = vpop.f32.mrf.mxu0
        %v3863 = vadd.f32 %v3849, %v3862
        %v3864 = vpop.f32.mrf.mxu0
        %v3865 = vadd.f32 %v3851, %v3864
        %3866 = vdwg.mxu0
        %3867 = vmatpush.bf16.msra.mxu0 %v3789
        %3868 = vmatpush.bf16.msra.mxu0 %v3787
        %3869 = vmatpush.bf16.msra.mxu0 %v3785
        %3870 = vmatpush.bf16.msra.mxu0 %v3783
        %3871 = vmatpush.bf16.msra.mxu0 %v3781
        %3872 = vmatpush.bf16.msra.mxu0 %v3779
        %3873 = vmatpush.bf16.msra.mxu0 %v3777
        %3874 = vmatpush.bf16.msra.mxu0 %v3775
        %3875 = vmatmul.bf16.gmra.mxu0 %v3595
        %v3876 = vpop.f32.mrf.mxu0
        %v3877 = vadd.f32 %v3863, %v3876
        %v3878 = vpop.f32.mrf.mxu0
        %v3879 = vadd.f32 %v3865, %v3878
        %3880 = vdwg.mxu0
        %3881 = vmatpush.bf16.msra.mxu0 %v3758
        %3882 = vmatpush.bf16.msra.mxu0 %v3756
        %3883 = vmatpush.bf16.msra.mxu0 %v3754
        %3884 = vmatpush.bf16.msra.mxu0 %v3752
        %3885 = vmatpush.bf16.msra.mxu0 %v3750
        %3886 = vmatpush.bf16.msra.mxu0 %v3748
        %3887 = vmatpush.bf16.msra.mxu0 %v3746
        %3888 = vmatpush.bf16.msra.mxu0 %v3744
        %3889 = vmatmul.bf16.gmra.mxu0 %v3590
        %v3890 = vpop.f32.mrf.mxu0
        %v3891 = vadd.f32 0.0, %v3890
        %v3892 = vpop.f32.mrf.mxu0
        %v3893 = vadd.f32 0.0, %v3892
        %3894 = vdwg.mxu0
        %3895 = vmatpush.bf16.msra.mxu0 %v3774
        %3896 = vmatpush.bf16.msra.mxu0 %v3772
        %3897 = vmatpush.bf16.msra.mxu0 %v3770
        %3898 = vmatpush.bf16.msra.mxu0 %v3768
        %3899 = vmatpush.bf16.msra.mxu0 %v3766
        %3900 = vmatpush.bf16.msra.mxu0 %v3764
        %3901 = vmatpush.bf16.msra.mxu0 %v3762
        %3902 = vmatpush.bf16.msra.mxu0 %v3760
        %3903 = vmatmul.bf16.gmra.mxu0 %v3593
        %v3904 = vpop.f32.mrf.mxu0
        %v3905 = vadd.f32 %v3891, %v3904
        %v3906 = vpop.f32.mrf.mxu0
        %v3907 = vadd.f32 %v3893, %v3906
        %3908 = vdwg.mxu0
        %3909 = vmatpush.bf16.msra.mxu0 %v3790
        %3910 = vmatpush.bf16.msra.mxu0 %v3788
        %3911 = vmatpush.bf16.msra.mxu0 %v3786
        %3912 = vmatpush.bf16.msra.mxu0 %v3784
        %3913 = vmatpush.bf16.msra.mxu0 %v3782
        %3914 = vmatpush.bf16.msra.mxu0 %v3780
        %3915 = vmatpush.bf16.msra.mxu0 %v3778
        %3916 = vmatpush.bf16.msra.mxu0 %v3776
        %3917 = vmatmul.bf16.gmra.mxu0 %v3595
        %v3918 = vpop.f32.mrf.mxu0
        %v3919 = vadd.f32 %v3905, %v3918
        %v3920 = vpop.f32.mrf.mxu0
        %v3921 = vadd.f32 %v3907, %v3920
        %3922 = vdwg.mxu0
        %v3923 = vadd.f32 %v3461, %v3877
        %v3924 = vadd.f32 %v3503, %v3919
        %v3925 = vadd.f32 %v3463, %v3879
        %v3926 = vadd.f32 %v3505, %v3921
        %v3927 = vld [vmem:[%s6] sm:$0x3]
        %v3929 = vperm.slane %v3927, 0
        %v3930 = vperm.slane %v3927, 1
        %v3933 = vadd.f32 %v3923, %v3929
        %v3934 = vadd.f32 %v3924, %v3930
        %v3935 = vadd.f32 %v3925, %v3929
        %v3936 = vadd.f32 %v3926, %v3930
        %v3937 = vmax.f32 %v3933, 0.0
        %v3938 = vmax.f32 %v3934, 0.0
        %v3939 = vmax.f32 %v3935, 0.0
        %v3940 = vmax.f32 %v3936, 0.0
        %v3941 = vpack.c.bf16 %v3938, %v3937
        %v3943 = vrot.slane %v3941, 3
        %vm3944 = vcmask 1040384
        %v3947 = vsel %vm3944, %v3941, %v3943
        %vm3949 = vcmask 1040384
        %vm3950 = vmand %vm3949, %vm1756
        %vm3951 = vcmask 1041409
        %vm3952 = vmand %vm3951, %vm1783
        %vm3953 = vmor %vm3952, %vm3950
        %v3954 = vld [vmem:[#allocation6] sm:$0x3]
        %v3955 = vsel %vm3953, %v3947, %v3954
        %3956 = vst [vmem:[#allocation6] sm:$0x3] %v3955
        %v3957 = vshrl.u32 %v3947, 16
        %v3959 = vrot.slane %v3957, 7
        %v3960 = vrot.slane %v3959, 1
        %v3962 = vld [vmem:[#allocation6 + $0x2] sm:$0x3]
        %v3963 = vsel %vm3953, %v3960, %v3962
        %3964 = vst [vmem:[#allocation6 + $0x2] sm:$0x3] %v3963
        %3965 = vst [vmem:[#allocation1] sm:$0xff] %v3941
        %s3966 = scalar_lea.vmem [#allocation1], 1
        %v3967 = vld [vmem:[%s3966] ss:$4 sm:$0xff]
        %v3969 = vld [vmem:[#allocation6 + $0x4] sm:$0x3]
        %v3970 = vsel %vm3953, %v3967, %v3969
        %3971 = vst [vmem:[#allocation6 + $0x4] sm:$0x3] %v3970
        %3972 = vst [vmem:[#allocation1] sm:$0xff] %v3941
        %s3973 = scalar_lea.vmem [#allocation1], 1
        %v3974 = vld [vmem:[%s3973] ss:$4 sm:$0xff]
        %v3975 = vshrl.u32 %v3974, 16
        %v3977 = vrot.slane %v3975, 7
        %v3978 = vrot.slane %v3977, 1
        %v3980 = vld [vmem:[#allocation6 + $0x6] sm:$0x3]
        %v3981 = vsel %vm3953, %v3978, %v3980
        %3982 = vst [vmem:[#allocation6 + $0x6] sm:$0x3] %v3981
        %3983 = vst [vmem:[#allocation1] sm:$0xff] %v3941
        %s3984 = scalar_lea.vmem [#allocation1], 2
        %v3985 = vld [vmem:[%s3984] ss:$4 sm:$0xff]
        %v3987 = vld [vmem:[#allocation6 + $0x8] sm:$0x3]
        %v3988 = vsel %vm3953, %v3985, %v3987
        %3989 = vst [vmem:[#allocation6 + $0x8] sm:$0x3] %v3988
        %3990 = vst [vmem:[#allocation1] sm:$0xff] %v3941
        %s3991 = scalar_lea.vmem [#allocation1], 3
        %v3992 = vld [vmem:[%s3991] ss:$4 sm:$0xff]
        %v3993 = vshrl.u32 %v3992, 16
        %v3995 = vrot.slane %v3993, 7
        %v3996 = vrot.slane %v3995, 1
        %v3998 = vld [vmem:[#allocation6 + $0xa] sm:$0x3]
        %v3999 = vsel %vm3953, %v3996, %v3998
        %4000 = vst [vmem:[#allocation6 + $0xa] sm:$0x3] %v3999
        %v4001 = vpack.c.bf16 %v3940, %v3939
        %v4003 = vrot.slane %v4001, 3
        %v4006 = vsel %vm3944, %v4001, %v4003
        %v4008 = vld [vmem:[#allocation6 + $0xc] sm:$0x3]
        %v4009 = vsel %vm3953, %v4006, %v4008
        %4010 = vst [vmem:[#allocation6 + $0xc] sm:$0x3] %v4009
        %v4011 = vshrl.u32 %v4006, 16
        %v4013 = vrot.slane %v4011, 7
        %v4014 = vrot.slane %v4013, 1
        %v4016 = vld [vmem:[#allocation6 + $0xe] sm:$0x3]
        %v4017 = vsel %vm3953, %v4014, %v4016
        %4018 = vst [vmem:[#allocation6 + $0xe] sm:$0x3] %v4017
        %4019 = vst [vmem:[#allocation1] sm:$0xff] %v4001
        %s4020 = scalar_lea.vmem [#allocation1], 1
        %v4021 = vld [vmem:[%s4020] ss:$4 sm:$0xff]
        %v4023 = vld [vmem:[#allocation6 + $0x10] sm:$0x3]
        %v4024 = vsel %vm3953, %v4021, %v4023
        %4025 = vst [vmem:[#allocation6 + $0x10] sm:$0x3] %v4024
        %4026 = vst [vmem:[#allocation1] sm:$0xff] %v4001
        %s4027 = scalar_lea.vmem [#allocation1], 1
        %v4028 = vld [vmem:[%s4027] ss:$4 sm:$0xff]
        %v4029 = vshrl.u32 %v4028, 16
        %v4031 = vrot.slane %v4029, 7
        %v4032 = vrot.slane %v4031, 1
        %v4034 = vld [vmem:[#allocation6 + $0x12] sm:$0x3]
        %v4035 = vsel %vm3953, %v4032, %v4034
        %4036 = vst [vmem:[#allocation6 + $0x12] sm:$0x3] %v4035
        %v4037 = vld [vmem:[#allocation6] sm:$0xff]
        %v4038 = vld [vmem:[#allocation6 + $0x8] sm:$0xff]
        %v4039 = vld [vmem:[#allocation6 + $0x10] sm:$0xf]
        %v4040 = vld [vmem:[%s7] sm:$0xf]
        %v4041 = vld [vmem:[%s7 + $0x4] sm:$0xf]
        %v4042 = vld [vmem:[%s7 + $0x8] sm:$0xf]
        %v4043 = vld [vmem:[%s7 + $0xc] sm:$0xf]
        %v4044 = vld [vmem:[%s7 + $0x10] sm:$0xf]
        %v4045 = vld [vmem:[%s7 + $0x14] sm:$0xf]
        %v4046 = vld [vmem:[%s7 + $0x18] sm:$0xf]
        %v4047 = vld [vmem:[%s7 + $0x1c] sm:$0xf]
        %v4048 = vld [vmem:[%s7 + $0x20] sm:$0xf]
        %v4049 = vld [vmem:[%s7 + $0x24] sm:$0xf]
        %v4050 = vld [vmem:[%s7 + $0x28] sm:$0xf]
        %v4051 = vld [vmem:[%s7 + $0x2c] sm:$0xf]
        %v4052 = vld [vmem:[%s7 + $0x30] sm:$0xf]
        %v4053 = vld [vmem:[%s7 + $0x34] sm:$0xf]
        %v4054 = vld [vmem:[%s7 + $0x38] sm:$0xf]
        %v4055 = vld [vmem:[%s7 + $0x3c] sm:$0xf]
        %v4056 = vld [vmem:[%s7 + $0x40] sm:$0xf]
        %v4057 = vld [vmem:[%s7 + $0x44] sm:$0xf]
        %v4058 = vld [vmem:[%s7 + $0x48] sm:$0xf]
        %v4059 = vld [vmem:[%s7 + $0x4c] sm:$0xf]
        %v4060 = vld [vmem:[%s7 + $0x50] sm:$0xf]
        %v4061 = vld [vmem:[%s7 + $0x54] sm:$0xf]
        %v4062 = vld [vmem:[%s7 + $0x58] sm:$0xf]
        %v4063 = vld [vmem:[%s7 + $0x5c] sm:$0xf]
        %v4064 = vld [vmem:[%s7 + $0x60] sm:$0xf]
        %v4065 = vld [vmem:[%s7 + $0x64] sm:$0xf]
        %v4066 = vld [vmem:[%s7 + $0x68] sm:$0xf]
        %v4067 = vld [vmem:[%s7 + $0x6c] sm:$0xf]
        %v4068 = vld [vmem:[%s7 + $0x70] sm:$0xf]
        %v4069 = vld [vmem:[%s7 + $0x74] sm:$0xf]
        %v4070 = vld [vmem:[%s7 + $0x78] sm:$0xf]
        %v4071 = vld [vmem:[%s7 + $0x7c] sm:$0xf]
        %v4072 = vld [vmem:[%s7 + $0x80] sm:$0xf]
        %v4073 = vld [vmem:[%s7 + $0x84] sm:$0xf]
        %v4074 = vld [vmem:[%s7 + $0x88] sm:$0xf]
        %v4075 = vld [vmem:[%s7 + $0x8c] sm:$0xf]
        %v4076 = vld [vmem:[%s7 + $0x90] sm:$0xf]
        %v4077 = vld [vmem:[%s7 + $0x94] sm:$0xf]
        %v4078 = vld [vmem:[%s7 + $0x98] sm:$0xf]
        %v4079 = vld [vmem:[%s7 + $0x9c] sm:$0xf]
        %v4080 = vld [vmem:[%s7 + $0xa0] sm:$0xf]
        %v4081 = vld [vmem:[%s7 + $0xa4] sm:$0xf]
        %v4082 = vld [vmem:[%s7 + $0xa8] sm:$0xf]
        %v4083 = vld [vmem:[%s7 + $0xac] sm:$0xf]
        %v4084 = vld [vmem:[%s7 + $0xb0] sm:$0xf]
        %v4085 = vld [vmem:[%s7 + $0xb4] sm:$0xf]
        %v4086 = vld [vmem:[%s7 + $0xb8] sm:$0xf]
        %v4087 = vld [vmem:[%s7 + $0xbc] sm:$0xf]
        %v4088 = vld [vmem:[%s7 + $0xc0] sm:$0xf]
        %v4089 = vld [vmem:[%s7 + $0xc4] sm:$0xf]
        %v4090 = vld [vmem:[%s7 + $0xc8] sm:$0xf]
        %v4091 = vld [vmem:[%s7 + $0xcc] sm:$0xf]
        %v4092 = vld [vmem:[%s7 + $0xd0] sm:$0xf]
        %v4093 = vld [vmem:[%s7 + $0xd4] sm:$0xf]
        %v4094 = vld [vmem:[%s7 + $0xd8] sm:$0xf]
        %v4095 = vld [vmem:[%s7 + $0xdc] sm:$0xf]
        %v4096 = vld [vmem:[%s7 + $0xe0] sm:$0xf]
        %v4097 = vld [vmem:[%s7 + $0xe4] sm:$0xf]
        %v4098 = vld [vmem:[%s7 + $0xe8] sm:$0xf]
        %v4099 = vld [vmem:[%s7 + $0xec] sm:$0xf]
        %v4100 = vld [vmem:[%s7 + $0xf0] sm:$0xf]
        %v4101 = vld [vmem:[%s7 + $0xf4] sm:$0xf]
        %v4102 = vld [vmem:[%s7 + $0xf8] sm:$0xf]
        %v4103 = vld [vmem:[%s7 + $0xfc] sm:$0xf]
        %v4104 = vld [vmem:[%s7 + $0x100] sm:$0xf]
        %v4105 = vld [vmem:[%s7 + $0x104] sm:$0xf]
        %v4106 = vld [vmem:[%s7 + $0x108] sm:$0xf]
        %v4107 = vld [vmem:[%s7 + $0x10c] sm:$0xf]
        %v4108 = vld [vmem:[%s7 + $0x110] sm:$0xf]
        %v4109 = vld [vmem:[%s7 + $0x114] sm:$0xf]
        %v4110 = vld [vmem:[%s7 + $0x118] sm:$0xf]
        %v4111 = vld [vmem:[%s7 + $0x11c] sm:$0xf]
        %v4112 = vld [vmem:[%s7 + $0x120] sm:$0xf]
        %v4113 = vld [vmem:[%s7 + $0x124] sm:$0xf]
        %v4114 = vld [vmem:[%s7 + $0x128] sm:$0xf]
        %v4115 = vld [vmem:[%s7 + $0x12c] sm:$0xf]
        %v4116 = vld [vmem:[%s7 + $0x130] sm:$0xf]
        %v4117 = vld [vmem:[%s7 + $0x134] sm:$0xf]
        %v4118 = vld [vmem:[%s7 + $0x138] sm:$0xf]
        %v4119 = vld [vmem:[%s7 + $0x13c] sm:$0xf]
        %v4120 = vld [vmem:[%s7 + $0x140] sm:$0xf]
        %v4121 = vld [vmem:[%s7 + $0x144] sm:$0xf]
        %v4122 = vld [vmem:[%s7 + $0x148] sm:$0xf]
        %v4123 = vld [vmem:[%s7 + $0x14c] sm:$0xf]
        %v4124 = vld [vmem:[%s7 + $0x150] sm:$0xf]
        %v4125 = vld [vmem:[%s7 + $0x154] sm:$0xf]
        %v4126 = vld [vmem:[%s7 + $0x158] sm:$0xf]
        %v4127 = vld [vmem:[%s7 + $0x15c] sm:$0xf]
        %v4128 = vld [vmem:[%s7 + $0x160] sm:$0xf]
        %v4129 = vld [vmem:[%s7 + $0x164] sm:$0xf]
        %v4130 = vld [vmem:[%s7 + $0x168] sm:$0xf]
        %v4131 = vld [vmem:[%s7 + $0x16c] sm:$0xf]
        %v4132 = vld [vmem:[%s7 + $0x170] sm:$0xf]
        %v4133 = vld [vmem:[%s7 + $0x174] sm:$0xf]
        %v4134 = vld [vmem:[%s7 + $0x178] sm:$0xf]
        %v4135 = vld [vmem:[%s7 + $0x17c] sm:$0xf]
        %v4136 = vld [vmem:[%s7 + $0x180] sm:$0xf]
        %v4137 = vld [vmem:[%s7 + $0x184] sm:$0xf]
        %v4138 = vld [vmem:[%s7 + $0x188] sm:$0xf]
        %v4139 = vld [vmem:[%s7 + $0x18c] sm:$0xf]
        %v4140 = vld [vmem:[%s7 + $0x190] sm:$0xf]
        %v4141 = vld [vmem:[%s7 + $0x194] sm:$0xf]
        %v4142 = vld [vmem:[%s7 + $0x198] sm:$0xf]
        %v4143 = vld [vmem:[%s7 + $0x19c] sm:$0xf]
        %v4144 = vld [vmem:[%s7 + $0x1a0] sm:$0xf]
        %v4145 = vld [vmem:[%s7 + $0x1a4] sm:$0xf]
        %v4146 = vld [vmem:[%s7 + $0x1a8] sm:$0xf]
        %v4147 = vld [vmem:[%s7 + $0x1ac] sm:$0xf]
        %v4148 = vld [vmem:[%s7 + $0x1b0] sm:$0xf]
        %v4149 = vld [vmem:[%s7 + $0x1b4] sm:$0xf]
        %v4150 = vld [vmem:[%s7 + $0x1b8] sm:$0xf]
        %v4151 = vld [vmem:[%s7 + $0x1bc] sm:$0xf]
        %v4152 = vld [vmem:[%s7 + $0x1c0] sm:$0xf]
        %v4153 = vld [vmem:[%s7 + $0x1c4] sm:$0xf]
        %v4154 = vld [vmem:[%s7 + $0x1c8] sm:$0xf]
        %v4155 = vld [vmem:[%s7 + $0x1cc] sm:$0xf]
        %v4156 = vld [vmem:[%s7 + $0x1d0] sm:$0xf]
        %v4157 = vld [vmem:[%s7 + $0x1d4] sm:$0xf]
        %v4158 = vld [vmem:[%s7 + $0x1d8] sm:$0xf]
        %v4159 = vld [vmem:[%s7 + $0x1dc] sm:$0xf]
        %v4160 = vld [vmem:[%s7 + $0x1e0] sm:$0xf]
        %v4161 = vld [vmem:[%s7 + $0x1e4] sm:$0xf]
        %v4162 = vld [vmem:[%s7 + $0x1e8] sm:$0xf]
        %v4163 = vld [vmem:[%s7 + $0x1ec] sm:$0xf]
        %v4164 = vld [vmem:[%s7 + $0x1f0] sm:$0xf]
        %v4165 = vld [vmem:[%s7 + $0x1f4] sm:$0xf]
        %v4166 = vld [vmem:[%s7 + $0x1f8] sm:$0xf]
        %v4167 = vld [vmem:[%s7 + $0x1fc] sm:$0xf]
        %v4168 = vld [vmem:[%s7 + $0x200] sm:$0xf]
        %v4169 = vld [vmem:[%s7 + $0x204] sm:$0xf]
        %v4170 = vld [vmem:[%s7 + $0x208] sm:$0xf]
        %v4171 = vld [vmem:[%s7 + $0x20c] sm:$0xf]
        %v4172 = vld [vmem:[%s7 + $0x210] sm:$0xf]
        %v4173 = vld [vmem:[%s7 + $0x214] sm:$0xf]
        %v4174 = vld [vmem:[%s7 + $0x218] sm:$0xf]
        %v4175 = vld [vmem:[%s7 + $0x21c] sm:$0xf]
        %v4176 = vld [vmem:[%s7 + $0x220] sm:$0xf]
        %v4177 = vld [vmem:[%s7 + $0x224] sm:$0xf]
        %v4178 = vld [vmem:[%s7 + $0x228] sm:$0xf]
        %v4179 = vld [vmem:[%s7 + $0x22c] sm:$0xf]
        %v4180 = vld [vmem:[%s7 + $0x230] sm:$0xf]
        %v4181 = vld [vmem:[%s7 + $0x234] sm:$0xf]
        %v4182 = vld [vmem:[%s7 + $0x238] sm:$0xf]
        %v4183 = vld [vmem:[%s7 + $0x23c] sm:$0xf]
        %v4184 = vld [vmem:[%s7 + $0x240] sm:$0xf]
        %v4185 = vld [vmem:[%s7 + $0x244] sm:$0xf]
        %v4186 = vld [vmem:[%s7 + $0x248] sm:$0xf]
        %v4187 = vld [vmem:[%s7 + $0x24c] sm:$0xf]
        %v4188 = vld [vmem:[%s7 + $0x250] sm:$0xf]
        %v4189 = vld [vmem:[%s7 + $0x254] sm:$0xf]
        %v4190 = vld [vmem:[%s7 + $0x258] sm:$0xf]
        %v4191 = vld [vmem:[%s7 + $0x25c] sm:$0xf]
        %v4192 = vld [vmem:[%s7 + $0x260] sm:$0xf]
        %v4193 = vld [vmem:[%s7 + $0x264] sm:$0xf]
        %v4194 = vld [vmem:[%s7 + $0x268] sm:$0xf]
        %v4195 = vld [vmem:[%s7 + $0x26c] sm:$0xf]
        %v4196 = vld [vmem:[%s7 + $0x270] sm:$0xf]
        %v4197 = vld [vmem:[%s7 + $0x274] sm:$0xf]
        %v4198 = vld [vmem:[%s7 + $0x278] sm:$0xf]
        %v4199 = vld [vmem:[%s7 + $0x27c] sm:$0xf]
        %v4200 = vld [vmem:[%s7 + $0x280] sm:$0xf]
        %v4201 = vld [vmem:[%s7 + $0x284] sm:$0xf]
        %v4202 = vld [vmem:[%s7 + $0x288] sm:$0xf]
        %v4203 = vld [vmem:[%s7 + $0x28c] sm:$0xf]
        %v4204 = vld [vmem:[%s7 + $0x290] sm:$0xf]
        %v4205 = vld [vmem:[%s7 + $0x294] sm:$0xf]
        %v4206 = vld [vmem:[%s7 + $0x298] sm:$0xf]
        %v4207 = vld [vmem:[%s7 + $0x29c] sm:$0xf]
        %v4208 = vld [vmem:[%s7 + $0x2a0] sm:$0xf]
        %v4209 = vld [vmem:[%s7 + $0x2a4] sm:$0xf]
        %v4210 = vld [vmem:[%s7 + $0x2a8] sm:$0xf]
        %v4211 = vld [vmem:[%s7 + $0x2ac] sm:$0xf]
        %v4212 = vld [vmem:[%s7 + $0x2b0] sm:$0xf]
        %v4213 = vld [vmem:[%s7 + $0x2b4] sm:$0xf]
        %v4214 = vld [vmem:[%s7 + $0x2b8] sm:$0xf]
        %v4215 = vld [vmem:[%s7 + $0x2bc] sm:$0xf]
        %v4216 = vld [vmem:[%s7 + $0x2c0] sm:$0xf]
        %v4217 = vld [vmem:[%s7 + $0x2c4] sm:$0xf]
        %v4218 = vld [vmem:[%s7 + $0x2c8] sm:$0xf]
        %v4219 = vld [vmem:[%s7 + $0x2cc] sm:$0xf]
        %v4220 = vld [vmem:[%s7 + $0x2d0] sm:$0xf]
        %v4221 = vld [vmem:[%s7 + $0x2d4] sm:$0xf]
        %v4222 = vld [vmem:[%s7 + $0x2d8] sm:$0xf]
        %v4223 = vld [vmem:[%s7 + $0x2dc] sm:$0xf]
        %v4224 = vld [vmem:[%s7 + $0x2e0] sm:$0xf]
        %v4225 = vld [vmem:[%s7 + $0x2e4] sm:$0xf]
        %v4226 = vld [vmem:[%s7 + $0x2e8] sm:$0xf]
        %v4227 = vld [vmem:[%s7 + $0x2ec] sm:$0xf]
        %v4228 = vld [vmem:[%s7 + $0x2f0] sm:$0xf]
        %v4229 = vld [vmem:[%s7 + $0x2f4] sm:$0xf]
        %v4230 = vld [vmem:[%s7 + $0x2f8] sm:$0xf]
        %v4231 = vld [vmem:[%s7 + $0x2fc] sm:$0xf]
        %v4232 = vld [vmem:[%s7 + $0x300] sm:$0xf]
        %v4233 = vld [vmem:[%s7 + $0x304] sm:$0xf]
        %v4234 = vld [vmem:[%s7 + $0x308] sm:$0xf]
        %v4235 = vld [vmem:[%s7 + $0x30c] sm:$0xf]
        %v4236 = vld [vmem:[%s7 + $0x310] sm:$0xf]
        %v4237 = vld [vmem:[%s7 + $0x314] sm:$0xf]
        %v4238 = vld [vmem:[%s7 + $0x318] sm:$0xf]
        %v4239 = vld [vmem:[%s7 + $0x31c] sm:$0xf]
        %v4240 = vld [vmem:[%s7 + $0x320] sm:$0xf]
        %v4241 = vld [vmem:[%s7 + $0x324] sm:$0xf]
        %v4242 = vld [vmem:[%s7 + $0x328] sm:$0xf]
        %v4243 = vld [vmem:[%s7 + $0x32c] sm:$0xf]
        %v4244 = vld [vmem:[%s7 + $0x330] sm:$0xf]
        %v4245 = vld [vmem:[%s7 + $0x334] sm:$0xf]
        %v4246 = vld [vmem:[%s7 + $0x338] sm:$0xf]
        %v4247 = vld [vmem:[%s7 + $0x33c] sm:$0xf]
        %v4248 = vld [vmem:[%s7 + $0x340] sm:$0xf]
        %v4249 = vld [vmem:[%s7 + $0x344] sm:$0xf]
        %v4250 = vld [vmem:[%s7 + $0x348] sm:$0xf]
        %v4251 = vld [vmem:[%s7 + $0x34c] sm:$0xf]
        %v4252 = vld [vmem:[%s7 + $0x350] sm:$0xf]
        %v4253 = vld [vmem:[%s7 + $0x354] sm:$0xf]
        %v4254 = vld [vmem:[%s7 + $0x358] sm:$0xf]
        %v4255 = vld [vmem:[%s7 + $0x35c] sm:$0xf]
        %v4256 = vld [vmem:[%s7 + $0x360] sm:$0xf]
        %v4257 = vld [vmem:[%s7 + $0x364] sm:$0xf]
        %v4258 = vld [vmem:[%s7 + $0x368] sm:$0xf]
        %v4259 = vld [vmem:[%s7 + $0x36c] sm:$0xf]
        %v4260 = vld [vmem:[%s7 + $0x370] sm:$0xf]
        %v4261 = vld [vmem:[%s7 + $0x374] sm:$0xf]
        %v4262 = vld [vmem:[%s7 + $0x378] sm:$0xf]
        %v4263 = vld [vmem:[%s7 + $0x37c] sm:$0xf]
        %v4264 = vld [vmem:[%s7 + $0x380] sm:$0xf]
        %v4265 = vld [vmem:[%s7 + $0x384] sm:$0xf]
        %v4266 = vld [vmem:[%s7 + $0x388] sm:$0xf]
        %v4267 = vld [vmem:[%s7 + $0x38c] sm:$0xf]
        %v4268 = vld [vmem:[%s7 + $0x390] sm:$0xf]
        %v4269 = vld [vmem:[%s7 + $0x394] sm:$0xf]
        %v4270 = vld [vmem:[%s7 + $0x398] sm:$0xf]
        %v4271 = vld [vmem:[%s7 + $0x39c] sm:$0xf]
        %v4272 = vld [vmem:[%s7 + $0x3a0] sm:$0xf]
        %v4273 = vld [vmem:[%s7 + $0x3a4] sm:$0xf]
        %v4274 = vld [vmem:[%s7 + $0x3a8] sm:$0xf]
        %v4275 = vld [vmem:[%s7 + $0x3ac] sm:$0xf]
        %v4276 = vld [vmem:[%s7 + $0x3b0] sm:$0xf]
        %v4277 = vld [vmem:[%s7 + $0x3b4] sm:$0xf]
        %v4278 = vld [vmem:[%s7 + $0x3b8] sm:$0xf]
        %v4279 = vld [vmem:[%s7 + $0x3bc] sm:$0xf]
        %v4280 = vld [vmem:[%s7 + $0x3c0] sm:$0xf]
        %v4281 = vld [vmem:[%s7 + $0x3c4] sm:$0xf]
        %v4282 = vld [vmem:[%s7 + $0x3c8] sm:$0xf]
        %v4283 = vld [vmem:[%s7 + $0x3cc] sm:$0xf]
        %v4284 = vld [vmem:[%s7 + $0x3d0] sm:$0xf]
        %v4285 = vld [vmem:[%s7 + $0x3d4] sm:$0xf]
        %v4286 = vld [vmem:[%s7 + $0x3d8] sm:$0xf]
        %v4287 = vld [vmem:[%s7 + $0x3dc] sm:$0xf]
        %v4288 = vld [vmem:[%s7 + $0x3e0] sm:$0xf]
        %v4289 = vld [vmem:[%s7 + $0x3e4] sm:$0xf]
        %v4290 = vld [vmem:[%s7 + $0x3e8] sm:$0xf]
        %v4291 = vld [vmem:[%s7 + $0x3ec] sm:$0xf]
        %v4292 = vld [vmem:[%s7 + $0x3f0] sm:$0xf]
        %v4293 = vld [vmem:[%s7 + $0x3f4] sm:$0xf]
        %v4294 = vld [vmem:[%s7 + $0x3f8] sm:$0xf]
        %v4295 = vld [vmem:[%s7 + $0x3fc] sm:$0xf]
        %v4296 = vld [vmem:[%s7 + $0x400] sm:$0xf]
        %v4297 = vld [vmem:[%s7 + $0x404] sm:$0xf]
        %v4298 = vld [vmem:[%s7 + $0x408] sm:$0xf]
        %v4299 = vld [vmem:[%s7 + $0x40c] sm:$0xf]
        %v4300 = vld [vmem:[%s7 + $0x410] sm:$0xf]
        %v4301 = vld [vmem:[%s7 + $0x414] sm:$0xf]
        %v4302 = vld [vmem:[%s7 + $0x418] sm:$0xf]
        %v4303 = vld [vmem:[%s7 + $0x41c] sm:$0xf]
        %v4304 = vld [vmem:[%s7 + $0x420] sm:$0xf]
        %v4305 = vld [vmem:[%s7 + $0x424] sm:$0xf]
        %v4306 = vld [vmem:[%s7 + $0x428] sm:$0xf]
        %v4307 = vld [vmem:[%s7 + $0x42c] sm:$0xf]
        %v4308 = vld [vmem:[%s7 + $0x430] sm:$0xf]
        %v4309 = vld [vmem:[%s7 + $0x434] sm:$0xf]
        %v4310 = vld [vmem:[%s7 + $0x438] sm:$0xf]
        %v4311 = vld [vmem:[%s7 + $0x43c] sm:$0xf]
        %v4312 = vld [vmem:[%s7 + $0x440] sm:$0xf]
        %v4313 = vld [vmem:[%s7 + $0x444] sm:$0xf]
        %v4314 = vld [vmem:[%s7 + $0x448] sm:$0xf]
        %v4315 = vld [vmem:[%s7 + $0x44c] sm:$0xf]
        %v4316 = vld [vmem:[%s7 + $0x450] sm:$0xf]
        %v4317 = vld [vmem:[%s7 + $0x454] sm:$0xf]
        %v4318 = vld [vmem:[%s7 + $0x458] sm:$0xf]
        %v4319 = vld [vmem:[%s7 + $0x45c] sm:$0xf]
        %v4320 = vld [vmem:[%s7 + $0x460] sm:$0xf]
        %v4321 = vld [vmem:[%s7 + $0x464] sm:$0xf]
        %v4322 = vld [vmem:[%s7 + $0x468] sm:$0xf]
        %v4323 = vld [vmem:[%s7 + $0x46c] sm:$0xf]
        %v4324 = vld [vmem:[%s7 + $0x470] sm:$0xf]
        %v4325 = vld [vmem:[%s7 + $0x474] sm:$0xf]
        %v4326 = vld [vmem:[%s7 + $0x478] sm:$0xf]
        %v4327 = vld [vmem:[%s7 + $0x47c] sm:$0xf]
        %v4328 = vld [vmem:[%s7 + $0x480] sm:$0xf]
        %v4329 = vld [vmem:[%s7 + $0x484] sm:$0xf]
        %v4330 = vld [vmem:[%s7 + $0x488] sm:$0xf]
        %v4331 = vld [vmem:[%s7 + $0x48c] sm:$0xf]
        %v4332 = vld [vmem:[%s7 + $0x490] sm:$0xf]
        %v4333 = vld [vmem:[%s7 + $0x494] sm:$0xf]
        %v4334 = vld [vmem:[%s7 + $0x498] sm:$0xf]
        %v4335 = vld [vmem:[%s7 + $0x49c] sm:$0xf]
        %v4336 = vld [vmem:[%s7 + $0x4a0] sm:$0xf]
        %v4337 = vld [vmem:[%s7 + $0x4a4] sm:$0xf]
        %v4338 = vld [vmem:[%s7 + $0x4a8] sm:$0xf]
        %v4339 = vld [vmem:[%s7 + $0x4ac] sm:$0xf]
        %v4340 = vld [vmem:[%s7 + $0x4b0] sm:$0xf]
        %v4341 = vld [vmem:[%s7 + $0x4b4] sm:$0xf]
        %v4342 = vld [vmem:[%s7 + $0x4b8] sm:$0xf]
        %v4343 = vld [vmem:[%s7 + $0x4bc] sm:$0xf]
        %v4344 = vld [vmem:[%s7 + $0x4c0] sm:$0xf]
        %v4345 = vld [vmem:[%s7 + $0x4c4] sm:$0xf]
        %v4346 = vld [vmem:[%s7 + $0x4c8] sm:$0xf]
        %v4347 = vld [vmem:[%s7 + $0x4cc] sm:$0xf]
        %v4348 = vld [vmem:[%s7 + $0x4d0] sm:$0xf]
        %v4349 = vld [vmem:[%s7 + $0x4d4] sm:$0xf]
        %v4350 = vld [vmem:[%s7 + $0x4d8] sm:$0xf]
        %v4351 = vld [vmem:[%s7 + $0x4dc] sm:$0xf]
        %v4352 = vld [vmem:[%s7 + $0x4e0] sm:$0xf]
        %v4353 = vld [vmem:[%s7 + $0x4e4] sm:$0xf]
        %v4354 = vld [vmem:[%s7 + $0x4e8] sm:$0xf]
        %v4355 = vld [vmem:[%s7 + $0x4ec] sm:$0xf]
        %v4356 = vld [vmem:[%s7 + $0x4f0] sm:$0xf]
        %v4357 = vld [vmem:[%s7 + $0x4f4] sm:$0xf]
        %v4358 = vld [vmem:[%s7 + $0x4f8] sm:$0xf]
        %v4359 = vld [vmem:[%s7 + $0x4fc] sm:$0xf]
        %v4360 = vld [vmem:[%s8] sm:$0x1]
        %4362 = vst [vmem:[#allocation1] ss:$9 sm:$0xff] %v4037
        %v4363 = vld [vmem:[#allocation1] sm:$0xff]
        %v4364 = vld [vmem:[#allocation1 + $0x9] sm:$0xff]
        %v4365 = vld [vmem:[#allocation1 + $0x12] sm:$0xff]
        %v4366 = vld [vmem:[#allocation1 + $0x1b] sm:$0xff]
        %v4367 = vld [vmem:[#allocation1 + $0x24] sm:$0xff]
        %v4368 = vld [vmem:[#allocation1 + $0x2d] sm:$0xff]
        %v4369 = vld [vmem:[#allocation1 + $0x36] sm:$0xff]
        %v4370 = vld [vmem:[#allocation1 + $0x3f] sm:$0xff]
        %4372 = vst [vmem:[#allocation1] ss:$9 sm:$0xff] %v4038
        %v4373 = vld [vmem:[#allocation1] sm:$0xff]
        %v4374 = vld [vmem:[#allocation1 + $0x9] sm:$0xff]
        %v4375 = vld [vmem:[#allocation1 + $0x12] sm:$0xff]
        %v4376 = vld [vmem:[#allocation1 + $0x1b] sm:$0xff]
        %v4377 = vld [vmem:[#allocation1 + $0x24] sm:$0xff]
        %v4378 = vld [vmem:[#allocation1 + $0x2d] sm:$0xff]
        %v4379 = vld [vmem:[#allocation1 + $0x36] sm:$0xff]
        %v4380 = vld [vmem:[#allocation1 + $0x3f] sm:$0xff]
        %4382 = vst [vmem:[#allocation1] ss:$9 sm:$0xff] %v4039
        %v4383 = vld [vmem:[#allocation1] sm:$0xff]
        %v4384 = vld [vmem:[#allocation1 + $0x9] sm:$0xff]
        %v4385 = vld [vmem:[#allocation1 + $0x12] sm:$0xff]
        %v4386 = vld [vmem:[#allocation1 + $0x1b] sm:$0xff]
        %v4727 = vunpack.c.l.b16 %v4040
        %v4728 = vunpack.c.l.b16 %v4041
        %v4729 = vunpack.c.l.b16 %v4042
        %v4730 = vunpack.c.l.b16 %v4043
        %v4731 = vunpack.c.l.b16 %v4044
        %v4732 = vunpack.c.l.b16 %v4045
        %v4733 = vunpack.c.l.b16 %v4046
        %v4734 = vunpack.c.l.b16 %v4047
        %v4735 = vunpack.c.l.b16 %v4048
        %v4736 = vunpack.c.l.b16 %v4049
        %v4737 = vunpack.c.l.b16 %v4050
        %v4738 = vunpack.c.l.b16 %v4051
        %v4739 = vunpack.c.l.b16 %v4052
        %v4740 = vunpack.c.l.b16 %v4053
        %v4741 = vunpack.c.l.b16 %v4054
        %v4742 = vunpack.c.l.b16 %v4055
        %v4743 = vunpack.c.l.b16 %v4056
        %v4744 = vunpack.c.l.b16 %v4057
        %v4745 = vunpack.c.l.b16 %v4058
        %v4746 = vunpack.c.l.b16 %v4059
        %v4747 = vunpack.c.l.b16 %v4060
        %v4748 = vunpack.c.l.b16 %v4061
        %v4749 = vunpack.c.l.b16 %v4062
        %v4750 = vunpack.c.l.b16 %v4063
        %v4751 = vunpack.c.l.b16 %v4064
        %v4752 = vunpack.c.l.b16 %v4065
        %v4753 = vunpack.c.l.b16 %v4066
        %v4754 = vunpack.c.l.b16 %v4067
        %v4755 = vunpack.c.l.b16 %v4068
        %v4756 = vunpack.c.l.b16 %v4069
        %v4757 = vunpack.c.l.b16 %v4070
        %v4758 = vunpack.c.l.b16 %v4071
        %v4759 = vunpack.c.l.b16 %v4072
        %v4760 = vunpack.c.l.b16 %v4073
        %v4761 = vunpack.c.l.b16 %v4074
        %v4762 = vunpack.c.l.b16 %v4075
        %v4763 = vunpack.c.l.b16 %v4076
        %v4764 = vunpack.c.l.b16 %v4077
        %v4765 = vunpack.c.l.b16 %v4078
        %v4766 = vunpack.c.l.b16 %v4079
        %v4767 = vunpack.c.l.b16 %v4080
        %v4768 = vunpack.c.l.b16 %v4081
        %v4769 = vunpack.c.l.b16 %v4082
        %v4770 = vunpack.c.l.b16 %v4083
        %v4771 = vunpack.c.l.b16 %v4084
        %v4772 = vunpack.c.l.b16 %v4085
        %v4773 = vunpack.c.l.b16 %v4086
        %v4774 = vunpack.c.l.b16 %v4087
        %v4775 = vunpack.c.l.b16 %v4088
        %v4776 = vunpack.c.l.b16 %v4089
        %v4777 = vunpack.c.l.b16 %v4090
        %v4778 = vunpack.c.l.b16 %v4091
        %v4779 = vunpack.c.l.b16 %v4092
        %v4780 = vunpack.c.l.b16 %v4093
        %v4781 = vunpack.c.l.b16 %v4094
        %v4782 = vunpack.c.l.b16 %v4095
        %v4783 = vunpack.c.l.b16 %v4096
        %v4784 = vunpack.c.l.b16 %v4097
        %v4785 = vunpack.c.l.b16 %v4098
        %v4786 = vunpack.c.l.b16 %v4099
        %v4787 = vunpack.c.l.b16 %v4100
        %v4788 = vunpack.c.l.b16 %v4101
        %v4789 = vunpack.c.l.b16 %v4102
        %v4790 = vunpack.c.l.b16 %v4103
        %v4791 = vunpack.c.l.b16 %v4104
        %v4792 = vunpack.c.l.b16 %v4105
        %v4793 = vunpack.c.l.b16 %v4106
        %v4794 = vunpack.c.l.b16 %v4107
        %v4795 = vunpack.c.l.b16 %v4108
        %v4796 = vunpack.c.l.b16 %v4109
        %v4797 = vunpack.c.l.b16 %v4110
        %v4798 = vunpack.c.l.b16 %v4111
        %v4799 = vunpack.c.l.b16 %v4112
        %v4800 = vunpack.c.l.b16 %v4113
        %v4801 = vunpack.c.l.b16 %v4114
        %v4802 = vunpack.c.l.b16 %v4115
        %v4803 = vunpack.c.l.b16 %v4116
        %v4804 = vunpack.c.l.b16 %v4117
        %v4805 = vunpack.c.l.b16 %v4118
        %v4806 = vunpack.c.l.b16 %v4119
        %v4807 = vunpack.c.l.b16 %v4120
        %v4808 = vunpack.c.l.b16 %v4121
        %v4809 = vunpack.c.l.b16 %v4122
        %v4810 = vunpack.c.l.b16 %v4123
        %v4811 = vunpack.c.l.b16 %v4124
        %v4812 = vunpack.c.l.b16 %v4125
        %v4813 = vunpack.c.l.b16 %v4126
        %v4814 = vunpack.c.l.b16 %v4127
        %v4815 = vunpack.c.l.b16 %v4128
        %v4816 = vunpack.c.l.b16 %v4129
        %v4817 = vunpack.c.l.b16 %v4130
        %v4818 = vunpack.c.l.b16 %v4131
        %v4819 = vunpack.c.l.b16 %v4132
        %v4820 = vunpack.c.l.b16 %v4133
        %v4821 = vunpack.c.l.b16 %v4134
        %v4822 = vunpack.c.l.b16 %v4135
        %v4823 = vunpack.c.l.b16 %v4136
        %v4824 = vunpack.c.l.b16 %v4137
        %v4825 = vunpack.c.l.b16 %v4138
        %v4826 = vunpack.c.l.b16 %v4139
        %v4827 = vunpack.c.l.b16 %v4140
        %v4828 = vunpack.c.l.b16 %v4141
        %v4829 = vunpack.c.l.b16 %v4142
        %v4830 = vunpack.c.l.b16 %v4143
        %v4831 = vunpack.c.l.b16 %v4144
        %v4832 = vunpack.c.l.b16 %v4145
        %v4833 = vunpack.c.l.b16 %v4146
        %v4834 = vunpack.c.l.b16 %v4147
        %v4835 = vunpack.c.l.b16 %v4148
        %v4836 = vunpack.c.l.b16 %v4149
        %v4837 = vunpack.c.l.b16 %v4150
        %v4838 = vunpack.c.l.b16 %v4151
        %v4839 = vunpack.c.l.b16 %v4152
        %v4840 = vunpack.c.l.b16 %v4153
        %v4841 = vunpack.c.l.b16 %v4154
        %v4842 = vunpack.c.l.b16 %v4155
        %v4843 = vunpack.c.l.b16 %v4156
        %v4844 = vunpack.c.l.b16 %v4157
        %v4845 = vunpack.c.l.b16 %v4158
        %v4846 = vunpack.c.l.b16 %v4159
        %v4847 = vunpack.c.l.b16 %v4160
        %v4848 = vunpack.c.l.b16 %v4161
        %v4849 = vunpack.c.l.b16 %v4162
        %v4850 = vunpack.c.l.b16 %v4163
        %v4851 = vunpack.c.l.b16 %v4164
        %v4852 = vunpack.c.l.b16 %v4165
        %v4853 = vunpack.c.l.b16 %v4166
        %v4854 = vunpack.c.l.b16 %v4167
        %v4855 = vunpack.c.l.b16 %v4168
        %v4856 = vunpack.c.l.b16 %v4169
        %v4857 = vunpack.c.l.b16 %v4170
        %v4858 = vunpack.c.l.b16 %v4171
        %v4859 = vunpack.c.l.b16 %v4172
        %v4860 = vunpack.c.l.b16 %v4173
        %v4861 = vunpack.c.l.b16 %v4174
        %v4862 = vunpack.c.l.b16 %v4175
        %v4863 = vunpack.c.l.b16 %v4176
        %v4864 = vunpack.c.l.b16 %v4177
        %v4865 = vunpack.c.l.b16 %v4178
        %v4866 = vunpack.c.l.b16 %v4179
        %v4867 = vunpack.c.l.b16 %v4180
        %v4868 = vunpack.c.l.b16 %v4181
        %v4869 = vunpack.c.l.b16 %v4182
        %v4870 = vunpack.c.l.b16 %v4183
        %v4871 = vunpack.c.l.b16 %v4184
        %v4872 = vunpack.c.l.b16 %v4185
        %v4873 = vunpack.c.l.b16 %v4186
        %v4874 = vunpack.c.l.b16 %v4187
        %v4875 = vunpack.c.l.b16 %v4188
        %v4876 = vunpack.c.l.b16 %v4189
        %v4877 = vunpack.c.l.b16 %v4190
        %v4878 = vunpack.c.l.b16 %v4191
        %v4879 = vunpack.c.l.b16 %v4192
        %v4880 = vunpack.c.l.b16 %v4193
        %v4881 = vunpack.c.l.b16 %v4194
        %v4882 = vunpack.c.l.b16 %v4195
        %v4883 = vunpack.c.l.b16 %v4196
        %v4884 = vunpack.c.l.b16 %v4197
        %v4885 = vunpack.c.l.b16 %v4198
        %v4886 = vunpack.c.l.b16 %v4199
        %v4887 = vunpack.c.l.b16 %v4200
        %v4888 = vunpack.c.l.b16 %v4201
        %v4889 = vunpack.c.l.b16 %v4202
        %v4890 = vunpack.c.l.b16 %v4203
        %v4891 = vunpack.c.l.b16 %v4204
        %v4892 = vunpack.c.l.b16 %v4205
        %v4893 = vunpack.c.l.b16 %v4206
        %v4894 = vunpack.c.l.b16 %v4207
        %v4895 = vunpack.c.l.b16 %v4208
        %v4896 = vunpack.c.l.b16 %v4209
        %v4897 = vunpack.c.l.b16 %v4210
        %v4898 = vunpack.c.l.b16 %v4211
        %v4899 = vunpack.c.l.b16 %v4212
        %v4900 = vunpack.c.l.b16 %v4213
        %v4901 = vunpack.c.l.b16 %v4214
        %v4902 = vunpack.c.l.b16 %v4215
        %v4903 = vunpack.c.l.b16 %v4216
        %v4904 = vunpack.c.l.b16 %v4217
        %v4905 = vunpack.c.l.b16 %v4218
        %v4906 = vunpack.c.l.b16 %v4219
        %v4907 = vunpack.c.l.b16 %v4220
        %v4908 = vunpack.c.l.b16 %v4221
        %v4909 = vunpack.c.l.b16 %v4222
        %v4910 = vunpack.c.l.b16 %v4223
        %v4911 = vunpack.c.l.b16 %v4224
        %v4912 = vunpack.c.l.b16 %v4225
        %v4913 = vunpack.c.l.b16 %v4226
        %v4914 = vunpack.c.l.b16 %v4227
        %v4915 = vunpack.c.l.b16 %v4228
        %v4916 = vunpack.c.l.b16 %v4229
        %v4917 = vunpack.c.l.b16 %v4230
        %v4918 = vunpack.c.l.b16 %v4231
        %v4919 = vunpack.c.l.b16 %v4232
        %v4920 = vunpack.c.l.b16 %v4233
        %v4921 = vunpack.c.l.b16 %v4234
        %v4922 = vunpack.c.l.b16 %v4235
        %v4923 = vunpack.c.l.b16 %v4236
        %v4924 = vunpack.c.l.b16 %v4237
        %v4925 = vunpack.c.l.b16 %v4238
        %v4926 = vunpack.c.l.b16 %v4239
        %v4927 = vunpack.c.l.b16 %v4240
        %v4928 = vunpack.c.l.b16 %v4241
        %v4929 = vunpack.c.l.b16 %v4242
        %v4930 = vunpack.c.l.b16 %v4243
        %v4931 = vunpack.c.l.b16 %v4244
        %v4932 = vunpack.c.l.b16 %v4245
        %v4933 = vunpack.c.l.b16 %v4246
        %v4934 = vunpack.c.l.b16 %v4247
        %v4935 = vunpack.c.l.b16 %v4248
        %v4936 = vunpack.c.l.b16 %v4249
        %v4937 = vunpack.c.l.b16 %v4250
        %v4938 = vunpack.c.l.b16 %v4251
        %v4939 = vunpack.c.l.b16 %v4252
        %v4940 = vunpack.c.l.b16 %v4253
        %v4941 = vunpack.c.l.b16 %v4254
        %v4942 = vunpack.c.l.b16 %v4255
        %v4943 = vunpack.c.l.b16 %v4256
        %v4944 = vunpack.c.l.b16 %v4257
        %v4945 = vunpack.c.l.b16 %v4258
        %v4946 = vunpack.c.l.b16 %v4259
        %v4947 = vunpack.c.l.b16 %v4260
        %v4948 = vunpack.c.l.b16 %v4261
        %v4949 = vunpack.c.l.b16 %v4262
        %v4950 = vunpack.c.l.b16 %v4263
        %v4951 = vunpack.c.l.b16 %v4264
        %v4952 = vunpack.c.l.b16 %v4265
        %v4953 = vunpack.c.l.b16 %v4266
        %v4954 = vunpack.c.l.b16 %v4267
        %v4955 = vunpack.c.l.b16 %v4268
        %v4956 = vunpack.c.l.b16 %v4269
        %v4957 = vunpack.c.l.b16 %v4270
        %v4958 = vunpack.c.l.b16 %v4271
        %v4959 = vunpack.c.l.b16 %v4272
        %v4960 = vunpack.c.l.b16 %v4273
        %v4961 = vunpack.c.l.b16 %v4274
        %v4962 = vunpack.c.l.b16 %v4275
        %v4963 = vunpack.c.l.b16 %v4276
        %v4964 = vunpack.c.l.b16 %v4277
        %v4965 = vunpack.c.l.b16 %v4278
        %v4966 = vunpack.c.l.b16 %v4279
        %v4967 = vunpack.c.l.b16 %v4280
        %v4968 = vunpack.c.l.b16 %v4281
        %v4969 = vunpack.c.l.b16 %v4282
        %v4970 = vunpack.c.l.b16 %v4283
        %v4971 = vunpack.c.l.b16 %v4284
        %v4972 = vunpack.c.l.b16 %v4285
        %v4973 = vunpack.c.l.b16 %v4286
        %v4974 = vunpack.c.l.b16 %v4287
        %v4975 = vunpack.c.l.b16 %v4288
        %v4976 = vunpack.c.l.b16 %v4289
        %v4977 = vunpack.c.l.b16 %v4290
        %v4978 = vunpack.c.l.b16 %v4291
        %v4979 = vunpack.c.l.b16 %v4292
        %v4980 = vunpack.c.l.b16 %v4293
        %v4981 = vunpack.c.l.b16 %v4294
        %v4982 = vunpack.c.l.b16 %v4295
        %v4983 = vunpack.c.l.b16 %v4296
        %v4984 = vunpack.c.l.b16 %v4297
        %v4985 = vunpack.c.l.b16 %v4298
        %v4986 = vunpack.c.l.b16 %v4299
        %v4987 = vunpack.c.l.b16 %v4300
        %v4988 = vunpack.c.l.b16 %v4301
        %v4989 = vunpack.c.l.b16 %v4302
        %v4990 = vunpack.c.l.b16 %v4303
        %v4991 = vunpack.c.l.b16 %v4304
        %v4992 = vunpack.c.l.b16 %v4305
        %v4993 = vunpack.c.l.b16 %v4306
        %v4994 = vunpack.c.l.b16 %v4307
        %v4995 = vunpack.c.l.b16 %v4308
        %v4996 = vunpack.c.l.b16 %v4309
        %v4997 = vunpack.c.l.b16 %v4310
        %v4998 = vunpack.c.l.b16 %v4311
        %v4999 = vunpack.c.l.b16 %v4312
        %v5000 = vunpack.c.l.b16 %v4313
        %v5001 = vunpack.c.l.b16 %v4314
        %v5002 = vunpack.c.l.b16 %v4315
        %v5003 = vunpack.c.l.b16 %v4316
        %v5004 = vunpack.c.l.b16 %v4317
        %v5005 = vunpack.c.l.b16 %v4318
        %v5006 = vunpack.c.l.b16 %v4319
        %v5007 = vunpack.c.l.b16 %v4320
        %v5008 = vunpack.c.l.b16 %v4321
        %v5009 = vunpack.c.l.b16 %v4322
        %v5010 = vunpack.c.l.b16 %v4323
        %v5011 = vunpack.c.l.b16 %v4324
        %v5012 = vunpack.c.l.b16 %v4325
        %v5013 = vunpack.c.l.b16 %v4326
        %v5014 = vunpack.c.l.b16 %v4327
        %v5015 = vunpack.c.l.b16 %v4328
        %v5016 = vunpack.c.l.b16 %v4329
        %v5017 = vunpack.c.l.b16 %v4330
        %v5018 = vunpack.c.l.b16 %v4331
        %v5019 = vunpack.c.l.b16 %v4332
        %v5020 = vunpack.c.l.b16 %v4333
        %v5021 = vunpack.c.l.b16 %v4334
        %v5022 = vunpack.c.l.b16 %v4335
        %v5023 = vunpack.c.l.b16 %v4336
        %v5024 = vunpack.c.l.b16 %v4337
        %v5025 = vunpack.c.l.b16 %v4338
        %v5026 = vunpack.c.l.b16 %v4339
        %v5027 = vunpack.c.l.b16 %v4340
        %v5028 = vunpack.c.l.b16 %v4341
        %v5029 = vunpack.c.l.b16 %v4342
        %v5030 = vunpack.c.l.b16 %v4343
        %v5031 = vunpack.c.l.b16 %v4344
        %v5032 = vunpack.c.l.b16 %v4345
        %v5033 = vunpack.c.l.b16 %v4346
        %v5034 = vunpack.c.l.b16 %v4347
        %v5035 = vunpack.c.l.b16 %v4348
        %v5036 = vunpack.c.l.b16 %v4349
        %v5037 = vunpack.c.l.b16 %v4350
        %v5038 = vunpack.c.l.b16 %v4351
        %v5039 = vunpack.c.l.b16 %v4352
        %v5040 = vunpack.c.l.b16 %v4353
        %v5041 = vunpack.c.l.b16 %v4354
        %v5042 = vunpack.c.l.b16 %v4355
        %v5043 = vunpack.c.l.b16 %v4356
        %v5044 = vunpack.c.l.b16 %v4357
        %v5045 = vunpack.c.l.b16 %v4358
        %v5046 = vunpack.c.l.b16 %v4359
        %v5047 = vpack.c.b16 %v4728, %v4727
        %v5048 = vpack.c.b16 %v4730, %v4729
        %v5049 = vpack.c.b16 %v4732, %v4731
        %v5050 = vpack.c.b16 %v4734, %v4733
        %v5051 = vpack.c.b16 %v4736, %v4735
        %v5052 = vpack.c.b16 %v4738, %v4737
        %v5053 = vpack.c.b16 %v4740, %v4739
        %v5054 = vpack.c.b16 %v4742, %v4741
        %v5055 = vpack.c.b16 %v4744, %v4743
        %v5056 = vpack.c.b16 %v4746, %v4745
        %v5057 = vpack.c.b16 %v4748, %v4747
        %v5058 = vpack.c.b16 %v4750, %v4749
        %v5059 = vpack.c.b16 %v4752, %v4751
        %v5060 = vpack.c.b16 %v4754, %v4753
        %v5061 = vpack.c.b16 %v4756, %v4755
        %v5062 = vpack.c.b16 %v4758, %v4757
        %v5063 = vpack.c.b16 %v4760, %v4759
        %v5064 = vpack.c.b16 %v4762, %v4761
        %v5065 = vpack.c.b16 %v4764, %v4763
        %v5066 = vpack.c.b16 %v4766, %v4765
        %v5067 = vpack.c.b16 %v4768, %v4767
        %v5068 = vpack.c.b16 %v4770, %v4769
        %v5069 = vpack.c.b16 %v4772, %v4771
        %v5070 = vpack.c.b16 %v4774, %v4773
        %v5071 = vpack.c.b16 %v4776, %v4775
        %v5072 = vpack.c.b16 %v4778, %v4777
        %v5073 = vpack.c.b16 %v4780, %v4779
        %v5074 = vpack.c.b16 %v4782, %v4781
        %v5075 = vpack.c.b16 %v4784, %v4783
        %v5076 = vpack.c.b16 %v4786, %v4785
        %v5077 = vpack.c.b16 %v4788, %v4787
        %v5078 = vpack.c.b16 %v4790, %v4789
        %v5079 = vpack.c.b16 %v4792, %v4791
        %v5080 = vpack.c.b16 %v4794, %v4793
        %v5081 = vpack.c.b16 %v4796, %v4795
        %v5082 = vpack.c.b16 %v4798, %v4797
        %v5083 = vpack.c.b16 %v4800, %v4799
        %v5084 = vpack.c.b16 %v4802, %v4801
        %v5085 = vpack.c.b16 %v4804, %v4803
        %v5086 = vpack.c.b16 %v4806, %v4805
        %v5087 = vpack.c.b16 %v4808, %v4807
        %v5088 = vpack.c.b16 %v4810, %v4809
        %v5089 = vpack.c.b16 %v4812, %v4811
        %v5090 = vpack.c.b16 %v4814, %v4813
        %v5091 = vpack.c.b16 %v4816, %v4815
        %v5092 = vpack.c.b16 %v4818, %v4817
        %v5093 = vpack.c.b16 %v4820, %v4819
        %v5094 = vpack.c.b16 %v4822, %v4821
        %v5095 = vpack.c.b16 %v4824, %v4823
        %v5096 = vpack.c.b16 %v4826, %v4825
        %v5097 = vpack.c.b16 %v4828, %v4827
        %v5098 = vpack.c.b16 %v4830, %v4829
        %v5099 = vpack.c.b16 %v4832, %v4831
        %v5100 = vpack.c.b16 %v4834, %v4833
        %v5101 = vpack.c.b16 %v4836, %v4835
        %v5102 = vpack.c.b16 %v4838, %v4837
        %v5103 = vpack.c.b16 %v4840, %v4839
        %v5104 = vpack.c.b16 %v4842, %v4841
        %v5105 = vpack.c.b16 %v4844, %v4843
        %v5106 = vpack.c.b16 %v4846, %v4845
        %v5107 = vpack.c.b16 %v4848, %v4847
        %v5108 = vpack.c.b16 %v4850, %v4849
        %v5109 = vpack.c.b16 %v4852, %v4851
        %v5110 = vpack.c.b16 %v4854, %v4853
        %v5111 = vpack.c.b16 %v4856, %v4855
        %v5112 = vpack.c.b16 %v4858, %v4857
        %v5113 = vpack.c.b16 %v4860, %v4859
        %v5114 = vpack.c.b16 %v4862, %v4861
        %v5115 = vpack.c.b16 %v4864, %v4863
        %v5116 = vpack.c.b16 %v4866, %v4865
        %v5117 = vpack.c.b16 %v4868, %v4867
        %v5118 = vpack.c.b16 %v4870, %v4869
        %v5119 = vpack.c.b16 %v4872, %v4871
        %v5120 = vpack.c.b16 %v4874, %v4873
        %v5121 = vpack.c.b16 %v4876, %v4875
        %v5122 = vpack.c.b16 %v4878, %v4877
        %v5123 = vpack.c.b16 %v4880, %v4879
        %v5124 = vpack.c.b16 %v4882, %v4881
        %v5125 = vpack.c.b16 %v4884, %v4883
        %v5126 = vpack.c.b16 %v4886, %v4885
        %v5127 = vpack.c.b16 %v4888, %v4887
        %v5128 = vpack.c.b16 %v4890, %v4889
        %v5129 = vpack.c.b16 %v4892, %v4891
        %v5130 = vpack.c.b16 %v4894, %v4893
        %v5131 = vpack.c.b16 %v4896, %v4895
        %v5132 = vpack.c.b16 %v4898, %v4897
        %v5133 = vpack.c.b16 %v4900, %v4899
        %v5134 = vpack.c.b16 %v4902, %v4901
        %v5135 = vpack.c.b16 %v4904, %v4903
        %v5136 = vpack.c.b16 %v4906, %v4905
        %v5137 = vpack.c.b16 %v4908, %v4907
        %v5138 = vpack.c.b16 %v4910, %v4909
        %v5139 = vpack.c.b16 %v4912, %v4911
        %v5140 = vpack.c.b16 %v4914, %v4913
        %v5141 = vpack.c.b16 %v4916, %v4915
        %v5142 = vpack.c.b16 %v4918, %v4917
        %v5143 = vpack.c.b16 %v4920, %v4919
        %v5144 = vpack.c.b16 %v4922, %v4921
        %v5145 = vpack.c.b16 %v4924, %v4923
        %v5146 = vpack.c.b16 %v4926, %v4925
        %v5147 = vpack.c.b16 %v4928, %v4927
        %v5148 = vpack.c.b16 %v4930, %v4929
        %v5149 = vpack.c.b16 %v4932, %v4931
        %v5150 = vpack.c.b16 %v4934, %v4933
        %v5151 = vpack.c.b16 %v4936, %v4935
        %v5152 = vpack.c.b16 %v4938, %v4937
        %v5153 = vpack.c.b16 %v4940, %v4939
        %v5154 = vpack.c.b16 %v4942, %v4941
        %v5155 = vpack.c.b16 %v4944, %v4943
        %v5156 = vpack.c.b16 %v4946, %v4945
        %v5157 = vpack.c.b16 %v4948, %v4947
        %v5158 = vpack.c.b16 %v4950, %v4949
        %v5159 = vpack.c.b16 %v4952, %v4951
        %v5160 = vpack.c.b16 %v4954, %v4953
        %v5161 = vpack.c.b16 %v4956, %v4955
        %v5162 = vpack.c.b16 %v4958, %v4957
        %v5163 = vpack.c.b16 %v4960, %v4959
        %v5164 = vpack.c.b16 %v4962, %v4961
        %v5165 = vpack.c.b16 %v4964, %v4963
        %v5166 = vpack.c.b16 %v4966, %v4965
        %v5167 = vpack.c.b16 %v4968, %v4967
        %v5168 = vpack.c.b16 %v4970, %v4969
        %v5169 = vpack.c.b16 %v4972, %v4971
        %v5170 = vpack.c.b16 %v4974, %v4973
        %v5171 = vpack.c.b16 %v4976, %v4975
        %v5172 = vpack.c.b16 %v4978, %v4977
        %v5173 = vpack.c.b16 %v4980, %v4979
        %v5174 = vpack.c.b16 %v4982, %v4981
        %v5175 = vpack.c.b16 %v4984, %v4983
        %v5176 = vpack.c.b16 %v4986, %v4985
        %v5177 = vpack.c.b16 %v4988, %v4987
        %v5178 = vpack.c.b16 %v4990, %v4989
        %v5179 = vpack.c.b16 %v4992, %v4991
        %v5180 = vpack.c.b16 %v4994, %v4993
        %v5181 = vpack.c.b16 %v4996, %v4995
        %v5182 = vpack.c.b16 %v4998, %v4997
        %v5183 = vpack.c.b16 %v5000, %v4999
        %v5184 = vpack.c.b16 %v5002, %v5001
        %v5185 = vpack.c.b16 %v5004, %v5003
        %v5186 = vpack.c.b16 %v5006, %v5005
        %v5187 = vpack.c.b16 %v5008, %v5007
        %v5188 = vpack.c.b16 %v5010, %v5009
        %v5189 = vpack.c.b16 %v5012, %v5011
        %v5190 = vpack.c.b16 %v5014, %v5013
        %v5191 = vpack.c.b16 %v5016, %v5015
        %v5192 = vpack.c.b16 %v5018, %v5017
        %v5193 = vpack.c.b16 %v5020, %v5019
        %v5194 = vpack.c.b16 %v5022, %v5021
        %v5195 = vpack.c.b16 %v5024, %v5023
        %v5196 = vpack.c.b16 %v5026, %v5025
        %v5197 = vpack.c.b16 %v5028, %v5027
        %v5198 = vpack.c.b16 %v5030, %v5029
        %v5199 = vpack.c.b16 %v5032, %v5031
        %v5200 = vpack.c.b16 %v5034, %v5033
        %v5201 = vpack.c.b16 %v5036, %v5035
        %v5202 = vpack.c.b16 %v5038, %v5037
        %v5203 = vpack.c.b16 %v5040, %v5039
        %v5204 = vpack.c.b16 %v5042, %v5041
        %v5205 = vpack.c.b16 %v5044, %v5043
        %v5206 = vpack.c.b16 %v5046, %v5045
        %5367 = vmatpush.bf16.msra.mxu0 %v5054
        %5368 = vmatpush.bf16.msra.mxu0 %v5053
        %5369 = vmatpush.bf16.msra.mxu0 %v5052
        %5370 = vmatpush.bf16.msra.mxu0 %v5051
        %5371 = vmatpush.bf16.msra.mxu0 %v5050
        %5372 = vmatpush.bf16.msra.mxu0 %v5049
        %5373 = vmatpush.bf16.msra.mxu0 %v5048
        %5374 = vmatpush.bf16.msra.mxu0 %v5047
        %5375 = vmatmul.bf16.gmra.mxu0 %v4363
        %v5376 = vpop.f32.mrf.mxu0
        %v5377 = vadd.f32 %v4360, %v5376
        %v5378 = vpop.f32.mrf.mxu0
        %5379 = vdwg.mxu0
        %5380 = vmatpush.bf16.msra.mxu0 %v5062
        %5381 = vmatpush.bf16.msra.mxu0 %v5061
        %5382 = vmatpush.bf16.msra.mxu0 %v5060
        %5383 = vmatpush.bf16.msra.mxu0 %v5059
        %5384 = vmatpush.bf16.msra.mxu0 %v5058
        %5385 = vmatpush.bf16.msra.mxu0 %v5057
        %5386 = vmatpush.bf16.msra.mxu0 %v5056
        %5387 = vmatpush.bf16.msra.mxu0 %v5055
        %5388 = vmatmul.bf16.gmra.mxu0 %v4364
        %v5389 = vpop.f32.mrf.mxu0
        %v5390 = vadd.f32 %v5377, %v5389
        %v5391 = vpop.f32.mrf.mxu0
        %5392 = vdwg.mxu0
        %5393 = vmatpush.bf16.msra.mxu0 %v5070
        %5394 = vmatpush.bf16.msra.mxu0 %v5069
        %5395 = vmatpush.bf16.msra.mxu0 %v5068
        %5396 = vmatpush.bf16.msra.mxu0 %v5067
        %5397 = vmatpush.bf16.msra.mxu0 %v5066
        %5398 = vmatpush.bf16.msra.mxu0 %v5065
        %5399 = vmatpush.bf16.msra.mxu0 %v5064
        %5400 = vmatpush.bf16.msra.mxu0 %v5063
        %5401 = vmatmul.bf16.gmra.mxu0 %v4365
        %v5402 = vpop.f32.mrf.mxu0
        %v5403 = vadd.f32 %v5390, %v5402
        %v5404 = vpop.f32.mrf.mxu0
        %5405 = vdwg.mxu0
        %5406 = vmatpush.bf16.msra.mxu0 %v5078
        %5407 = vmatpush.bf16.msra.mxu0 %v5077
        %5408 = vmatpush.bf16.msra.mxu0 %v5076
        %5409 = vmatpush.bf16.msra.mxu0 %v5075
        %5410 = vmatpush.bf16.msra.mxu0 %v5074
        %5411 = vmatpush.bf16.msra.mxu0 %v5073
        %5412 = vmatpush.bf16.msra.mxu0 %v5072
        %5413 = vmatpush.bf16.msra.mxu0 %v5071
        %5414 = vmatmul.bf16.gmra.mxu0 %v4366
        %v5415 = vpop.f32.mrf.mxu0
        %v5416 = vadd.f32 %v5403, %v5415
        %v5417 = vpop.f32.mrf.mxu0
        %5418 = vdwg.mxu0
        %5419 = vmatpush.bf16.msra.mxu0 %v5086
        %5420 = vmatpush.bf16.msra.mxu0 %v5085
        %5421 = vmatpush.bf16.msra.mxu0 %v5084
        %5422 = vmatpush.bf16.msra.mxu0 %v5083
        %5423 = vmatpush.bf16.msra.mxu0 %v5082
        %5424 = vmatpush.bf16.msra.mxu0 %v5081
        %5425 = vmatpush.bf16.msra.mxu0 %v5080
        %5426 = vmatpush.bf16.msra.mxu0 %v5079
        %5427 = vmatmul.bf16.gmra.mxu0 %v4367
        %v5428 = vpop.f32.mrf.mxu0
        %v5429 = vadd.f32 %v5416, %v5428
        %v5430 = vpop.f32.mrf.mxu0
        %5431 = vdwg.mxu0
        %5432 = vmatpush.bf16.msra.mxu0 %v5094
        %5433 = vmatpush.bf16.msra.mxu0 %v5093
        %5434 = vmatpush.bf16.msra.mxu0 %v5092
        %5435 = vmatpush.bf16.msra.mxu0 %v5091
        %5436 = vmatpush.bf16.msra.mxu0 %v5090
        %5437 = vmatpush.bf16.msra.mxu0 %v5089
        %5438 = vmatpush.bf16.msra.mxu0 %v5088
        %5439 = vmatpush.bf16.msra.mxu0 %v5087
        %5440 = vmatmul.bf16.gmra.mxu0 %v4368
        %v5441 = vpop.f32.mrf.mxu0
        %v5442 = vadd.f32 %v5429, %v5441
        %v5443 = vpop.f32.mrf.mxu0
        %5444 = vdwg.mxu0
        %5445 = vmatpush.bf16.msra.mxu0 %v5102
        %5446 = vmatpush.bf16.msra.mxu0 %v5101
        %5447 = vmatpush.bf16.msra.mxu0 %v5100
        %5448 = vmatpush.bf16.msra.mxu0 %v5099
        %5449 = vmatpush.bf16.msra.mxu0 %v5098
        %5450 = vmatpush.bf16.msra.mxu0 %v5097
        %5451 = vmatpush.bf16.msra.mxu0 %v5096
        %5452 = vmatpush.bf16.msra.mxu0 %v5095
        %5453 = vmatmul.bf16.gmra.mxu0 %v4369
        %v5454 = vpop.f32.mrf.mxu0
        %v5455 = vadd.f32 %v5442, %v5454
        %v5456 = vpop.f32.mrf.mxu0
        %5457 = vdwg.mxu0
        %5458 = vmatpush.bf16.msra.mxu0 %v5110
        %5459 = vmatpush.bf16.msra.mxu0 %v5109
        %5460 = vmatpush.bf16.msra.mxu0 %v5108
        %5461 = vmatpush.bf16.msra.mxu0 %v5107
        %5462 = vmatpush.bf16.msra.mxu0 %v5106
        %5463 = vmatpush.bf16.msra.mxu0 %v5105
        %5464 = vmatpush.bf16.msra.mxu0 %v5104
        %5465 = vmatpush.bf16.msra.mxu0 %v5103
        %5466 = vmatmul.bf16.gmra.mxu0 %v4370
        %v5467 = vpop.f32.mrf.mxu0
        %v5468 = vadd.f32 %v5455, %v5467
        %v5469 = vpop.f32.mrf.mxu0
        %5470 = vdwg.mxu0
        %5471 = vmatpush.bf16.msra.mxu0 %v5118
        %5472 = vmatpush.bf16.msra.mxu0 %v5117
        %5473 = vmatpush.bf16.msra.mxu0 %v5116
        %5474 = vmatpush.bf16.msra.mxu0 %v5115
        %5475 = vmatpush.bf16.msra.mxu0 %v5114
        %5476 = vmatpush.bf16.msra.mxu0 %v5113
        %5477 = vmatpush.bf16.msra.mxu0 %v5112
        %5478 = vmatpush.bf16.msra.mxu0 %v5111
        %5479 = vmatmul.bf16.gmra.mxu0 %v4373
        %v5480 = vpop.f32.mrf.mxu0
        %v5481 = vadd.f32 %v5468, %v5480
        %v5482 = vpop.f32.mrf.mxu0
        %5483 = vdwg.mxu0
        %5484 = vmatpush.bf16.msra.mxu0 %v5126
        %5485 = vmatpush.bf16.msra.mxu0 %v5125
        %5486 = vmatpush.bf16.msra.mxu0 %v5124
        %5487 = vmatpush.bf16.msra.mxu0 %v5123
        %5488 = vmatpush.bf16.msra.mxu0 %v5122
        %5489 = vmatpush.bf16.msra.mxu0 %v5121
        %5490 = vmatpush.bf16.msra.mxu0 %v5120
        %5491 = vmatpush.bf16.msra.mxu0 %v5119
        %5492 = vmatmul.bf16.gmra.mxu0 %v4374
        %v5493 = vpop.f32.mrf.mxu0
        %v5494 = vadd.f32 %v5481, %v5493
        %v5495 = vpop.f32.mrf.mxu0
        %5496 = vdwg.mxu0
        %5497 = vmatpush.bf16.msra.mxu0 %v5134
        %5498 = vmatpush.bf16.msra.mxu0 %v5133
        %5499 = vmatpush.bf16.msra.mxu0 %v5132
        %5500 = vmatpush.bf16.msra.mxu0 %v5131
        %5501 = vmatpush.bf16.msra.mxu0 %v5130
        %5502 = vmatpush.bf16.msra.mxu0 %v5129
        %5503 = vmatpush.bf16.msra.mxu0 %v5128
        %5504 = vmatpush.bf16.msra.mxu0 %v5127
        %5505 = vmatmul.bf16.gmra.mxu0 %v4375
        %v5506 = vpop.f32.mrf.mxu0
        %v5507 = vadd.f32 %v5494, %v5506
        %v5508 = vpop.f32.mrf.mxu0
        %5509 = vdwg.mxu0
        %5510 = vmatpush.bf16.msra.mxu0 %v5142
        %5511 = vmatpush.bf16.msra.mxu0 %v5141
        %5512 = vmatpush.bf16.msra.mxu0 %v5140
        %5513 = vmatpush.bf16.msra.mxu0 %v5139
        %5514 = vmatpush.bf16.msra.mxu0 %v5138
        %5515 = vmatpush.bf16.msra.mxu0 %v5137
        %5516 = vmatpush.bf16.msra.mxu0 %v5136
        %5517 = vmatpush.bf16.msra.mxu0 %v5135
        %5518 = vmatmul.bf16.gmra.mxu0 %v4376
        %v5519 = vpop.f32.mrf.mxu0
        %v5520 = vadd.f32 %v5507, %v5519
        %v5521 = vpop.f32.mrf.mxu0
        %5522 = vdwg.mxu0
        %5523 = vmatpush.bf16.msra.mxu0 %v5150
        %5524 = vmatpush.bf16.msra.mxu0 %v5149
        %5525 = vmatpush.bf16.msra.mxu0 %v5148
        %5526 = vmatpush.bf16.msra.mxu0 %v5147
        %5527 = vmatpush.bf16.msra.mxu0 %v5146
        %5528 = vmatpush.bf16.msra.mxu0 %v5145
        %5529 = vmatpush.bf16.msra.mxu0 %v5144
        %5530 = vmatpush.bf16.msra.mxu0 %v5143
        %5531 = vmatmul.bf16.gmra.mxu0 %v4377
        %v5532 = vpop.f32.mrf.mxu0
        %v5533 = vadd.f32 %v5520, %v5532
        %v5534 = vpop.f32.mrf.mxu0
        %5535 = vdwg.mxu0
        %5536 = vmatpush.bf16.msra.mxu0 %v5158
        %5537 = vmatpush.bf16.msra.mxu0 %v5157
        %5538 = vmatpush.bf16.msra.mxu0 %v5156
        %5539 = vmatpush.bf16.msra.mxu0 %v5155
        %5540 = vmatpush.bf16.msra.mxu0 %v5154
        %5541 = vmatpush.bf16.msra.mxu0 %v5153
        %5542 = vmatpush.bf16.msra.mxu0 %v5152
        %5543 = vmatpush.bf16.msra.mxu0 %v5151
        %5544 = vmatmul.bf16.gmra.mxu0 %v4378
        %v5545 = vpop.f32.mrf.mxu0
        %v5546 = vadd.f32 %v5533, %v5545
        %v5547 = vpop.f32.mrf.mxu0
        %5548 = vdwg.mxu0
        %5549 = vmatpush.bf16.msra.mxu0 %v5166
        %5550 = vmatpush.bf16.msra.mxu0 %v5165
        %5551 = vmatpush.bf16.msra.mxu0 %v5164
        %5552 = vmatpush.bf16.msra.mxu0 %v5163
        %5553 = vmatpush.bf16.msra.mxu0 %v5162
        %5554 = vmatpush.bf16.msra.mxu0 %v5161
        %5555 = vmatpush.bf16.msra.mxu0 %v5160
        %5556 = vmatpush.bf16.msra.mxu0 %v5159
        %5557 = vmatmul.bf16.gmra.mxu0 %v4379
        %v5558 = vpop.f32.mrf.mxu0
        %v5559 = vadd.f32 %v5546, %v5558
        %v5560 = vpop.f32.mrf.mxu0
        %5561 = vdwg.mxu0
        %5562 = vmatpush.bf16.msra.mxu0 %v5174
        %5563 = vmatpush.bf16.msra.mxu0 %v5173
        %5564 = vmatpush.bf16.msra.mxu0 %v5172
        %5565 = vmatpush.bf16.msra.mxu0 %v5171
        %5566 = vmatpush.bf16.msra.mxu0 %v5170
        %5567 = vmatpush.bf16.msra.mxu0 %v5169
        %5568 = vmatpush.bf16.msra.mxu0 %v5168
        %5569 = vmatpush.bf16.msra.mxu0 %v5167
        %5570 = vmatmul.bf16.gmra.mxu0 %v4380
        %v5571 = vpop.f32.mrf.mxu0
        %v5572 = vadd.f32 %v5559, %v5571
        %v5573 = vpop.f32.mrf.mxu0
        %5574 = vdwg.mxu0
        %5575 = vmatpush.bf16.msra.mxu0 %v5182
        %5576 = vmatpush.bf16.msra.mxu0 %v5181
        %5577 = vmatpush.bf16.msra.mxu0 %v5180
        %5578 = vmatpush.bf16.msra.mxu0 %v5179
        %5579 = vmatpush.bf16.msra.mxu0 %v5178
        %5580 = vmatpush.bf16.msra.mxu0 %v5177
        %5581 = vmatpush.bf16.msra.mxu0 %v5176
        %5582 = vmatpush.bf16.msra.mxu0 %v5175
        %5583 = vmatmul.bf16.gmra.mxu0 %v4383
        %v5584 = vpop.f32.mrf.mxu0
        %v5585 = vadd.f32 %v5572, %v5584
        %v5586 = vpop.f32.mrf.mxu0
        %5587 = vdwg.mxu0
        %5588 = vmatpush.bf16.msra.mxu0 %v5190
        %5589 = vmatpush.bf16.msra.mxu0 %v5189
        %5590 = vmatpush.bf16.msra.mxu0 %v5188
        %5591 = vmatpush.bf16.msra.mxu0 %v5187
        %5592 = vmatpush.bf16.msra.mxu0 %v5186
        %5593 = vmatpush.bf16.msra.mxu0 %v5185
        %5594 = vmatpush.bf16.msra.mxu0 %v5184
        %5595 = vmatpush.bf16.msra.mxu0 %v5183
        %5596 = vmatmul.bf16.gmra.mxu0 %v4384
        %v5597 = vpop.f32.mrf.mxu0
        %v5598 = vadd.f32 %v5585, %v5597
        %v5599 = vpop.f32.mrf.mxu0
        %5600 = vdwg.mxu0
        %5601 = vmatpush.bf16.msra.mxu0 %v5198
        %5602 = vmatpush.bf16.msra.mxu0 %v5197
        %5603 = vmatpush.bf16.msra.mxu0 %v5196
        %5604 = vmatpush.bf16.msra.mxu0 %v5195
        %5605 = vmatpush.bf16.msra.mxu0 %v5194
        %5606 = vmatpush.bf16.msra.mxu0 %v5193
        %5607 = vmatpush.bf16.msra.mxu0 %v5192
        %5608 = vmatpush.bf16.msra.mxu0 %v5191
        %5609 = vmatmul.bf16.gmra.mxu0 %v4385
        %v5610 = vpop.f32.mrf.mxu0
        %v5611 = vadd.f32 %v5598, %v5610
        %v5612 = vpop.f32.mrf.mxu0
        %5613 = vdwg.mxu0
        %5614 = vmatpush.bf16.msra.mxu0 %v5206
        %5615 = vmatpush.bf16.msra.mxu0 %v5205
        %5616 = vmatpush.bf16.msra.mxu0 %v5204
        %5617 = vmatpush.bf16.msra.mxu0 %v5203
        %5618 = vmatpush.bf16.msra.mxu0 %v5202
        %5619 = vmatpush.bf16.msra.mxu0 %v5201
        %5620 = vmatpush.bf16.msra.mxu0 %v5200
        %5621 = vmatpush.bf16.msra.mxu0 %v5199
        %5622 = vmatmul.bf16.gmra.mxu0 %v4386
        %v5623 = vpop.f32.mrf.mxu0
        %v5624 = vadd.f32 %v5611, %v5623
        %v5625 = vpop.f32.mrf.mxu0
        %5626 = vdwg.mxu0
        %vm5627 = vcmask 73728
        %v5628 = vsel %vm5627, %v5624, -inf
        %5629 = vmax.xlane.f32.xlu0 %v5628
        %v5630 = vpop.xlane.xlu0 %5629
        %v5631 = vsub.f32 %v5624, %v5630
        %v5632 = vmul.f32 %v5631, 1.442695
        %v5633 = vpow.pop %v5632
        %v5634 = vsel %vm5627, %v5633, 0.0
        %5635 = vadd.xlane.f32.xlu0 %v5634
        %v5636 = vpop.xlane.xlu0 %5635
        %v5637 = vrcp.pop %v5636
        %v5638 = vmul.f32 %v5633, %v5637
        %5639 = vst.msk [vmem:[%s324] sm:$0x1] %vm5627, %v5638
        %s5640 = sand.u32 %s225, 1
        %s5641 = scalar_lea.sflag [#allocation8], %s5640
        %s5642 = sand.u32 %s225, 1
        %s5643 = scalar_lea.vmem [#allocation7], %s5642
        // Predicated region
        $region57: #{cnn2d_forward.1} parent=55 // pred_check
          %p5644 = pneg %p235
        $region58: #{cnn2d_forward.1} parent=55 // pred_check_branch
          %5646 = sbr.rel (%p5644) target = $region60
        $region59: #{cnn2d_forward.1} parent=55 // pred_region
          %5648 = vsyncadd %s5641, 0
          %s5649 = scalar_lea.hbm %s9, %s23
          %s5651 = sshll.u32 %s5643, 4
          %s5652 = int_to_ptr.vmem [resolvable:$true] %s5651
          %s5653 = sshll.u32 %s5649, 4
          %s5654 = int_to_ptr.hbm [resolvable:$true] %s5653
          %5656 = dma.vmem_to_hbm [thread:$0]  %s5652, 16, %s5654, %s5641
        $region60: #{cnn2d_forward.1} parent=55 // pred_fallthru
          _
      $region56: #{cnn2d_forward.1} parent=5 // pred_fallthru
        _
      %p5657 = scmp.le.s32.totalorder 2, %s18
      // Predicated region
      $region61: #{cnn2d_forward.1} parent=5 // pred_check
        %p5658 = pneg %p5657
      $region62: #{cnn2d_forward.1} parent=5 // pred_check_branch
        %5660 = sbr.rel (%p5658) target = $region64
      $region63: #{cnn2d_forward.1} parent=5 // pred_region
        %s5661 = ssub.s32 %s18, 2
        // Predicated region
        $region65: #{cnn2d_forward.1} parent=63 // pred_check
          %p5662 = pneg %p241
        $region66: #{cnn2d_forward.1} parent=63 // pred_check_branch
          %5664 = sbr.rel (%p5662) target = $region68
        $region67: #{cnn2d_forward.1} parent=63 // pred_region
          %s5665 = sand.u32 %s226, 1
          %s5666 = scalar_lea.sflag [#allocation8], %s5665
          %s5667 = sand.u32 %s226, 1
          %s5668 = scalar_lea.vmem [#allocation7], %s5667
          %5670 = dma.done %s5666, 16
        $region68: #{cnn2d_forward.1} parent=63 // pred_fallthru
          _
      $region64: #{cnn2d_forward.1} parent=5 // pred_fallthru
        _
    $region6: #{cnn2d_forward.1} parent=1 // loop_footer
      %s22 = sadd.s32 1, %s18
    $region7: #{cnn2d_forward.1} parent=1 // loop_footer_branch
      %17 = sbr.rel target = $region3
    $region8: #{cnn2d_forward.1} parent=1 // loop_exit
      _
    %5671 = vsyncpa [#allocation8], 1
    %s5672 = scalar_lea.sflag [#allocation8], 1
    %5673 = vsyncpa %s5672, 1

</llo_original>
